<compile_context>
chip_gen: v6e
topology: v6e:2x2x1
jax: 0.10.0
libtpu: 0.0.40
codegen_flags: <defaults>
</compile_context>

<pallas_src>
import functools

import jax
import jax.numpy as jnp
from jax.experimental import pallas as pl
from jax.experimental.pallas import tpu as pltpu

LN_EPS = 1e-5


def _layernorm(x, gamma, beta):
    # Single-pass LN: var = E[x^2] - mean^2.  x: (N, D), gamma/beta: (1, D).
    mean = jnp.mean(x, axis=-1, keepdims=True)
    m2 = jnp.mean(x * x, axis=-1, keepdims=True)
    var = m2 - mean * mean
    return (x - mean) * jax.lax.rsqrt(var + LN_EPS) * gamma + beta


def _gelu_exact(x):
    # PyTorch nn.GELU() default: exact erf-based GELU.
    return 0.5 * x * (1.0 + jax.lax.erf(x * 0.7071067811865475))


# ------------------------------ fused kernel --------------------------------


def vit_transformer_kernel(
    x_ref,                       # (Bb, N, D)  input tokens for this batch block
    ln1g_ref, ln1b_ref,          # (1, 1, D)   attn pre-norm
    wq_ref, wk_ref, wv_ref,      # (1, D, inner)  bf16 (scale folded into wq)
    wo_ref, bo_ref,              # (1, inner, D) bf16, (1, 1, D) f32
    ln2g_ref, ln2b_ref,          # (1, 1, D)   ffn pre-norm
    w1_ref, b1_ref,              # (1, D, Hm) bf16, (1, 1, Hm) f32
    w2_ref, b2_ref,              # (1, Hm, D) bf16, (1, 1, D) f32
    lnfg_ref, lnfb_ref,          # (1, D)      final transformer norm
    o_ref,                       # (Bb, D)     final-normed cls rows
    xs_ref,                      # scratch (Bb*N, D) f32: resident residual
    qs_ref, ks_ref, vs_ref,      # scratch (Bb*N, inner) f32
    ao_ref,                      # scratch (Bb*N, inner) f32: head outputs
    *, batch_block, seq, heads, dim_head):
    l = pl.program_id(1)

    # Load the token block into the resident residual-stream scratch once.
    @pl.when(l == 0)
    def _():
        for b in range(batch_block):
            xs_ref[b * seq:(b + 1) * seq, :] = x_ref[b].astype(jnp.float32)

    x = xs_ref[...]                                           # (R, D) f32

    # ----------------------------- MSA -------------------------------------
    xn = _layernorm(x, ln1g_ref[0], ln1b_ref[0])
    xnb = xn.astype(jnp.bfloat16)
    # Fused, lane-dense q/k/v projections for the whole batch block.
    qs_ref[...] = jnp.dot(xnb, wq_ref[0], preferred_element_type=jnp.float32)
    ks_ref[...] = jnp.dot(xnb, wk_ref[0], preferred_element_type=jnp.float32)
    vs_ref[...] = jnp.dot(xnb, wv_ref[0], preferred_element_type=jnp.float32)

    # Per-(batch-elem, head) attention on small static slices of the scratch
    # buffers; results are written straight back to VMEM so per-head vreg live
    # ranges stay short.
    for b in range(batch_block):
        r0, r1 = b * seq, (b + 1) * seq
        for h in range(heads):
            c0, c1 = h * dim_head, (h + 1) * dim_head
            q = qs_ref[r0:r1, c0:c1]                          # (N, dh)
            k = ks_ref[r0:r1, c0:c1]
            v = vs_ref[r0:r1, c0:c1]
            s = jax.lax.dot_general(q, k, (((1,), (1,)), ((), ())),
                                    preferred_element_type=jnp.float32)  # (N, N)
            s = s - jnp.max(s, axis=-1, keepdims=True)
            p = jnp.exp(s)
            p = p * pl.reciprocal(jnp.sum(p, axis=-1, keepdims=True), approx=True)
            # TODO(synk): SDPA dropout_p=0.1 treated as eval-mode identity.
            ao_ref[r0:r1, c0:c1] = jnp.dot(p, v, preferred_element_type=jnp.float32)

    # Single full-width output projection over all heads at once.
    attn = jnp.dot(ao_ref[...].astype(jnp.bfloat16), wo_ref[0],
                   preferred_element_type=jnp.float32)
    x = x + attn + bo_ref[0]                                  # attn(x) + x

    # ----------------------------- FFN -------------------------------------
    xn2 = _layernorm(x, ln2g_ref[0], ln2b_ref[0])
    hdn = jnp.dot(xn2.astype(jnp.bfloat16), w1_ref[0],
                  preferred_element_type=jnp.float32) + b1_ref[0]
    hdn = _gelu_exact(hdn)
    y = jnp.dot(hdn.astype(jnp.bfloat16), w2_ref[0],
                preferred_element_type=jnp.float32) + b2_ref[0]
    x = x + y                                                 # ff(x) + x
    xs_ref[...] = x                                           # carry to next layer

    # ------------- final norm + cls pooling (last layer only) --------------
    @pl.when(l == pl.num_programs(1) - 1)
    def _():
        for b in range(batch_block):
            cls = x[b * seq:b * seq + 1, :]                   # cls token row
            o_ref[b:b + 1, :] = _layernorm(
                cls, lnfg_ref[...], lnfb_ref[...]).astype(o_ref.dtype)


# --------------------------- pallas_call wrapper -----------------------------


def transformer_encode(x, params, *, heads, dim_head, batch_block=None):
    """x: (B, N, D) tokens.  Returns (B, D) final-normed cls rows."""
    B, N, D = x.shape
    depth = params["w_qkv"].shape[0]
    inner = heads * dim_head
    Hm = params["w1"].shape[-1]

    # Pick batch_block: fold as many batch elements as possible (amortizes the
    # per-layer weight DMA ~batch_block x).  On v7x keep B // batch_block a
    # multiple of 2 at real batch sizes so both TensorCores stay busy.
    if batch_block is None:
        if B <= 8:
            batch_block = B
        elif B % 8 == 0:
            batch_block = 8
        else:
            batch_block = 1
    assert B % batch_block == 0
    R = batch_block * N

    # One-time weight re-layouts (outside the kernel):
    #  - split to_qkv into q|k|v along the output dim (matches torch chunk(3, -1))
    #  - fold the SDPA 1/sqrt(dim_head) scale into w_q
    #  - store all matmul weights in bf16 (halves weight HBM traffic / VMEM)
    wqkv = params["w_qkv"]
    scale = 1.0 / (dim_head ** 0.5)
    w_q = (wqkv[:, :, :inner] * scale).astype(jnp.bfloat16)
    w_k = wqkv[:, :, inner:2 * inner].astype(jnp.bfloat16)
    w_v = wqkv[:, :, 2 * inner:].astype(jnp.bfloat16)
    w_o = params["w_out"].astype(jnp.bfloat16)
    w1 = params["w1"].astype(jnp.bfloat16)
    w2 = params["w2"].astype(jnp.bfloat16)

    kern = functools.partial(vit_transformer_kernel, batch_block=batch_block,
                             seq=N, heads=heads, dim_head=dim_head)

    layer3 = lambda b, l: (l, 0, 0)          # per-layer stacked 3-D weights
    const2 = lambda b, l: (0, 0)             # shared final-norm weights

    return pl.pallas_call(
        kern,
        out_shape=jax.ShapeDtypeStruct((B, D), jnp.float32),
        grid=(B // batch_block, depth),
        in_specs=[
            pl.BlockSpec((batch_block, N, D), lambda b, l: (b, 0, 0)),   # x
            pl.BlockSpec((1, 1, D), layer3),                             # ln1_g
            pl.BlockSpec((1, 1, D), layer3),                             # ln1_b
            pl.BlockSpec((1, D, inner), layer3),                         # w_q
            pl.BlockSpec((1, D, inner), layer3),                         # w_k
            pl.BlockSpec((1, D, inner), layer3),                         # w_v
            pl.BlockSpec((1, inner, D), layer3),                         # w_o
            pl.BlockSpec((1, 1, D), layer3),                             # b_out
            pl.BlockSpec((1, 1, D), layer3),                             # ln2_g
            pl.BlockSpec((1, 1, D), layer3),                             # ln2_b
            pl.BlockSpec((1, D, Hm), layer3),                            # w1
            pl.BlockSpec((1, 1, Hm), layer3),                            # b1
            pl.BlockSpec((1, Hm, D), layer3),                            # w2
            pl.BlockSpec((1, 1, D), layer3),                             # b2
            pl.BlockSpec((1, D), const2),                                # lnf_g
            pl.BlockSpec((1, D), const2),                                # lnf_b
        ],
        out_specs=pl.BlockSpec((batch_block, D), lambda b, l: (b, 0)),
        scratch_shapes=[
            pltpu.VMEM((R, D), jnp.float32),        # residual stream
            pltpu.VMEM((R, inner), jnp.float32),    # q
            pltpu.VMEM((R, inner), jnp.float32),    # k
            pltpu.VMEM((R, inner), jnp.float32),    # v
            pltpu.VMEM((R, inner), jnp.float32),    # concatenated head outputs
        ],
        compiler_params=pltpu.CompilerParams(
            dimension_semantics=("parallel", "arbitrary"),
            vmem_limit_bytes=32 * 1024 * 1024),
    )(x, params["ln1_g"], params["ln1_b"], w_q, w_k, w_v, w_o, params["b_out"],
      params["ln2_g"], params["ln2_b"], w1, params["b1"], w2, params["b2"],
      params["lnf_g"], params["lnf_b"])


# ------------------------------ parameters ----------------------------------


def init_params(key, *, dim, depth, heads, dim_head, mlp_dim, num_classes,
                num_patches, patch_dim):
    inner = heads * dim_head
    ks = jax.random.split(key, 8)

    def nrm(k, shape, scale=0.02):
        return (scale * jax.random.normal(k, shape)).astype(jnp.float32)

    return {
        "pos_embedding": jax.random.normal(ks[0], (1, num_patches + 1, dim)).astype(jnp.float32),
        "cls_token": jax.random.normal(ks[1], (1, 1, dim)).astype(jnp.float32),
        # stand-in projection for the (undefined) feature extractor
        "w_feat": nrm(ks[2], (patch_dim, dim)),
        # per-layer weights stacked on a leading `depth` axis (streamed by grid)
        "ln1_g": jnp.ones((depth, 1, dim), jnp.float32),
        "ln1_b": jnp.zeros((depth, 1, dim), jnp.float32),
        "w_qkv": nrm(ks[3], (depth, dim, 3 * inner)),          # to_qkv (bias=False)
        "w_out": nrm(ks[4], (depth, inner, dim)),
        "b_out": jnp.zeros((depth, 1, dim), jnp.float32),
        "ln2_g": jnp.ones((depth, 1, dim), jnp.float32),
        "ln2_b": jnp.zeros((depth, 1, dim), jnp.float32),
        "w1": nrm(ks[5], (depth, dim, mlp_dim)),
        "b1": jnp.zeros((depth, 1, mlp_dim), jnp.float32),
        "w2": nrm(ks[6], (depth, mlp_dim, dim)),
        "b2": jnp.zeros((depth, 1, dim), jnp.float32),
        # final transformer norm + classification head
        "lnf_g": jnp.ones((1, dim), jnp.float32),
        "lnf_b": jnp.zeros((1, dim), jnp.float32),
        "w_head": nrm(ks[7], (dim, num_classes)),
        "b_head": jnp.zeros((1, num_classes), jnp.float32),
    }


# ------------------------------ forward glue ---------------------------------


def extract_patch_tokens(img, w_feat, patch):
    # TODO(synk): SpixelNet superpixel tokenizer + AttentionSpatialTransformer
    # feature extractor are external, undefined modules; replaced with a
    # deterministic patch-grid tokenizer and a fixed linear projection.
    B, C, H, W = img.shape
    ph = pw = patch
    n_h, n_w = H // ph, W // pw
    p = img.reshape(B, C, n_h, ph, n_w, pw)
    p = p.transpose(0, 2, 4, 1, 3, 5).reshape(B, n_h * n_w, C * ph * pw)
    return p @ w_feat                                          # (B, n, dim)


def vit_forward(img, params, *, patch, heads, dim_head):
    B = img.shape[0]
    dim = params["cls_token"].shape[-1]
    tokens = extract_patch_tokens(img, params["w_feat"], patch)  # (B, n, dim)
    n = tokens.shape[1]

    cls = jnp.broadcast_to(params["cls_token"], (B, 1, dim))
    x = jnp.concatenate([cls, tokens], axis=1)                   # (B, n+1, dim)
    x = x + params["pos_embedding"][:, : n + 1]
    # emb dropout: identity at eval time

    cls_norm = transformer_encode(x, params, heads=heads, dim_head=dim_head)
    # Classification head stays a plain XLA matmul (keeps w_head out of VMEM
    # residency inside the kernel).
    return cls_norm @ params["w_head"] + params["b_head"]


# --------------------------------- main --------------------------------------

if __name__ == "__main__":
    B, C, H, W = 2, 3, 16, 16
    patch = 8
    num_patches = (H // patch) * (W // patch)        # 4  -> seq len N = 5
    dim, depth, heads, dim_head = 32, 2, 4, 8
    mlp_dim = 4 * dim                                # 128
    num_classes = 10
    patch_dim = C * patch * patch                    # 192

    key = jax.random.PRNGKey(0)
    k_img, k_params = jax.random.split(key)
    img = jax.random.normal(k_img, (B, C, H, W), jnp.float32)
    params = init_params(k_params, dim=dim, depth=depth, heads=heads,
                         dim_head=dim_head, mlp_dim=mlp_dim,
                         num_classes=num_classes, num_patches=num_patches,
                         patch_dim=patch_dim)

    fwd = jax.jit(functools.partial(vit_forward, patch=patch, heads=heads,
                                    dim_head=dim_head))
    logits = jax.block_until_ready(fwd(img, params))
    assert logits.shape == (B, num_classes)
    assert bool(jnp.all(jnp.isfinite(logits)))
    print("KERNEL_OK")
</pallas_src>

<mosaic_0001>
module attributes {stable_mosaic.version = 11 : i64} {
  func.func @vit_transformer_kernel(%arg0: i32, %arg1: i32, %arg2: memref<2x5x32xf32, #tpu.memory_space<vmem>>, %arg3: memref<1x1x32xf32, #tpu.memory_space<vmem>>, %arg4: memref<1x1x32xf32, #tpu.memory_space<vmem>>, %arg5: memref<1x32x32xbf16, #tpu.memory_space<vmem>>, %arg6: memref<1x32x32xbf16, #tpu.memory_space<vmem>>, %arg7: memref<1x32x32xbf16, #tpu.memory_space<vmem>>, %arg8: memref<1x32x32xbf16, #tpu.memory_space<vmem>>, %arg9: memref<1x1x32xf32, #tpu.memory_space<vmem>>, %arg10: memref<1x1x32xf32, #tpu.memory_space<vmem>>, %arg11: memref<1x1x32xf32, #tpu.memory_space<vmem>>, %arg12: memref<1x32x128xbf16, #tpu.memory_space<vmem>>, %arg13: memref<1x1x128xf32, #tpu.memory_space<vmem>>, %arg14: memref<1x128x32xbf16, #tpu.memory_space<vmem>>, %arg15: memref<1x1x32xf32, #tpu.memory_space<vmem>>, %arg16: memref<1x32xf32, #tpu.memory_space<vmem>>, %arg17: memref<1x32xf32, #tpu.memory_space<vmem>>, %arg18: memref<2x32xf32, #tpu.memory_space<vmem>>, %arg19: memref<10x32xf32, #tpu.memory_space<vmem>>, %arg20: memref<10x32xf32, #tpu.memory_space<vmem>>, %arg21: memref<10x32xf32, #tpu.memory_space<vmem>>, %arg22: memref<10x32xf32, #tpu.memory_space<vmem>>, %arg23: memref<10x32xf32, #tpu.memory_space<vmem>>) attributes {dimension_semantics = [#tpu.dimension_semantics<parallel>, #tpu.dimension_semantics<arbitrary>], iteration_bounds = array<i64: 1, 2>, scalar_prefetch = 0 : i64, scratch_operands = 5 : i64, tpu.core_type = #tpu.core_type<tc>, window_params = [{transform_indices = @transform_0, window_bounds = array<i64: 2, 5, 32>}, {transform_indices = @transform_1, window_bounds = array<i64: 1, 1, 32>}, {transform_indices = @transform_2, window_bounds = array<i64: 1, 1, 32>}, {transform_indices = @transform_3, window_bounds = array<i64: 1, 32, 32>}, {transform_indices = @transform_4, window_bounds = array<i64: 1, 32, 32>}, {transform_indices = @transform_5, window_bounds = array<i64: 1, 32, 32>}, {transform_indices = @transform_6, window_bounds = array<i64: 1, 32, 32>}, {transform_indices = @transform_7, window_bounds = array<i64: 1, 1, 32>}, {transform_indices = @transform_8, window_bounds = array<i64: 1, 1, 32>}, {transform_indices = @transform_9, window_bounds = array<i64: 1, 1, 32>}, {transform_indices = @transform_10, window_bounds = array<i64: 1, 32, 128>}, {transform_indices = @transform_11, window_bounds = array<i64: 1, 1, 128>}, {transform_indices = @transform_12, window_bounds = array<i64: 1, 128, 32>}, {transform_indices = @transform_13, window_bounds = array<i64: 1, 1, 32>}, {pipeline_mode = #tpu.pipeline_mode<synchronous>, transform_indices = @transform_14, window_bounds = array<i64: 1, 32>}, {pipeline_mode = #tpu.pipeline_mode<synchronous>, transform_indices = @transform_15, window_bounds = array<i64: 1, 32>}, {transform_indices = @transform_16, window_bounds = array<i64: 2, 32>}]} {
    %c0_i32 = arith.constant 0 : i32
    %0 = arith.cmpi eq, %arg1, %c0_i32 : i32
    %1 = arith.extui %0 : i1 to i32
    %c0_i32_0 = arith.constant 0 : i32
    %2 = arith.cmpi ne, %1, %c0_i32_0 : i32
    scf.if %2 {
      %c0_162 = arith.constant 0 : index
      %c0_163 = arith.constant 0 : index
      %c0_164 = arith.constant 0 : index
      %236 = vector.load %arg2[%c0_162, %c0_163, %c0_164] : memref<2x5x32xf32, #tpu.memory_space<vmem>>, vector<1x5x32xf32>
      %237 = vector.shape_cast %236 : vector<1x5x32xf32> to vector<5x32xf32>
      %c0_165 = arith.constant 0 : index
      %c0_166 = arith.constant 0 : index
      %238 = vector.load %arg19[%c0_165, %c0_166] : memref<10x32xf32, #tpu.memory_space<vmem>>, vector<5x32xf32>
      tpu.vector_store %arg19[%c0_165, %c0_166], %237 {strides = array<i32>} : memref<10x32xf32, #tpu.memory_space<vmem>>, vector<5x32xf32>,
      %c1 = arith.constant 1 : index
      %c0_167 = arith.constant 0 : index
      %c0_168 = arith.constant 0 : index
      %239 = vector.load %arg2[%c1, %c0_167, %c0_168] : memref<2x5x32xf32, #tpu.memory_space<vmem>>, vector<1x5x32xf32>
      %240 = vector.shape_cast %239 : vector<1x5x32xf32> to vector<5x32xf32>
      %c5_169 = arith.constant 5 : index
      %c0_170 = arith.constant 0 : index
      %241 = vector.load %arg19[%c5_169, %c0_170] : memref<10x32xf32, #tpu.memory_space<vmem>>, vector<5x32xf32>
      tpu.vector_store %arg19[%c5_169, %c0_170], %240 {strides = array<i32>} : memref<10x32xf32, #tpu.memory_space<vmem>>, vector<5x32xf32>,
    } else {
    }
    %c0 = arith.constant 0 : index
    %c0_1 = arith.constant 0 : index
    %3 = vector.load %arg19[%c0, %c0_1] : memref<10x32xf32, #tpu.memory_space<vmem>>, vector<10x32xf32>
    %c0_2 = arith.constant 0 : index
    %c0_3 = arith.constant 0 : index
    %c0_4 = arith.constant 0 : index
    %4 = vector.load %arg3[%c0_2, %c0_3, %c0_4] : memref<1x1x32xf32, #tpu.memory_space<vmem>>, vector<1x1x32xf32>
    %5 = vector.shape_cast %4 : vector<1x1x32xf32> to vector<1x32xf32>
    %c0_5 = arith.constant 0 : index
    %c0_6 = arith.constant 0 : index
    %c0_7 = arith.constant 0 : index
    %6 = vector.load %arg4[%c0_5, %c0_6, %c0_7] : memref<1x1x32xf32, #tpu.memory_space<vmem>>, vector<1x1x32xf32>
    %7 = vector.shape_cast %6 : vector<1x1x32xf32> to vector<1x32xf32>
    %cst = arith.constant dense<0.000000e+00> : vector<10xf32>
    %8 = vector.multi_reduction <add>, %3, %cst [1] : vector<10x32xf32> to vector<10xf32>
    %9 = vector.shape_cast %8 : vector<10xf32> to vector<10x1xf32>
    %cst_8 = arith.constant 3.200000e+01 : f32
    %10 = vector.broadcast %cst_8 : f32 to vector<10x1xf32>
    %11 = arith.divf %9, %10 : vector<10x1xf32>
    %12 = arith.mulf %3, %3 : vector<10x32xf32>
    %cst_9 = arith.constant dense<0.000000e+00> : vector<10xf32>
    %13 = vector.multi_reduction <add>, %12, %cst_9 [1] : vector<10x32xf32> to vector<10xf32>
    %14 = vector.shape_cast %13 : vector<10xf32> to vector<10x1xf32>
    %cst_10 = arith.constant 3.200000e+01 : f32
    %15 = vector.broadcast %cst_10 : f32 to vector<10x1xf32>
    %16 = arith.divf %14, %15 : vector<10x1xf32>
    %17 = arith.mulf %11, %11 : vector<10x1xf32>
    %18 = arith.subf %16, %17 : vector<10x1xf32>
    %19 = vector.broadcast %11 : vector<10x1xf32> to vector<10x32xf32>
    %20 = arith.subf %3, %19 : vector<10x32xf32>
    %cst_11 = arith.constant 9.99999974E-6 : f32
    %21 = vector.broadcast %cst_11 : f32 to vector<10x1xf32>
    %22 = arith.addf %18, %21 : vector<10x1xf32>
    %23 = math.rsqrt %22 : vector<10x1xf32>
    %24 = vector.broadcast %23 : vector<10x1xf32> to vector<10x32xf32>
    %25 = arith.mulf %20, %24 : vector<10x32xf32>
    %26 = vector.broadcast %5 : vector<1x32xf32> to vector<10x32xf32>
    %27 = arith.mulf %25, %26 : vector<10x32xf32>
    %28 = vector.broadcast %7 : vector<1x32xf32> to vector<10x32xf32>
    %29 = arith.addf %27, %28 : vector<10x32xf32>
    %30 = arith.truncf %29 : vector<10x32xf32> to vector<10x32xbf16>
    %c0_12 = arith.constant 0 : index
    %c0_13 = arith.constant 0 : index
    %c0_14 = arith.constant 0 : index
    %31 = vector.load %arg5[%c0_12, %c0_13, %c0_14] : memref<1x32x32xbf16, #tpu.memory_space<vmem>>, vector<1x32x32xbf16>
    %32 = vector.shape_cast %31 : vector<1x32x32xbf16> to vector<32x32xbf16>
    %cst_15 = arith.constant dense<0.000000e+00> : vector<10x32xf32>
    %33 = tpu.matmul %30, %32, %cst_15 {dimension_numbers = #tpu.dot_dimension_numbers<[1], [0], [0], [1], [0, 0, 1, 1], [], []>} : vector<10x32xbf16>, vector<32x32xbf16>, vector<10x32xf32> -> vector<10x32xf32>
    %c0_16 = arith.constant 0 : index
    %c0_17 = arith.constant 0 : index
    %34 = vector.load %arg20[%c0_16, %c0_17] : memref<10x32xf32, #tpu.memory_space<vmem>>, vector<10x32xf32>
    tpu.vector_store %arg20[%c0_16, %c0_17], %33 {strides = array<i32>} : memref<10x32xf32, #tpu.memory_space<vmem>>, vector<10x32xf32>,
    %c0_18 = arith.constant 0 : index
    %c0_19 = arith.constant 0 : index
    %c0_20 = arith.constant 0 : index
    %35 = vector.load %arg6[%c0_18, %c0_19, %c0_20] : memref<1x32x32xbf16, #tpu.memory_space<vmem>>, vector<1x32x32xbf16>
    %36 = vector.shape_cast %35 : vector<1x32x32xbf16> to vector<32x32xbf16>
    %cst_21 = arith.constant dense<0.000000e+00> : vector<10x32xf32>
    %37 = tpu.matmul %30, %36, %cst_21 {dimension_numbers = #tpu.dot_dimension_numbers<[1], [0], [0], [1], [0, 0, 1, 1], [], []>} : vector<10x32xbf16>, vector<32x32xbf16>, vector<10x32xf32> -> vector<10x32xf32>
    %c0_22 = arith.constant 0 : index
    %c0_23 = arith.constant 0 : index
    %38 = vector.load %arg21[%c0_22, %c0_23] : memref<10x32xf32, #tpu.memory_space<vmem>>, vector<10x32xf32>
    tpu.vector_store %arg21[%c0_22, %c0_23], %37 {strides = array<i32>} : memref<10x32xf32, #tpu.memory_space<vmem>>, vector<10x32xf32>,
    %c0_24 = arith.constant 0 : index
    %c0_25 = arith.constant 0 : index
    %c0_26 = arith.constant 0 : index
    %39 = vector.load %arg7[%c0_24, %c0_25, %c0_26] : memref<1x32x32xbf16, #tpu.memory_space<vmem>>, vector<1x32x32xbf16>
    %40 = vector.shape_cast %39 : vector<1x32x32xbf16> to vector<32x32xbf16>
    %cst_27 = arith.constant dense<0.000000e+00> : vector<10x32xf32>
    %41 = tpu.matmul %30, %40, %cst_27 {dimension_numbers = #tpu.dot_dimension_numbers<[1], [0], [0], [1], [0, 0, 1, 1], [], []>} : vector<10x32xbf16>, vector<32x32xbf16>, vector<10x32xf32> -> vector<10x32xf32>
    %c0_28 = arith.constant 0 : index
    %c0_29 = arith.constant 0 : index
    %42 = vector.load %arg22[%c0_28, %c0_29] : memref<10x32xf32, #tpu.memory_space<vmem>>, vector<10x32xf32>
    tpu.vector_store %arg22[%c0_28, %c0_29], %41 {strides = array<i32>} : memref<10x32xf32, #tpu.memory_space<vmem>>, vector<10x32xf32>,
    %c0_30 = arith.constant 0 : index
    %c0_31 = arith.constant 0 : index
    %43 = vector.load %arg20[%c0_30, %c0_31] : memref<10x32xf32, #tpu.memory_space<vmem>>, vector<5x8xf32>
    %c0_32 = arith.constant 0 : index
    %c0_33 = arith.constant 0 : index
    %44 = vector.load %arg21[%c0_32, %c0_33] : memref<10x32xf32, #tpu.memory_space<vmem>>, vector<5x8xf32>
    %c0_34 = arith.constant 0 : index
    %c0_35 = arith.constant 0 : index
    %45 = vector.load %arg22[%c0_34, %c0_35] : memref<10x32xf32, #tpu.memory_space<vmem>>, vector<5x8xf32>
    %cst_36 = arith.constant dense<0.000000e+00> : vector<5x5xf32>
    %46 = tpu.matmul %43, %44, %cst_36 {dimension_numbers = #tpu.dot_dimension_numbers<[1], [1], [0], [0], [0, 0, 1, 0], [], []>} : vector<5x8xf32>, vector<5x8xf32>, vector<5x5xf32> -> vector<5x5xf32>
    %cst_37 = arith.constant dense<0xFF800000> : vector<5xf32>
    %47 = vector.multi_reduction <maximumf>, %46, %cst_37 [1] : vector<5x5xf32> to vector<5xf32>
    %48 = vector.shape_cast %47 : vector<5xf32> to vector<5x1xf32>
    %49 = vector.broadcast %48 : vector<5x1xf32> to vector<5x5xf32>
    %50 = arith.subf %46, %49 : vector<5x5xf32>
    %51 = math.exp %50 : vector<5x5xf32>
    %cst_38 = arith.constant dense<0.000000e+00> : vector<5xf32>
    %52 = vector.multi_reduction <add>, %51, %cst_38 [1] : vector<5x5xf32> to vector<5xf32>
    %53 = vector.shape_cast %52 : vector<5xf32> to vector<5x1xf32>
    %54 = tpu.reciprocal %53 {approx = true} : vector<5x1xf32> -> vector<5x1xf32>
    %55 = vector.broadcast %54 : vector<5x1xf32> to vector<5x5xf32>
    %56 = arith.mulf %51, %55 : vector<5x5xf32>
    %cst_39 = arith.constant dense<0.000000e+00> : vector<5x8xf32>
    %57 = tpu.matmul %56, %45, %cst_39 {dimension_numbers = #tpu.dot_dimension_numbers<[1], [0], [0], [1], [0, 0, 1, 1], [], []>} : vector<5x5xf32>, vector<5x8xf32>, vector<5x8xf32> -> vector<5x8xf32>
    %c0_40 = arith.constant 0 : index
    %c0_41 = arith.constant 0 : index
    %58 = vector.load %arg23[%c0_40, %c0_41] : memref<10x32xf32, #tpu.memory_space<vmem>>, vector<5x8xf32>
    tpu.vector_store %arg23[%c0_40, %c0_41], %57 {strides = array<i32>} : memref<10x32xf32, #tpu.memory_space<vmem>>, vector<5x8xf32>,
    %c0_42 = arith.constant 0 : index
    %c8 = arith.constant 8 : index
    %59 = vector.load %arg20[%c0_42, %c8] : memref<10x32xf32, #tpu.memory_space<vmem>>, vector<5x8xf32>
    %c0_43 = arith.constant 0 : index
    %c8_44 = arith.constant 8 : index
    %60 = vector.load %arg21[%c0_43, %c8_44] : memref<10x32xf32, #tpu.memory_space<vmem>>, vector<5x8xf32>
    %c0_45 = arith.constant 0 : index
    %c8_46 = arith.constant 8 : index
    %61 = vector.load %arg22[%c0_45, %c8_46] : memref<10x32xf32, #tpu.memory_space<vmem>>, vector<5x8xf32>
    %cst_47 = arith.constant dense<0.000000e+00> : vector<5x5xf32>
    %62 = tpu.matmul %59, %60, %cst_47 {dimension_numbers = #tpu.dot_dimension_numbers<[1], [1], [0], [0], [0, 0, 1, 0], [], []>} : vector<5x8xf32>, vector<5x8xf32>, vector<5x5xf32> -> vector<5x5xf32>
    %cst_48 = arith.constant dense<0xFF800000> : vector<5xf32>
    %63 = vector.multi_reduction <maximumf>, %62, %cst_48 [1] : vector<5x5xf32> to vector<5xf32>
    %64 = vector.shape_cast %63 : vector<5xf32> to vector<5x1xf32>
    %65 = vector.broadcast %64 : vector<5x1xf32> to vector<5x5xf32>
    %66 = arith.subf %62, %65 : vector<5x5xf32>
    %67 = math.exp %66 : vector<5x5xf32>
    %cst_49 = arith.constant dense<0.000000e+00> : vector<5xf32>
    %68 = vector.multi_reduction <add>, %67, %cst_49 [1] : vector<5x5xf32> to vector<5xf32>
    %69 = vector.shape_cast %68 : vector<5xf32> to vector<5x1xf32>
    %70 = tpu.reciprocal %69 {approx = true} : vector<5x1xf32> -> vector<5x1xf32>
    %71 = vector.broadcast %70 : vector<5x1xf32> to vector<5x5xf32>
    %72 = arith.mulf %67, %71 : vector<5x5xf32>
    %cst_50 = arith.constant dense<0.000000e+00> : vector<5x8xf32>
    %73 = tpu.matmul %72, %61, %cst_50 {dimension_numbers = #tpu.dot_dimension_numbers<[1], [0], [0], [1], [0, 0, 1, 1], [], []>} : vector<5x5xf32>, vector<5x8xf32>, vector<5x8xf32> -> vector<5x8xf32>
    %c0_51 = arith.constant 0 : index
    %c8_52 = arith.constant 8 : index
    %74 = vector.load %arg23[%c0_51, %c8_52] : memref<10x32xf32, #tpu.memory_space<vmem>>, vector<5x8xf32>
    tpu.vector_store %arg23[%c0_51, %c8_52], %73 {strides = array<i32>} : memref<10x32xf32, #tpu.memory_space<vmem>>, vector<5x8xf32>,
    %c0_53 = arith.constant 0 : index
    %c16 = arith.constant 16 : index
    %75 = vector.load %arg20[%c0_53, %c16] : memref<10x32xf32, #tpu.memory_space<vmem>>, vector<5x8xf32>
    %c0_54 = arith.constant 0 : index
    %c16_55 = arith.constant 16 : index
    %76 = vector.load %arg21[%c0_54, %c16_55] : memref<10x32xf32, #tpu.memory_space<vmem>>, vector<5x8xf32>
    %c0_56 = arith.constant 0 : index
    %c16_57 = arith.constant 16 : index
    %77 = vector.load %arg22[%c0_56, %c16_57] : memref<10x32xf32, #tpu.memory_space<vmem>>, vector<5x8xf32>
    %cst_58 = arith.constant dense<0.000000e+00> : vector<5x5xf32>
    %78 = tpu.matmul %75, %76, %cst_58 {dimension_numbers = #tpu.dot_dimension_numbers<[1], [1], [0], [0], [0, 0, 1, 0], [], []>} : vector<5x8xf32>, vector<5x8xf32>, vector<5x5xf32> -> vector<5x5xf32>
    %cst_59 = arith.constant dense<0xFF800000> : vector<5xf32>
    %79 = vector.multi_reduction <maximumf>, %78, %cst_59 [1] : vector<5x5xf32> to vector<5xf32>
    %80 = vector.shape_cast %79 : vector<5xf32> to vector<5x1xf32>
    %81 = vector.broadcast %80 : vector<5x1xf32> to vector<5x5xf32>
    %82 = arith.subf %78, %81 : vector<5x5xf32>
    %83 = math.exp %82 : vector<5x5xf32>
    %cst_60 = arith.constant dense<0.000000e+00> : vector<5xf32>
    %84 = vector.multi_reduction <add>, %83, %cst_60 [1] : vector<5x5xf32> to vector<5xf32>
    %85 = vector.shape_cast %84 : vector<5xf32> to vector<5x1xf32>
    %86 = tpu.reciprocal %85 {approx = true} : vector<5x1xf32> -> vector<5x1xf32>
    %87 = vector.broadcast %86 : vector<5x1xf32> to vector<5x5xf32>
    %88 = arith.mulf %83, %87 : vector<5x5xf32>
    %cst_61 = arith.constant dense<0.000000e+00> : vector<5x8xf32>
    %89 = tpu.matmul %88, %77, %cst_61 {dimension_numbers = #tpu.dot_dimension_numbers<[1], [0], [0], [1], [0, 0, 1, 1], [], []>} : vector<5x5xf32>, vector<5x8xf32>, vector<5x8xf32> -> vector<5x8xf32>
    %c0_62 = arith.constant 0 : index
    %c16_63 = arith.constant 16 : index
    %90 = vector.load %arg23[%c0_62, %c16_63] : memref<10x32xf32, #tpu.memory_space<vmem>>, vector<5x8xf32>
    tpu.vector_store %arg23[%c0_62, %c16_63], %89 {strides = array<i32>} : memref<10x32xf32, #tpu.memory_space<vmem>>, vector<5x8xf32>,
    %c0_64 = arith.constant 0 : index
    %c24 = arith.constant 24 : index
    %91 = vector.load %arg20[%c0_64, %c24] : memref<10x32xf32, #tpu.memory_space<vmem>>, vector<5x8xf32>
    %c0_65 = arith.constant 0 : index
    %c24_66 = arith.constant 24 : index
    %92 = vector.load %arg21[%c0_65, %c24_66] : memref<10x32xf32, #tpu.memory_space<vmem>>, vector<5x8xf32>
    %c0_67 = arith.constant 0 : index
    %c24_68 = arith.constant 24 : index
    %93 = vector.load %arg22[%c0_67, %c24_68] : memref<10x32xf32, #tpu.memory_space<vmem>>, vector<5x8xf32>
    %cst_69 = arith.constant dense<0.000000e+00> : vector<5x5xf32>
    %94 = tpu.matmul %91, %92, %cst_69 {dimension_numbers = #tpu.dot_dimension_numbers<[1], [1], [0], [0], [0, 0, 1, 0], [], []>} : vector<5x8xf32>, vector<5x8xf32>, vector<5x5xf32> -> vector<5x5xf32>
    %cst_70 = arith.constant dense<0xFF800000> : vector<5xf32>
    %95 = vector.multi_reduction <maximumf>, %94, %cst_70 [1] : vector<5x5xf32> to vector<5xf32>
    %96 = vector.shape_cast %95 : vector<5xf32> to vector<5x1xf32>
    %97 = vector.broadcast %96 : vector<5x1xf32> to vector<5x5xf32>
    %98 = arith.subf %94, %97 : vector<5x5xf32>
    %99 = math.exp %98 : vector<5x5xf32>
    %cst_71 = arith.constant dense<0.000000e+00> : vector<5xf32>
    %100 = vector.multi_reduction <add>, %99, %cst_71 [1] : vector<5x5xf32> to vector<5xf32>
    %101 = vector.shape_cast %100 : vector<5xf32> to vector<5x1xf32>
    %102 = tpu.reciprocal %101 {approx = true} : vector<5x1xf32> -> vector<5x1xf32>
    %103 = vector.broadcast %102 : vector<5x1xf32> to vector<5x5xf32>
    %104 = arith.mulf %99, %103 : vector<5x5xf32>
    %cst_72 = arith.constant dense<0.000000e+00> : vector<5x8xf32>
    %105 = tpu.matmul %104, %93, %cst_72 {dimension_numbers = #tpu.dot_dimension_numbers<[1], [0], [0], [1], [0, 0, 1, 1], [], []>} : vector<5x5xf32>, vector<5x8xf32>, vector<5x8xf32> -> vector<5x8xf32>
    %c0_73 = arith.constant 0 : index
    %c24_74 = arith.constant 24 : index
    %106 = vector.load %arg23[%c0_73, %c24_74] : memref<10x32xf32, #tpu.memory_space<vmem>>, vector<5x8xf32>
    tpu.vector_store %arg23[%c0_73, %c24_74], %105 {strides = array<i32>} : memref<10x32xf32, #tpu.memory_space<vmem>>, vector<5x8xf32>,
    %c5 = arith.constant 5 : index
    %c0_75 = arith.constant 0 : index
    %107 = vector.load %arg20[%c5, %c0_75] : memref<10x32xf32, #tpu.memory_space<vmem>>, vector<5x8xf32>
    %c5_76 = arith.constant 5 : index
    %c0_77 = arith.constant 0 : index
    %108 = vector.load %arg21[%c5_76, %c0_77] : memref<10x32xf32, #tpu.memory_space<vmem>>, vector<5x8xf32>
    %c5_78 = arith.constant 5 : index
    %c0_79 = arith.constant 0 : index
    %109 = vector.load %arg22[%c5_78, %c0_79] : memref<10x32xf32, #tpu.memory_space<vmem>>, vector<5x8xf32>
    %cst_80 = arith.constant dense<0.000000e+00> : vector<5x5xf32>
    %110 = tpu.matmul %107, %108, %cst_80 {dimension_numbers = #tpu.dot_dimension_numbers<[1], [1], [0], [0], [0, 0, 1, 0], [], []>} : vector<5x8xf32>, vector<5x8xf32>, vector<5x5xf32> -> vector<5x5xf32>
    %cst_81 = arith.constant dense<0xFF800000> : vector<5xf32>
    %111 = vector.multi_reduction <maximumf>, %110, %cst_81 [1] : vector<5x5xf32> to vector<5xf32>
    %112 = vector.shape_cast %111 : vector<5xf32> to vector<5x1xf32>
    %113 = vector.broadcast %112 : vector<5x1xf32> to vector<5x5xf32>
    %114 = arith.subf %110, %113 : vector<5x5xf32>
    %115 = math.exp %114 : vector<5x5xf32>
    %cst_82 = arith.constant dense<0.000000e+00> : vector<5xf32>
    %116 = vector.multi_reduction <add>, %115, %cst_82 [1] : vector<5x5xf32> to vector<5xf32>
    %117 = vector.shape_cast %116 : vector<5xf32> to vector<5x1xf32>
    %118 = tpu.reciprocal %117 {approx = true} : vector<5x1xf32> -> vector<5x1xf32>
    %119 = vector.broadcast %118 : vector<5x1xf32> to vector<5x5xf32>
    %120 = arith.mulf %115, %119 : vector<5x5xf32>
    %cst_83 = arith.constant dense<0.000000e+00> : vector<5x8xf32>
    %121 = tpu.matmul %120, %109, %cst_83 {dimension_numbers = #tpu.dot_dimension_numbers<[1], [0], [0], [1], [0, 0, 1, 1], [], []>} : vector<5x5xf32>, vector<5x8xf32>, vector<5x8xf32> -> vector<5x8xf32>
    %c5_84 = arith.constant 5 : index
    %c0_85 = arith.constant 0 : index
    %122 = vector.load %arg23[%c5_84, %c0_85] : memref<10x32xf32, #tpu.memory_space<vmem>>, vector<5x8xf32>
    tpu.vector_store %arg23[%c5_84, %c0_85], %121 {strides = array<i32>} : memref<10x32xf32, #tpu.memory_space<vmem>>, vector<5x8xf32>,
    %c5_86 = arith.constant 5 : index
    %c8_87 = arith.constant 8 : index
    %123 = vector.load %arg20[%c5_86, %c8_87] : memref<10x32xf32, #tpu.memory_space<vmem>>, vector<5x8xf32>
    %c5_88 = arith.constant 5 : index
    %c8_89 = arith.constant 8 : index
    %124 = vector.load %arg21[%c5_88, %c8_89] : memref<10x32xf32, #tpu.memory_space<vmem>>, vector<5x8xf32>
    %c5_90 = arith.constant 5 : index
    %c8_91 = arith.constant 8 : index
    %125 = vector.load %arg22[%c5_90, %c8_91] : memref<10x32xf32, #tpu.memory_space<vmem>>, vector<5x8xf32>
    %cst_92 = arith.constant dense<0.000000e+00> : vector<5x5xf32>
    %126 = tpu.matmul %123, %124, %cst_92 {dimension_numbers = #tpu.dot_dimension_numbers<[1], [1], [0], [0], [0, 0, 1, 0], [], []>} : vector<5x8xf32>, vector<5x8xf32>, vector<5x5xf32> -> vector<5x5xf32>
    %cst_93 = arith.constant dense<0xFF800000> : vector<5xf32>
    %127 = vector.multi_reduction <maximumf>, %126, %cst_93 [1] : vector<5x5xf32> to vector<5xf32>
    %128 = vector.shape_cast %127 : vector<5xf32> to vector<5x1xf32>
    %129 = vector.broadcast %128 : vector<5x1xf32> to vector<5x5xf32>
    %130 = arith.subf %126, %129 : vector<5x5xf32>
    %131 = math.exp %130 : vector<5x5xf32>
    %cst_94 = arith.constant dense<0.000000e+00> : vector<5xf32>
    %132 = vector.multi_reduction <add>, %131, %cst_94 [1] : vector<5x5xf32> to vector<5xf32>
    %133 = vector.shape_cast %132 : vector<5xf32> to vector<5x1xf32>
    %134 = tpu.reciprocal %133 {approx = true} : vector<5x1xf32> -> vector<5x1xf32>
    %135 = vector.broadcast %134 : vector<5x1xf32> to vector<5x5xf32>
    %136 = arith.mulf %131, %135 : vector<5x5xf32>
    %cst_95 = arith.constant dense<0.000000e+00> : vector<5x8xf32>
    %137 = tpu.matmul %136, %125, %cst_95 {dimension_numbers = #tpu.dot_dimension_numbers<[1], [0], [0], [1], [0, 0, 1, 1], [], []>} : vector<5x5xf32>, vector<5x8xf32>, vector<5x8xf32> -> vector<5x8xf32>
    %c5_96 = arith.constant 5 : index
    %c8_97 = arith.constant 8 : index
    %138 = vector.load %arg23[%c5_96, %c8_97] : memref<10x32xf32, #tpu.memory_space<vmem>>, vector<5x8xf32>
    tpu.vector_store %arg23[%c5_96, %c8_97], %137 {strides = array<i32>} : memref<10x32xf32, #tpu.memory_space<vmem>>, vector<5x8xf32>,
    %c5_98 = arith.constant 5 : index
    %c16_99 = arith.constant 16 : index
    %139 = vector.load %arg20[%c5_98, %c16_99] : memref<10x32xf32, #tpu.memory_space<vmem>>, vector<5x8xf32>
    %c5_100 = arith.constant 5 : index
    %c16_101 = arith.constant 16 : index
    %140 = vector.load %arg21[%c5_100, %c16_101] : memref<10x32xf32, #tpu.memory_space<vmem>>, vector<5x8xf32>
    %c5_102 = arith.constant 5 : index
    %c16_103 = arith.constant 16 : index
    %141 = vector.load %arg22[%c5_102, %c16_103] : memref<10x32xf32, #tpu.memory_space<vmem>>, vector<5x8xf32>
    %cst_104 = arith.constant dense<0.000000e+00> : vector<5x5xf32>
    %142 = tpu.matmul %139, %140, %cst_104 {dimension_numbers = #tpu.dot_dimension_numbers<[1], [1], [0], [0], [0, 0, 1, 0], [], []>} : vector<5x8xf32>, vector<5x8xf32>, vector<5x5xf32> -> vector<5x5xf32>
    %cst_105 = arith.constant dense<0xFF800000> : vector<5xf32>
    %143 = vector.multi_reduction <maximumf>, %142, %cst_105 [1] : vector<5x5xf32> to vector<5xf32>
    %144 = vector.shape_cast %143 : vector<5xf32> to vector<5x1xf32>
    %145 = vector.broadcast %144 : vector<5x1xf32> to vector<5x5xf32>
    %146 = arith.subf %142, %145 : vector<5x5xf32>
    %147 = math.exp %146 : vector<5x5xf32>
    %cst_106 = arith.constant dense<0.000000e+00> : vector<5xf32>
    %148 = vector.multi_reduction <add>, %147, %cst_106 [1] : vector<5x5xf32> to vector<5xf32>
    %149 = vector.shape_cast %148 : vector<5xf32> to vector<5x1xf32>
    %150 = tpu.reciprocal %149 {approx = true} : vector<5x1xf32> -> vector<5x1xf32>
    %151 = vector.broadcast %150 : vector<5x1xf32> to vector<5x5xf32>
    %152 = arith.mulf %147, %151 : vector<5x5xf32>
    %cst_107 = arith.constant dense<0.000000e+00> : vector<5x8xf32>
    %153 = tpu.matmul %152, %141, %cst_107 {dimension_numbers = #tpu.dot_dimension_numbers<[1], [0], [0], [1], [0, 0, 1, 1], [], []>} : vector<5x5xf32>, vector<5x8xf32>, vector<5x8xf32> -> vector<5x8xf32>
    %c5_108 = arith.constant 5 : index
    %c16_109 = arith.constant 16 : index
    %154 = vector.load %arg23[%c5_108, %c16_109] : memref<10x32xf32, #tpu.memory_space<vmem>>, vector<5x8xf32>
    tpu.vector_store %arg23[%c5_108, %c16_109], %153 {strides = array<i32>} : memref<10x32xf32, #tpu.memory_space<vmem>>, vector<5x8xf32>,
    %c5_110 = arith.constant 5 : index
    %c24_111 = arith.constant 24 : index
    %155 = vector.load %arg20[%c5_110, %c24_111] : memref<10x32xf32, #tpu.memory_space<vmem>>, vector<5x8xf32>
    %c5_112 = arith.constant 5 : index
    %c24_113 = arith.constant 24 : index
    %156 = vector.load %arg21[%c5_112, %c24_113] : memref<10x32xf32, #tpu.memory_space<vmem>>, vector<5x8xf32>
    %c5_114 = arith.constant 5 : index
    %c24_115 = arith.constant 24 : index
    %157 = vector.load %arg22[%c5_114, %c24_115] : memref<10x32xf32, #tpu.memory_space<vmem>>, vector<5x8xf32>
    %cst_116 = arith.constant dense<0.000000e+00> : vector<5x5xf32>
    %158 = tpu.matmul %155, %156, %cst_116 {dimension_numbers = #tpu.dot_dimension_numbers<[1], [1], [0], [0], [0, 0, 1, 0], [], []>} : vector<5x8xf32>, vector<5x8xf32>, vector<5x5xf32> -> vector<5x5xf32>
    %cst_117 = arith.constant dense<0xFF800000> : vector<5xf32>
    %159 = vector.multi_reduction <maximumf>, %158, %cst_117 [1] : vector<5x5xf32> to vector<5xf32>
    %160 = vector.shape_cast %159 : vector<5xf32> to vector<5x1xf32>
    %161 = vector.broadcast %160 : vector<5x1xf32> to vector<5x5xf32>
    %162 = arith.subf %158, %161 : vector<5x5xf32>
    %163 = math.exp %162 : vector<5x5xf32>
    %cst_118 = arith.constant dense<0.000000e+00> : vector<5xf32>
    %164 = vector.multi_reduction <add>, %163, %cst_118 [1] : vector<5x5xf32> to vector<5xf32>
    %165 = vector.shape_cast %164 : vector<5xf32> to vector<5x1xf32>
    %166 = tpu.reciprocal %165 {approx = true} : vector<5x1xf32> -> vector<5x1xf32>
    %167 = vector.broadcast %166 : vector<5x1xf32> to vector<5x5xf32>
    %168 = arith.mulf %163, %167 : vector<5x5xf32>
    %cst_119 = arith.constant dense<0.000000e+00> : vector<5x8xf32>
    %169 = tpu.matmul %168, %157, %cst_119 {dimension_numbers = #tpu.dot_dimension_numbers<[1], [0], [0], [1], [0, 0, 1, 1], [], []>} : vector<5x5xf32>, vector<5x8xf32>, vector<5x8xf32> -> vector<5x8xf32>
    %c5_120 = arith.constant 5 : index
    %c24_121 = arith.constant 24 : index
    %170 = vector.load %arg23[%c5_120, %c24_121] : memref<10x32xf32, #tpu.memory_space<vmem>>, vector<5x8xf32>
    tpu.vector_store %arg23[%c5_120, %c24_121], %169 {strides = array<i32>} : memref<10x32xf32, #tpu.memory_space<vmem>>, vector<5x8xf32>,
    %c0_122 = arith.constant 0 : index
    %c0_123 = arith.constant 0 : index
    %171 = vector.load %arg23[%c0_122, %c0_123] : memref<10x32xf32, #tpu.memory_space<vmem>>, vector<10x32xf32>
    %172 = arith.truncf %171 : vector<10x32xf32> to vector<10x32xbf16>
    %c0_124 = arith.constant 0 : index
    %c0_125 = arith.constant 0 : index
    %c0_126 = arith.constant 0 : index
    %173 = vector.load %arg8[%c0_124, %c0_125, %c0_126] : memref<1x32x32xbf16, #tpu.memory_space<vmem>>, vector<1x32x32xbf16>
    %174 = vector.shape_cast %173 : vector<1x32x32xbf16> to vector<32x32xbf16>
    %cst_127 = arith.constant dense<0.000000e+00> : vector<10x32xf32>
    %175 = tpu.matmul %172, %174, %cst_127 {dimension_numbers = #tpu.dot_dimension_numbers<[1], [0], [0], [1], [0, 0, 1, 1], [], []>} : vector<10x32xbf16>, vector<32x32xbf16>, vector<10x32xf32> -> vector<10x32xf32>
    %176 = arith.addf %3, %175 : vector<10x32xf32>
    %c0_128 = arith.constant 0 : index
    %c0_129 = arith.constant 0 : index
    %c0_130 = arith.constant 0 : index
    %177 = vector.load %arg9[%c0_128, %c0_129, %c0_130] : memref<1x1x32xf32, #tpu.memory_space<vmem>>, vector<1x1x32xf32>
    %178 = vector.shape_cast %177 : vector<1x1x32xf32> to vector<1x32xf32>
    %179 = vector.broadcast %178 : vector<1x32xf32> to vector<10x32xf32>
    %180 = arith.addf %176, %179 : vector<10x32xf32>
    %c0_131 = arith.constant 0 : index
    %c0_132 = arith.constant 0 : index
    %c0_133 = arith.constant 0 : index
    %181 = vector.load %arg10[%c0_131, %c0_132, %c0_133] : memref<1x1x32xf32, #tpu.memory_space<vmem>>, vector<1x1x32xf32>
    %182 = vector.shape_cast %181 : vector<1x1x32xf32> to vector<1x32xf32>
    %c0_134 = arith.constant 0 : index
    %c0_135 = arith.constant 0 : index
    %c0_136 = arith.constant 0 : index
    %183 = vector.load %arg11[%c0_134, %c0_135, %c0_136] : memref<1x1x32xf32, #tpu.memory_space<vmem>>, vector<1x1x32xf32>
    %184 = vector.shape_cast %183 : vector<1x1x32xf32> to vector<1x32xf32>
    %cst_137 = arith.constant dense<0.000000e+00> : vector<10xf32>
    %185 = vector.multi_reduction <add>, %180, %cst_137 [1] : vector<10x32xf32> to vector<10xf32>
    %186 = vector.shape_cast %185 : vector<10xf32> to vector<10x1xf32>
    %cst_138 = arith.constant 3.200000e+01 : f32
    %187 = vector.broadcast %cst_138 : f32 to vector<10x1xf32>
    %188 = arith.divf %186, %187 : vector<10x1xf32>
    %189 = arith.mulf %180, %180 : vector<10x32xf32>
    %cst_139 = arith.constant dense<0.000000e+00> : vector<10xf32>
    %190 = vector.multi_reduction <add>, %189, %cst_139 [1] : vector<10x32xf32> to vector<10xf32>
    %191 = vector.shape_cast %190 : vector<10xf32> to vector<10x1xf32>
    %cst_140 = arith.constant 3.200000e+01 : f32
    %192 = vector.broadcast %cst_140 : f32 to vector<10x1xf32>
    %193 = arith.divf %191, %192 : vector<10x1xf32>
    %194 = arith.mulf %188, %188 : vector<10x1xf32>
    %195 = arith.subf %193, %194 : vector<10x1xf32>
    %196 = vector.broadcast %188 : vector<10x1xf32> to vector<10x32xf32>
    %197 = arith.subf %180, %196 : vector<10x32xf32>
    %cst_141 = arith.constant 9.99999974E-6 : f32
    %198 = vector.broadcast %cst_141 : f32 to vector<10x1xf32>
    %199 = arith.addf %195, %198 : vector<10x1xf32>
    %200 = math.rsqrt %199 : vector<10x1xf32>
    %201 = vector.broadcast %200 : vector<10x1xf32> to vector<10x32xf32>
    %202 = arith.mulf %197, %201 : vector<10x32xf32>
    %203 = vector.broadcast %182 : vector<1x32xf32> to vector<10x32xf32>
    %204 = arith.mulf %202, %203 : vector<10x32xf32>
    %205 = vector.broadcast %184 : vector<1x32xf32> to vector<10x32xf32>
    %206 = arith.addf %204, %205 : vector<10x32xf32>
    %207 = arith.truncf %206 : vector<10x32xf32> to vector<10x32xbf16>
    %c0_142 = arith.constant 0 : index
    %c0_143 = arith.constant 0 : index
    %c0_144 = arith.constant 0 : index
    %208 = vector.load %arg12[%c0_142, %c0_143, %c0_144] : memref<1x32x128xbf16, #tpu.memory_space<vmem>>, vector<1x32x128xbf16>
    %209 = vector.shape_cast %208 : vector<1x32x128xbf16> to vector<32x128xbf16>
    %cst_145 = arith.constant dense<0.000000e+00> : vector<10x128xf32>
    %210 = tpu.matmul %207, %209, %cst_145 {dimension_numbers = #tpu.dot_dimension_numbers<[1], [0], [0], [1], [0, 0, 1, 1], [], []>} : vector<10x32xbf16>, vector<32x128xbf16>, vector<10x128xf32> -> vector<10x128xf32>
    %c0_146 = arith.constant 0 : index
    %c0_147 = arith.constant 0 : index
    %c0_148 = arith.constant 0 : index
    %211 = vector.load %arg13[%c0_146, %c0_147, %c0_148] : memref<1x1x128xf32, #tpu.memory_space<vmem>>, vector<1x1x128xf32>
    %212 = vector.shape_cast %211 : vector<1x1x128xf32> to vector<1x128xf32>
    %213 = vector.broadcast %212 : vector<1x128xf32> to vector<10x128xf32>
    %214 = arith.addf %210, %213 : vector<10x128xf32>
    %cst_149 = arith.constant 5.000000e-01 : f32
    %215 = vector.broadcast %cst_149 : f32 to vector<10x128xf32>
    %216 = arith.mulf %215, %214 : vector<10x128xf32>
    %cst_150 = arith.constant 0.707106769 : f32
    %217 = vector.broadcast %cst_150 : f32 to vector<10x128xf32>
    %218 = arith.mulf %214, %217 : vector<10x128xf32>
    %219 = math.erf %218 : vector<10x128xf32>
    %cst_151 = arith.constant 1.000000e+00 : f32
    %220 = vector.broadcast %cst_151 : f32 to vector<10x128xf32>
    %221 = arith.addf %220, %219 : vector<10x128xf32>
    %222 = arith.mulf %216, %221 : vector<10x128xf32>
    %223 = arith.truncf %222 : vector<10x128xf32> to vector<10x128xbf16>
    %c0_152 = arith.constant 0 : index
    %c0_153 = arith.constant 0 : index
    %c0_154 = arith.constant 0 : index
    %224 = vector.load %arg14[%c0_152, %c0_153, %c0_154] : memref<1x128x32xbf16, #tpu.memory_space<vmem>>, vector<1x128x32xbf16>
    %225 = vector.shape_cast %224 : vector<1x128x32xbf16> to vector<128x32xbf16>
    %cst_155 = arith.constant dense<0.000000e+00> : vector<10x32xf32>
    %226 = tpu.matmul %223, %225, %cst_155 {dimension_numbers = #tpu.dot_dimension_numbers<[1], [0], [0], [1], [0, 0, 1, 1], [], []>} : vector<10x128xbf16>, vector<128x32xbf16>, vector<10x32xf32> -> vector<10x32xf32>
    %c0_156 = arith.constant 0 : index
    %c0_157 = arith.constant 0 : index
    %c0_158 = arith.constant 0 : index
    %227 = vector.load %arg15[%c0_156, %c0_157, %c0_158] : memref<1x1x32xf32, #tpu.memory_space<vmem>>, vector<1x1x32xf32>
    %228 = vector.shape_cast %227 : vector<1x1x32xf32> to vector<1x32xf32>
    %229 = vector.broadcast %228 : vector<1x32xf32> to vector<10x32xf32>
    %230 = arith.addf %226, %229 : vector<10x32xf32>
    %231 = arith.addf %180, %230 : vector<10x32xf32>
    %c0_159 = arith.constant 0 : index
    %c0_160 = arith.constant 0 : index
    %232 = vector.load %arg19[%c0_159, %c0_160] : memref<10x32xf32, #tpu.memory_space<vmem>>, vector<10x32xf32>
    tpu.vector_store %arg19[%c0_159, %c0_160], %231 {strides = array<i32>} : memref<10x32xf32, #tpu.memory_space<vmem>>, vector<10x32xf32>,
    %c1_i32 = arith.constant 1 : i32
    %233 = arith.cmpi eq, %arg1, %c1_i32 : i32
    %234 = arith.extui %233 : i1 to i32
    %c0_i32_161 = arith.constant 0 : i32
    %235 = arith.cmpi ne, %234, %c0_i32_161 : i32
    scf.if %235 {
      %236 = vector.extract_strided_slice %231 {offsets = [0, 0], sizes = [1, 32], strides = [1, 1]} : vector<10x32xf32> to vector<1x32xf32>
      %c0_162 = arith.constant 0 : index
      %c0_163 = arith.constant 0 : index
      %237 = vector.load %arg16[%c0_162, %c0_163] : memref<1x32xf32, #tpu.memory_space<vmem>>, vector<1x32xf32>
      %c0_164 = arith.constant 0 : index
      %c0_165 = arith.constant 0 : index
      %238 = vector.load %arg17[%c0_164, %c0_165] : memref<1x32xf32, #tpu.memory_space<vmem>>, vector<1x32xf32>
      %cst_166 = arith.constant dense<0.000000e+00> : vector<1xf32>
      %239 = vector.multi_reduction <add>, %236, %cst_166 [1] : vector<1x32xf32> to vector<1xf32>
      %240 = vector.shape_cast %239 : vector<1xf32> to vector<1x1xf32>
      %cst_167 = arith.constant 3.200000e+01 : f32
      %241 = vector.broadcast %cst_167 : f32 to vector<1x1xf32>
      %242 = arith.divf %240, %241 : vector<1x1xf32>
      %243 = arith.mulf %236, %236 : vector<1x32xf32>
      %cst_168 = arith.constant dense<0.000000e+00> : vector<1xf32>
      %244 = vector.multi_reduction <add>, %243, %cst_168 [1] : vector<1x32xf32> to vector<1xf32>
      %245 = vector.shape_cast %244 : vector<1xf32> to vector<1x1xf32>
      %cst_169 = arith.constant 3.200000e+01 : f32
      %246 = vector.broadcast %cst_169 : f32 to vector<1x1xf32>
      %247 = arith.divf %245, %246 : vector<1x1xf32>
      %248 = arith.mulf %242, %242 : vector<1x1xf32>
      %249 = arith.subf %247, %248 : vector<1x1xf32>
      %250 = vector.broadcast %242 : vector<1x1xf32> to vector<1x32xf32>
      %251 = arith.subf %236, %250 : vector<1x32xf32>
      %cst_170 = arith.constant 9.99999974E-6 : f32
      %252 = vector.broadcast %cst_170 : f32 to vector<1x1xf32>
      %253 = arith.addf %249, %252 : vector<1x1xf32>
      %254 = math.rsqrt %253 : vector<1x1xf32>
      %255 = vector.broadcast %254 : vector<1x1xf32> to vector<1x32xf32>
      %256 = arith.mulf %251, %255 : vector<1x32xf32>
      %257 = arith.mulf %256, %237 : vector<1x32xf32>
      %258 = arith.addf %257, %238 : vector<1x32xf32>
      %c0_171 = arith.constant 0 : index
      %c0_172 = arith.constant 0 : index
      %259 = vector.load %arg18[%c0_171, %c0_172] : memref<2x32xf32, #tpu.memory_space<vmem>>, vector<1x32xf32>
      tpu.vector_store %arg18[%c0_171, %c0_172], %258 {strides = array<i32>} : memref<2x32xf32, #tpu.memory_space<vmem>>, vector<1x32xf32>,
      %260 = vector.extract_strided_slice %231 {offsets = [5, 0], sizes = [1, 32], strides = [1, 1]} : vector<10x32xf32> to vector<1x32xf32>
      %c0_173 = arith.constant 0 : index
      %c0_174 = arith.constant 0 : index
      %261 = vector.load %arg16[%c0_173, %c0_174] : memref<1x32xf32, #tpu.memory_space<vmem>>, vector<1x32xf32>
      %c0_175 = arith.constant 0 : index
      %c0_176 = arith.constant 0 : index
      %262 = vector.load %arg17[%c0_175, %c0_176] : memref<1x32xf32, #tpu.memory_space<vmem>>, vector<1x32xf32>
      %cst_177 = arith.constant dense<0.000000e+00> : vector<1xf32>
      %263 = vector.multi_reduction <add>, %260, %cst_177 [1] : vector<1x32xf32> to vector<1xf32>
      %264 = vector.shape_cast %263 : vector<1xf32> to vector<1x1xf32>
      %cst_178 = arith.constant 3.200000e+01 : f32
      %265 = vector.broadcast %cst_178 : f32 to vector<1x1xf32>
      %266 = arith.divf %264, %265 : vector<1x1xf32>
      %267 = arith.mulf %260, %260 : vector<1x32xf32>
      %cst_179 = arith.constant dense<0.000000e+00> : vector<1xf32>
      %268 = vector.multi_reduction <add>, %267, %cst_179 [1] : vector<1x32xf32> to vector<1xf32>
      %269 = vector.shape_cast %268 : vector<1xf32> to vector<1x1xf32>
      %cst_180 = arith.constant 3.200000e+01 : f32
      %270 = vector.broadcast %cst_180 : f32 to vector<1x1xf32>
      %271 = arith.divf %269, %270 : vector<1x1xf32>
      %272 = arith.mulf %266, %266 : vector<1x1xf32>
      %273 = arith.subf %271, %272 : vector<1x1xf32>
      %274 = vector.broadcast %266 : vector<1x1xf32> to vector<1x32xf32>
      %275 = arith.subf %260, %274 : vector<1x32xf32>
      %cst_181 = arith.constant 9.99999974E-6 : f32
      %276 = vector.broadcast %cst_181 : f32 to vector<1x1xf32>
      %277 = arith.addf %273, %276 : vector<1x1xf32>
      %278 = math.rsqrt %277 : vector<1x1xf32>
      %279 = vector.broadcast %278 : vector<1x1xf32> to vector<1x32xf32>
      %280 = arith.mulf %275, %279 : vector<1x32xf32>
      %281 = arith.mulf %280, %261 : vector<1x32xf32>
      %282 = arith.addf %281, %262 : vector<1x32xf32>
      %c1 = arith.constant 1 : index
      %c0_182 = arith.constant 0 : index
      %283 = vector.load %arg18[%c1, %c0_182] : memref<2x32xf32, #tpu.memory_space<vmem>>, vector<1x32xf32>
      tpu.vector_store %arg18[%c1, %c0_182], %282 {strides = array<i32>} : memref<2x32xf32, #tpu.memory_space<vmem>>, vector<1x32xf32>,
    } else {
    }
    return
  }
  func.func @transform_0(%arg0: i32, %arg1: i32) -> (i32, i32, i32) {
    %c0_i32 = arith.constant 0 : i32
    %c0_i32_0 = arith.constant 0 : i32
    %c0_i32_1 = arith.constant 0 : i32
    return %arg0, %c0_i32, %c0_i32_0 : i32, i32, i32
  }
  func.func @transform_1(%arg0: i32, %arg1: i32) -> (i32, i32, i32) {
    %c0_i32 = arith.constant 0 : i32
    %c0_i32_0 = arith.constant 0 : i32
    %c0_i32_1 = arith.constant 0 : i32
    return %arg1, %c0_i32, %c0_i32_0 : i32, i32, i32
  }
  func.func @transform_2(%arg0: i32, %arg1: i32) -> (i32, i32, i32) {
    %c0_i32 = arith.constant 0 : i32
    %c0_i32_0 = arith.constant 0 : i32
    %c0_i32_1 = arith.constant 0 : i32
    return %arg1, %c0_i32, %c0_i32_0 : i32, i32, i32
  }
  func.func @transform_3(%arg0: i32, %arg1: i32) -> (i32, i32, i32) {
    %c0_i32 = arith.constant 0 : i32
    %c0_i32_0 = arith.constant 0 : i32
    %c0_i32_1 = arith.constant 0 : i32
    return %arg1, %c0_i32, %c0_i32_0 : i32, i32, i32
  }
  func.func @transform_4(%arg0: i32, %arg1: i32) -> (i32, i32, i32) {
    %c0_i32 = arith.constant 0 : i32
    %c0_i32_0 = arith.constant 0 : i32
    %c0_i32_1 = arith.constant 0 : i32
    return %arg1, %c0_i32, %c0_i32_0 : i32, i32, i32
  }
  func.func @transform_5(%arg0: i32, %arg1: i32) -> (i32, i32, i32) {
    %c0_i32 = arith.constant 0 : i32
    %c0_i32_0 = arith.constant 0 : i32
    %c0_i32_1 = arith.constant 0 : i32
    return %arg1, %c0_i32, %c0_i32_0 : i32, i32, i32
  }
  func.func @transform_6(%arg0: i32, %arg1: i32) -> (i32, i32, i32) {
    %c0_i32 = arith.constant 0 : i32
    %c0_i32_0 = arith.constant 0 : i32
    %c0_i32_1 = arith.constant 0 : i32
    return %arg1, %c0_i32, %c0_i32_0 : i32, i32, i32
  }
  func.func @transform_7(%arg0: i32, %arg1: i32) -> (i32, i32, i32) {
    %c0_i32 = arith.constant 0 : i32
    %c0_i32_0 = arith.constant 0 : i32
    %c0_i32_1 = arith.constant 0 : i32
    return %arg1, %c0_i32, %c0_i32_0 : i32, i32, i32
  }
  func.func @transform_8(%arg0: i32, %arg1: i32) -> (i32, i32, i32) {
    %c0_i32 = arith.constant 0 : i32
    %c0_i32_0 = arith.constant 0 : i32
    %c0_i32_1 = arith.constant 0 : i32
    return %arg1, %c0_i32, %c0_i32_0 : i32, i32, i32
  }
  func.func @transform_9(%arg0: i32, %arg1: i32) -> (i32, i32, i32) {
    %c0_i32 = arith.constant 0 : i32
    %c0_i32_0 = arith.constant 0 : i32
    %c0_i32_1 = arith.constant 0 : i32
    return %arg1, %c0_i32, %c0_i32_0 : i32, i32, i32
  }
  func.func @transform_10(%arg0: i32, %arg1: i32) -> (i32, i32, i32) {
    %c0_i32 = arith.constant 0 : i32
    %c0_i32_0 = arith.constant 0 : i32
    %c0_i32_1 = arith.constant 0 : i32
    return %arg1, %c0_i32, %c0_i32_0 : i32, i32, i32
  }
  func.func @transform_11(%arg0: i32, %arg1: i32) -> (i32, i32, i32) {
    %c0_i32 = arith.constant 0 : i32
    %c0_i32_0 = arith.constant 0 : i32
    %c0_i32_1 = arith.constant 0 : i32
    return %arg1, %c0_i32, %c0_i32_0 : i32, i32, i32
  }
  func.func @transform_12(%arg0: i32, %arg1: i32) -> (i32, i32, i32) {
    %c0_i32 = arith.constant 0 : i32
    %c0_i32_0 = arith.constant 0 : i32
    %c0_i32_1 = arith.constant 0 : i32
    return %arg1, %c0_i32, %c0_i32_0 : i32, i32, i32
  }
  func.func @transform_13(%arg0: i32, %arg1: i32) -> (i32, i32, i32) {
    %c0_i32 = arith.constant 0 : i32
    %c0_i32_0 = arith.constant 0 : i32
    %c0_i32_1 = arith.constant 0 : i32
    return %arg1, %c0_i32, %c0_i32_0 : i32, i32, i32
  }
  func.func @transform_14(%arg0: i32, %arg1: i32) -> (i32, i32) {
    %c0_i32 = arith.constant 0 : i32
    %c0_i32_0 = arith.constant 0 : i32
    %c0_i32_1 = arith.constant 0 : i32
    return %c0_i32, %c0_i32_0 : i32, i32
  }
  func.func @transform_15(%arg0: i32, %arg1: i32) -> (i32, i32) {
    %c0_i32 = arith.constant 0 : i32
    %c0_i32_0 = arith.constant 0 : i32
    %c0_i32_1 = arith.constant 0 : i32
    return %c0_i32, %c0_i32_0 : i32, i32
  }
  func.func @transform_16(%arg0: i32, %arg1: i32) -> (i32, i32) {
    %c0_i32 = arith.constant 0 : i32
    %c0_i32_0 = arith.constant 0 : i32
    return %arg0, %c0_i32 : i32, i32
  }
}

</mosaic_0001>

<llo_original>
// kernel: vit_forward.1
$region0: #{vit_forward.1}
  #allocation0 [shape = 'u32[]', space=smem, size = 0x4, offset = 0x4, fixed_abs, tag = 'smem constant byte address 0x4 - core index']
  #allocation1 [shape = 'u32[144,128]{1,0:T(1,128)}', space=vmem, size = 0x12000, scoped, tag = 'internal scratch']
  #allocation2 [shape = 'f32[10,32]{1,0:T(8,128)}', space=vmem, size = 0x2000, scoped, tag = 'scratch operand']
  #allocation3 [shape = 'f32[10,32]{1,0:T(8,128)}', space=vmem, size = 0x2000, scoped, tag = 'scratch operand']
  #allocation4 [shape = 'f32[10,32]{1,0:T(8,128)}', space=vmem, size = 0x2000, scoped, tag = 'scratch operand']
  #allocation5 [shape = 'f32[10,32]{1,0:T(8,128)}', space=vmem, size = 0x2000, scoped, tag = 'scratch operand']
  #allocation6 [shape = 'f32[10,32]{1,0:T(8,128)}', space=vmem, size = 0x2000, scoped, tag = 'scratch operand']
  %s0 = inlined_call_operand.vmem [shape: f32[2,5,32], index: 0, kind: input, shape index: {}]
  %s1 = inlined_call_operand.vmem [shape: f32[2,1,32], index: 1, kind: input, shape index: {}]
  %s2 = inlined_call_operand.vmem [shape: f32[2,1,32], index: 2, kind: input, shape index: {}]
  %s3 = inlined_call_operand.vmem [shape: bf16[2,32,32], index: 3, kind: input, shape index: {}]
  %s4 = inlined_call_operand.vmem [shape: bf16[2,32,32], index: 4, kind: input, shape index: {}]
  %s5 = inlined_call_operand.vmem [shape: bf16[2,32,32], index: 5, kind: input, shape index: {}]
  %s6 = inlined_call_operand.vmem [shape: bf16[2,32,32], index: 6, kind: input, shape index: {}]
  %s7 = inlined_call_operand.vmem [shape: f32[2,1,32], index: 7, kind: input, shape index: {}]
  %s8 = inlined_call_operand.vmem [shape: f32[2,1,32], index: 8, kind: input, shape index: {}]
  %s9 = inlined_call_operand.vmem [shape: f32[2,1,32], index: 9, kind: input, shape index: {}]
  %s10 = inlined_call_operand.vmem [shape: bf16[2,32,128], index: 10, kind: input, shape index: {}]
  %s11 = inlined_call_operand.vmem [shape: f32[2,1,128], index: 11, kind: input, shape index: {}]
  %s12 = inlined_call_operand.vmem [shape: bf16[2,128,32], index: 12, kind: input, shape index: {}]
  %s13 = inlined_call_operand.vmem [shape: f32[2,1,32], index: 13, kind: input, shape index: {}]
  %s14 = inlined_call_operand.vmem [shape: f32[1,32], index: 14, kind: input, shape index: {}]
  %s15 = inlined_call_operand.vmem [shape: f32[1,32], index: 15, kind: input, shape index: {}]
  %s16 = inlined_call_operand.vmem [shape: f32[2,32], index: 16, kind: output, shape index: {}]
  %s17 = sld [smem:[#allocation0]]
  $region105: #{vit_forward.1} parent=0
    _
  %s19 = ssub.s32 1, %s17
  %s20 = scalar_select 0, %s19, %s17
  loop: start=0, step=1, limit=4
  $region2: #{vit_forward.1} parent=0 // loop_pre_header
    _
  $region3: #{vit_forward.1} parent=0 // loop_header
    %s22 = sphi 0, %s26
    %p23 = scmp.ge.s32.totalorder %s22, 4
    %s29 = sphi 0, %s41
    %s30 = sphi 0, %s37
    %s31 = sphi 0, %s29
    %s32 = sphi 0, %s30
    %s33 = sphi 0, %s31
    %s34 = sphi 0, %s32
    %s44 = sphi 0, %s46
    %s47 = sphi 0, %s44
    %s48 = sphi 0, %s47
    %s64 = sphi 0, %s48
    %s70 = sphi 0, %s72
    %s73 = sphi 0, %s70
    %s74 = sphi 0, %s73
    %s90 = sphi 0, %s74
    %s96 = sphi 0, %s98
    %s99 = sphi 0, %s96
    %s100 = sphi 0, %s99
    %s116 = sphi 0, %s100
    %s122 = sphi 0, %s124
    %s125 = sphi 0, %s122
    %s126 = sphi 0, %s125
    %s142 = sphi 0, %s126
    %s148 = sphi 0, %s150
    %s151 = sphi 0, %s148
    %s152 = sphi 0, %s151
    %s168 = sphi 0, %s152
    %s174 = sphi 0, %s176
    %s177 = sphi 0, %s174
    %s178 = sphi 0, %s177
    %s194 = sphi 0, %s178
    %s200 = sphi 0, %s202
    %s203 = sphi 0, %s200
    %s204 = sphi 0, %s203
    %s220 = sphi 0, %s204
    %s226 = sphi 0, %s228
    %s229 = sphi 0, %s226
    %s230 = sphi 0, %s229
    %s246 = sphi 0, %s230
    %s252 = sphi 0, %s254
    %s255 = sphi 0, %s252
    %s256 = sphi 0, %s255
    %s272 = sphi 0, %s256
    %s278 = sphi 0, %s280
    %s281 = sphi 0, %s278
    %s282 = sphi 0, %s281
    %s298 = sphi 0, %s282
    %s304 = sphi 0, %s306
    %s307 = sphi 0, %s304
    %s308 = sphi 0, %s307
    %s324 = sphi 0, %s308
    %s330 = sphi 0, %s332
    %s333 = sphi 0, %s330
    %s334 = sphi 0, %s333
    %s350 = sphi 0, %s334
    %s356 = sphi 0, %s358
    %s359 = sphi 0, %s356
    %s360 = sphi 0, %s359
    %s376 = sphi 0, %s360
    %s382 = sphi 0, %s384
    %s385 = sphi 0, %s382
    %s386 = sphi 0, %s385
    %s402 = sphi 0, %s386
    %s406 = sphi 0, %s406
    %s408 = sphi 0, %s406
    %s409 = sphi 0, %s408
    %s423 = sphi 0, %s409
    %s427 = sphi 0, %s427
    %s429 = sphi 0, %s427
    %s430 = sphi 0, %s429
    %s444 = sphi 0, %s430
    %s450 = sphi 0, %s452
    %s453 = sphi 0, %s450
    %s454 = sphi 0, %s453
    %s470 = sphi 0, %s454
  $region4: #{vit_forward.1} parent=0 // loop_header_branch
    %25 = sbr.rel (%p23) target = $region8
  $region5: #{vit_forward.1} parent=0 // loop_body
    %s27 = ssub.s32 %s22, 1
    %s28 = ssub.s32 %s22, 2
    %s35 = sadd.s32 1, %s30
    %p36 = scmp.ge.s32.totalorder %s35, 2
    %s37 = scalar_select %p36, 0, %s35
    %s38 = sadd.s32 1, %s29
    %s39 = scalar_select %p36, %s38, %s29
    %p40 = scmp.ge.s32.totalorder %s39, 1
    %s41 = scalar_select %p40, 0, %s39
    %s42 = ssub.s32 %s29, %s41
    %p43 = scmp.eq.s32.totalorder %s42, 0
    %s45 = sadd.s32 %s44, 1
    %s46 = scalar_select %p43, %s44, %s45
    %p49 = pneg %p43
    %p50 = scmp.eq.s32.totalorder %s22, 1
    %p51 = por %p49, %p50
    %p52 = scmp.ne.s32.totalorder %s44, %s47
    %p53 = scmp.eq.s32.totalorder %s22, 0
    %p54 = por %p52, %p53
    %p55 = scmp.ne.s32.totalorder %s44, %s47
    %p56 = scmp.eq.s32.totalorder %s27, 1
    %p57 = por %p55, %p56
    %p58 = scmp.ne.s32.totalorder %s47, %s48
    %p59 = scmp.eq.s32.totalorder %s27, 0
    %p60 = por %p58, %p59
    %p61 = scmp.ne.s32.totalorder %s47, %s48
    %p62 = scmp.eq.s32.totalorder %s28, 1
    %p63 = por %p61, %p62
    %p65 = scmp.ne.s32.totalorder %s48, %s64
    %p66 = scmp.eq.s32.totalorder %s28, 0
    %p67 = por %p65, %p66
    %s68 = ssub.s32 %s30, %s37
    %p69 = scmp.eq.s32.totalorder %s68, 0
    %s71 = sadd.s32 %s70, 1
    %s72 = scalar_select %p69, %s70, %s71
    %p75 = pneg %p69
    %p76 = scmp.eq.s32.totalorder %s22, 1
    %p77 = por %p75, %p76
    %p78 = scmp.ne.s32.totalorder %s70, %s73
    %p79 = scmp.eq.s32.totalorder %s22, 0
    %p80 = por %p78, %p79
    %p81 = scmp.ne.s32.totalorder %s70, %s73
    %p82 = scmp.eq.s32.totalorder %s27, 1
    %p83 = por %p81, %p82
    %p84 = scmp.ne.s32.totalorder %s73, %s74
    %p85 = scmp.eq.s32.totalorder %s27, 0
    %p86 = por %p84, %p85
    %p87 = scmp.ne.s32.totalorder %s73, %s74
    %p88 = scmp.eq.s32.totalorder %s28, 1
    %p89 = por %p87, %p88
    %p91 = scmp.ne.s32.totalorder %s74, %s90
    %p92 = scmp.eq.s32.totalorder %s28, 0
    %p93 = por %p91, %p92
    %s94 = ssub.s32 %s30, %s37
    %p95 = scmp.eq.s32.totalorder %s94, 0
    %s97 = sadd.s32 %s96, 1
    %s98 = scalar_select %p95, %s96, %s97
    %p101 = pneg %p95
    %p102 = scmp.eq.s32.totalorder %s22, 1
    %p103 = por %p101, %p102
    %p104 = scmp.ne.s32.totalorder %s96, %s99
    %p105 = scmp.eq.s32.totalorder %s22, 0
    %p106 = por %p104, %p105
    %p107 = scmp.ne.s32.totalorder %s96, %s99
    %p108 = scmp.eq.s32.totalorder %s27, 1
    %p109 = por %p107, %p108
    %p110 = scmp.ne.s32.totalorder %s99, %s100
    %p111 = scmp.eq.s32.totalorder %s27, 0
    %p112 = por %p110, %p111
    %p113 = scmp.ne.s32.totalorder %s99, %s100
    %p114 = scmp.eq.s32.totalorder %s28, 1
    %p115 = por %p113, %p114
    %p117 = scmp.ne.s32.totalorder %s100, %s116
    %p118 = scmp.eq.s32.totalorder %s28, 0
    %p119 = por %p117, %p118
    %s120 = ssub.s32 %s30, %s37
    %p121 = scmp.eq.s32.totalorder %s120, 0
    %s123 = sadd.s32 %s122, 1
    %s124 = scalar_select %p121, %s122, %s123
    %p127 = pneg %p121
    %p128 = scmp.eq.s32.totalorder %s22, 1
    %p129 = por %p127, %p128
    %p130 = scmp.ne.s32.totalorder %s122, %s125
    %p131 = scmp.eq.s32.totalorder %s22, 0
    %p132 = por %p130, %p131
    %p133 = scmp.ne.s32.totalorder %s122, %s125
    %p134 = scmp.eq.s32.totalorder %s27, 1
    %p135 = por %p133, %p134
    %p136 = scmp.ne.s32.totalorder %s125, %s126
    %p137 = scmp.eq.s32.totalorder %s27, 0
    %p138 = por %p136, %p137
    %p139 = scmp.ne.s32.totalorder %s125, %s126
    %p140 = scmp.eq.s32.totalorder %s28, 1
    %p141 = por %p139, %p140
    %p143 = scmp.ne.s32.totalorder %s126, %s142
    %p144 = scmp.eq.s32.totalorder %s28, 0
    %p145 = por %p143, %p144
    %s146 = ssub.s32 %s30, %s37
    %p147 = scmp.eq.s32.totalorder %s146, 0
    %s149 = sadd.s32 %s148, 1
    %s150 = scalar_select %p147, %s148, %s149
    %p153 = pneg %p147
    %p154 = scmp.eq.s32.totalorder %s22, 1
    %p155 = por %p153, %p154
    %p156 = scmp.ne.s32.totalorder %s148, %s151
    %p157 = scmp.eq.s32.totalorder %s22, 0
    %p158 = por %p156, %p157
    %p159 = scmp.ne.s32.totalorder %s148, %s151
    %p160 = scmp.eq.s32.totalorder %s27, 1
    %p161 = por %p159, %p160
    %p162 = scmp.ne.s32.totalorder %s151, %s152
    %p163 = scmp.eq.s32.totalorder %s27, 0
    %p164 = por %p162, %p163
    %p165 = scmp.ne.s32.totalorder %s151, %s152
    %p166 = scmp.eq.s32.totalorder %s28, 1
    %p167 = por %p165, %p166
    %p169 = scmp.ne.s32.totalorder %s152, %s168
    %p170 = scmp.eq.s32.totalorder %s28, 0
    %p171 = por %p169, %p170
    %s172 = ssub.s32 %s30, %s37
    %p173 = scmp.eq.s32.totalorder %s172, 0
    %s175 = sadd.s32 %s174, 1
    %s176 = scalar_select %p173, %s174, %s175
    %p179 = pneg %p173
    %p180 = scmp.eq.s32.totalorder %s22, 1
    %p181 = por %p179, %p180
    %p182 = scmp.ne.s32.totalorder %s174, %s177
    %p183 = scmp.eq.s32.totalorder %s22, 0
    %p184 = por %p182, %p183
    %p185 = scmp.ne.s32.totalorder %s174, %s177
    %p186 = scmp.eq.s32.totalorder %s27, 1
    %p187 = por %p185, %p186
    %p188 = scmp.ne.s32.totalorder %s177, %s178
    %p189 = scmp.eq.s32.totalorder %s27, 0
    %p190 = por %p188, %p189
    %p191 = scmp.ne.s32.totalorder %s177, %s178
    %p192 = scmp.eq.s32.totalorder %s28, 1
    %p193 = por %p191, %p192
    %p195 = scmp.ne.s32.totalorder %s178, %s194
    %p196 = scmp.eq.s32.totalorder %s28, 0
    %p197 = por %p195, %p196
    %s198 = ssub.s32 %s30, %s37
    %p199 = scmp.eq.s32.totalorder %s198, 0
    %s201 = sadd.s32 %s200, 1
    %s202 = scalar_select %p199, %s200, %s201
    %p205 = pneg %p199
    %p206 = scmp.eq.s32.totalorder %s22, 1
    %p207 = por %p205, %p206
    %p208 = scmp.ne.s32.totalorder %s200, %s203
    %p209 = scmp.eq.s32.totalorder %s22, 0
    %p210 = por %p208, %p209
    %p211 = scmp.ne.s32.totalorder %s200, %s203
    %p212 = scmp.eq.s32.totalorder %s27, 1
    %p213 = por %p211, %p212
    %p214 = scmp.ne.s32.totalorder %s203, %s204
    %p215 = scmp.eq.s32.totalorder %s27, 0
    %p216 = por %p214, %p215
    %p217 = scmp.ne.s32.totalorder %s203, %s204
    %p218 = scmp.eq.s32.totalorder %s28, 1
    %p219 = por %p217, %p218
    %p221 = scmp.ne.s32.totalorder %s204, %s220
    %p222 = scmp.eq.s32.totalorder %s28, 0
    %p223 = por %p221, %p222
    %s224 = ssub.s32 %s30, %s37
    %p225 = scmp.eq.s32.totalorder %s224, 0
    %s227 = sadd.s32 %s226, 1
    %s228 = scalar_select %p225, %s226, %s227
    %p231 = pneg %p225
    %p232 = scmp.eq.s32.totalorder %s22, 1
    %p233 = por %p231, %p232
    %p234 = scmp.ne.s32.totalorder %s226, %s229
    %p235 = scmp.eq.s32.totalorder %s22, 0
    %p236 = por %p234, %p235
    %p237 = scmp.ne.s32.totalorder %s226, %s229
    %p238 = scmp.eq.s32.totalorder %s27, 1
    %p239 = por %p237, %p238
    %p240 = scmp.ne.s32.totalorder %s229, %s230
    %p241 = scmp.eq.s32.totalorder %s27, 0
    %p242 = por %p240, %p241
    %p243 = scmp.ne.s32.totalorder %s229, %s230
    %p244 = scmp.eq.s32.totalorder %s28, 1
    %p245 = por %p243, %p244
    %p247 = scmp.ne.s32.totalorder %s230, %s246
    %p248 = scmp.eq.s32.totalorder %s28, 0
    %p249 = por %p247, %p248
    %s250 = ssub.s32 %s30, %s37
    %p251 = scmp.eq.s32.totalorder %s250, 0
    %s253 = sadd.s32 %s252, 1
    %s254 = scalar_select %p251, %s252, %s253
    %p257 = pneg %p251
    %p258 = scmp.eq.s32.totalorder %s22, 1
    %p259 = por %p257, %p258
    %p260 = scmp.ne.s32.totalorder %s252, %s255
    %p261 = scmp.eq.s32.totalorder %s22, 0
    %p262 = por %p260, %p261
    %p263 = scmp.ne.s32.totalorder %s252, %s255
    %p264 = scmp.eq.s32.totalorder %s27, 1
    %p265 = por %p263, %p264
    %p266 = scmp.ne.s32.totalorder %s255, %s256
    %p267 = scmp.eq.s32.totalorder %s27, 0
    %p268 = por %p266, %p267
    %p269 = scmp.ne.s32.totalorder %s255, %s256
    %p270 = scmp.eq.s32.totalorder %s28, 1
    %p271 = por %p269, %p270
    %p273 = scmp.ne.s32.totalorder %s256, %s272
    %p274 = scmp.eq.s32.totalorder %s28, 0
    %p275 = por %p273, %p274
    %s276 = ssub.s32 %s30, %s37
    %p277 = scmp.eq.s32.totalorder %s276, 0
    %s279 = sadd.s32 %s278, 1
    %s280 = scalar_select %p277, %s278, %s279
    %p283 = pneg %p277
    %p284 = scmp.eq.s32.totalorder %s22, 1
    %p285 = por %p283, %p284
    %p286 = scmp.ne.s32.totalorder %s278, %s281
    %p287 = scmp.eq.s32.totalorder %s22, 0
    %p288 = por %p286, %p287
    %p289 = scmp.ne.s32.totalorder %s278, %s281
    %p290 = scmp.eq.s32.totalorder %s27, 1
    %p291 = por %p289, %p290
    %p292 = scmp.ne.s32.totalorder %s281, %s282
    %p293 = scmp.eq.s32.totalorder %s27, 0
    %p294 = por %p292, %p293
    %p295 = scmp.ne.s32.totalorder %s281, %s282
    %p296 = scmp.eq.s32.totalorder %s28, 1
    %p297 = por %p295, %p296
    %p299 = scmp.ne.s32.totalorder %s282, %s298
    %p300 = scmp.eq.s32.totalorder %s28, 0
    %p301 = por %p299, %p300
    %s302 = ssub.s32 %s30, %s37
    %p303 = scmp.eq.s32.totalorder %s302, 0
    %s305 = sadd.s32 %s304, 1
    %s306 = scalar_select %p303, %s304, %s305
    %p309 = pneg %p303
    %p310 = scmp.eq.s32.totalorder %s22, 1
    %p311 = por %p309, %p310
    %p312 = scmp.ne.s32.totalorder %s304, %s307
    %p313 = scmp.eq.s32.totalorder %s22, 0
    %p314 = por %p312, %p313
    %p315 = scmp.ne.s32.totalorder %s304, %s307
    %p316 = scmp.eq.s32.totalorder %s27, 1
    %p317 = por %p315, %p316
    %p318 = scmp.ne.s32.totalorder %s307, %s308
    %p319 = scmp.eq.s32.totalorder %s27, 0
    %p320 = por %p318, %p319
    %p321 = scmp.ne.s32.totalorder %s307, %s308
    %p322 = scmp.eq.s32.totalorder %s28, 1
    %p323 = por %p321, %p322
    %p325 = scmp.ne.s32.totalorder %s308, %s324
    %p326 = scmp.eq.s32.totalorder %s28, 0
    %p327 = por %p325, %p326
    %s328 = ssub.s32 %s30, %s37
    %p329 = scmp.eq.s32.totalorder %s328, 0
    %s331 = sadd.s32 %s330, 1
    %s332 = scalar_select %p329, %s330, %s331
    %p335 = pneg %p329
    %p336 = scmp.eq.s32.totalorder %s22, 1
    %p337 = por %p335, %p336
    %p338 = scmp.ne.s32.totalorder %s330, %s333
    %p339 = scmp.eq.s32.totalorder %s22, 0
    %p340 = por %p338, %p339
    %p341 = scmp.ne.s32.totalorder %s330, %s333
    %p342 = scmp.eq.s32.totalorder %s27, 1
    %p343 = por %p341, %p342
    %p344 = scmp.ne.s32.totalorder %s333, %s334
    %p345 = scmp.eq.s32.totalorder %s27, 0
    %p346 = por %p344, %p345
    %p347 = scmp.ne.s32.totalorder %s333, %s334
    %p348 = scmp.eq.s32.totalorder %s28, 1
    %p349 = por %p347, %p348
    %p351 = scmp.ne.s32.totalorder %s334, %s350
    %p352 = scmp.eq.s32.totalorder %s28, 0
    %p353 = por %p351, %p352
    %s354 = ssub.s32 %s30, %s37
    %p355 = scmp.eq.s32.totalorder %s354, 0
    %s357 = sadd.s32 %s356, 1
    %s358 = scalar_select %p355, %s356, %s357
    %p361 = pneg %p355
    %p362 = scmp.eq.s32.totalorder %s22, 1
    %p363 = por %p361, %p362
    %p364 = scmp.ne.s32.totalorder %s356, %s359
    %p365 = scmp.eq.s32.totalorder %s22, 0
    %p366 = por %p364, %p365
    %p367 = scmp.ne.s32.totalorder %s356, %s359
    %p368 = scmp.eq.s32.totalorder %s27, 1
    %p369 = por %p367, %p368
    %p370 = scmp.ne.s32.totalorder %s359, %s360
    %p371 = scmp.eq.s32.totalorder %s27, 0
    %p372 = por %p370, %p371
    %p373 = scmp.ne.s32.totalorder %s359, %s360
    %p374 = scmp.eq.s32.totalorder %s28, 1
    %p375 = por %p373, %p374
    %p377 = scmp.ne.s32.totalorder %s360, %s376
    %p378 = scmp.eq.s32.totalorder %s28, 0
    %p379 = por %p377, %p378
    %s380 = ssub.s32 %s30, %s37
    %p381 = scmp.eq.s32.totalorder %s380, 0
    %s383 = sadd.s32 %s382, 1
    %s384 = scalar_select %p381, %s382, %s383
    %p387 = pneg %p381
    %p388 = scmp.eq.s32.totalorder %s22, 1
    %p389 = por %p387, %p388
    %p390 = scmp.ne.s32.totalorder %s382, %s385
    %p391 = scmp.eq.s32.totalorder %s22, 0
    %p392 = por %p390, %p391
    %p393 = scmp.ne.s32.totalorder %s382, %s385
    %p394 = scmp.eq.s32.totalorder %s27, 1
    %p395 = por %p393, %p394
    %p396 = scmp.ne.s32.totalorder %s385, %s386
    %p397 = scmp.eq.s32.totalorder %s27, 0
    %p398 = por %p396, %p397
    %p399 = scmp.ne.s32.totalorder %s385, %s386
    %p400 = scmp.eq.s32.totalorder %s28, 1
    %p401 = por %p399, %p400
    %p403 = scmp.ne.s32.totalorder %s386, %s402
    %p404 = scmp.eq.s32.totalorder %s28, 0
    %p405 = por %p403, %p404
    %s407 = sadd.s32 %s406, 1
    %p410 = scmp.eq.s32.totalorder %s22, 1
    %p411 = scmp.ne.s32.totalorder %s406, %s408
    %p412 = scmp.eq.s32.totalorder %s22, 0
    %p413 = por %p411, %p412
    %p414 = scmp.ne.s32.totalorder %s406, %s408
    %p415 = scmp.eq.s32.totalorder %s27, 1
    %p416 = por %p414, %p415
    %p417 = scmp.ne.s32.totalorder %s408, %s409
    %p418 = scmp.eq.s32.totalorder %s27, 0
    %p419 = por %p417, %p418
    %p420 = scmp.ne.s32.totalorder %s408, %s409
    %p421 = scmp.eq.s32.totalorder %s28, 1
    %p422 = por %p420, %p421
    %p424 = scmp.ne.s32.totalorder %s409, %s423
    %p425 = scmp.eq.s32.totalorder %s28, 0
    %p426 = por %p424, %p425
    %s428 = sadd.s32 %s427, 1
    %p431 = scmp.eq.s32.totalorder %s22, 1
    %p432 = scmp.ne.s32.totalorder %s427, %s429
    %p433 = scmp.eq.s32.totalorder %s22, 0
    %p434 = por %p432, %p433
    %p435 = scmp.ne.s32.totalorder %s427, %s429
    %p436 = scmp.eq.s32.totalorder %s27, 1
    %p437 = por %p435, %p436
    %p438 = scmp.ne.s32.totalorder %s429, %s430
    %p439 = scmp.eq.s32.totalorder %s27, 0
    %p440 = por %p438, %p439
    %p441 = scmp.ne.s32.totalorder %s429, %s430
    %p442 = scmp.eq.s32.totalorder %s28, 1
    %p443 = por %p441, %p442
    %p445 = scmp.ne.s32.totalorder %s430, %s444
    %p446 = scmp.eq.s32.totalorder %s28, 0
    %p447 = por %p445, %p446
    %s448 = ssub.s32 %s29, %s41
    %p449 = scmp.eq.s32.totalorder %s448, 0
    %s451 = sadd.s32 %s450, 1
    %s452 = scalar_select %p449, %s450, %s451
    %p455 = pneg %p449
    %p456 = scmp.eq.s32.totalorder %s22, 1
    %p457 = por %p455, %p456
    %p458 = scmp.ne.s32.totalorder %s450, %s453
    %p459 = scmp.eq.s32.totalorder %s22, 0
    %p460 = por %p458, %p459
    %p461 = scmp.ne.s32.totalorder %s450, %s453
    %p462 = scmp.eq.s32.totalorder %s27, 1
    %p463 = por %p461, %p462
    %p464 = scmp.ne.s32.totalorder %s453, %s454
    %p465 = scmp.eq.s32.totalorder %s27, 0
    %p466 = por %p464, %p465
    %p467 = scmp.ne.s32.totalorder %s453, %s454
    %p468 = scmp.eq.s32.totalorder %s28, 1
    %p469 = por %p467, %p468
    %p471 = scmp.ne.s32.totalorder %s454, %s470
    %p472 = scmp.eq.s32.totalorder %s28, 0
    %p473 = por %p471, %p472
    %p474 = scmp.le.s32.totalorder 1, %s22
    %p475 = scmp.lt.s32.totalorder %s22, 3
    %p476 = pnand %p474, %p475
    %p477 = pneg %p476
    // Predicated region
    $region9: #{vit_forward.1} parent=5 // pred_check
      _
    $region10: #{vit_forward.1} parent=5 // pred_check_branch
      %479 = sbr.rel (%p476) target = $region12
    $region11: #{vit_forward.1} parent=5 // pred_region
      %s480 = ssub.s32 %s22, 1
      // Predicated region
      $region13: #{vit_forward.1} parent=11 // pred_check
        %p481 = pneg %p60
      $region14: #{vit_forward.1} parent=11 // pred_check_branch
        %483 = sbr.rel (%p481) target = $region16
      $region15: #{vit_forward.1} parent=11 // pred_region
        %s484 = smul.u32 2, %s31
        %p485 = scmp.lt.s32.totalorder %s484, 1
        %s486 = scalar_select %p485, %s484, 1
        %s487 = smul.addr %s486, 8
        %s488 = scalar_lea.vmem %s0, %s487
        %s489 = smul.u32 2, %s31
      $region16: #{vit_forward.1} parent=11 // pred_fallthru
        _
      // Predicated region
      $region17: #{vit_forward.1} parent=11 // pred_check
        %p490 = pneg %p419
      $region18: #{vit_forward.1} parent=11 // pred_check_branch
        %492 = sbr.rel (%p490) target = $region20
      $region19: #{vit_forward.1} parent=11 // pred_region
        _
      $region20: #{vit_forward.1} parent=11 // pred_fallthru
        _
      // Predicated region
      $region21: #{vit_forward.1} parent=11 // pred_check
        %p493 = pneg %p440
      $region22: #{vit_forward.1} parent=11 // pred_check_branch
        %495 = sbr.rel (%p493) target = $region24
      $region23: #{vit_forward.1} parent=11 // pred_region
        _
      $region24: #{vit_forward.1} parent=11 // pred_fallthru
        _
    $region12: #{vit_forward.1} parent=5 // pred_fallthru
      _
    %p496 = scmp.lt.s32.totalorder %s22, 2
    // Predicated region
    $region25: #{vit_forward.1} parent=5 // pred_check
      %p497 = pneg %p496
    $region26: #{vit_forward.1} parent=5 // pred_check_branch
      %499 = sbr.rel (%p497) target = $region28
    $region27: #{vit_forward.1} parent=5 // pred_region
      // Predicated region
      $region29: #{vit_forward.1} parent=27 // pred_check
        %p500 = pneg %p80
      $region30: #{vit_forward.1} parent=27 // pred_check_branch
        %502 = sbr.rel (%p500) target = $region32
      $region31: #{vit_forward.1} parent=27 // pred_region
        %p503 = scmp.lt.s32.totalorder %s30, 1
        %s504 = scalar_select %p503, %s30, 1
        %s505 = scalar_lea.vmem %s1, %s504
      $region32: #{vit_forward.1} parent=27 // pred_fallthru
        _
      // Predicated region
      $region33: #{vit_forward.1} parent=27 // pred_check
        %p506 = pneg %p106
      $region34: #{vit_forward.1} parent=27 // pred_check_branch
        %508 = sbr.rel (%p506) target = $region36
      $region35: #{vit_forward.1} parent=27 // pred_region
        %p509 = scmp.lt.s32.totalorder %s30, 1
        %s510 = scalar_select %p509, %s30, 1
        %s511 = scalar_lea.vmem %s2, %s510
      $region36: #{vit_forward.1} parent=27 // pred_fallthru
        _
      // Predicated region
      $region37: #{vit_forward.1} parent=27 // pred_check
        %p512 = pneg %p132
      $region38: #{vit_forward.1} parent=27 // pred_check_branch
        %514 = sbr.rel (%p512) target = $region40
      $region39: #{vit_forward.1} parent=27 // pred_region
        %p515 = scmp.lt.s32.totalorder %s30, 1
        %s516 = scalar_select %p515, %s30, 1
        %s517 = smul.addr %s516, 4
        %s518 = smul.addr %s517, 4
        %s519 = scalar_lea.vmem %s3, %s518
      $region40: #{vit_forward.1} parent=27 // pred_fallthru
        _
      // Predicated region
      $region41: #{vit_forward.1} parent=27 // pred_check
        %p520 = pneg %p158
      $region42: #{vit_forward.1} parent=27 // pred_check_branch
        %522 = sbr.rel (%p520) target = $region44
      $region43: #{vit_forward.1} parent=27 // pred_region
        %p523 = scmp.lt.s32.totalorder %s30, 1
        %s524 = scalar_select %p523, %s30, 1
        %s525 = smul.addr %s524, 4
        %s526 = smul.addr %s525, 4
        %s527 = scalar_lea.vmem %s4, %s526
      $region44: #{vit_forward.1} parent=27 // pred_fallthru
        _
      // Predicated region
      $region45: #{vit_forward.1} parent=27 // pred_check
        %p528 = pneg %p184
      $region46: #{vit_forward.1} parent=27 // pred_check_branch
        %530 = sbr.rel (%p528) target = $region48
      $region47: #{vit_forward.1} parent=27 // pred_region
        %p531 = scmp.lt.s32.totalorder %s30, 1
        %s532 = scalar_select %p531, %s30, 1
        %s533 = smul.addr %s532, 4
        %s534 = smul.addr %s533, 4
        %s535 = scalar_lea.vmem %s5, %s534
      $region48: #{vit_forward.1} parent=27 // pred_fallthru
        _
      // Predicated region
      $region49: #{vit_forward.1} parent=27 // pred_check
        %p536 = pneg %p210
      $region50: #{vit_forward.1} parent=27 // pred_check_branch
        %538 = sbr.rel (%p536) target = $region52
      $region51: #{vit_forward.1} parent=27 // pred_region
        %p539 = scmp.lt.s32.totalorder %s30, 1
        %s540 = scalar_select %p539, %s30, 1
        %s541 = smul.addr %s540, 4
        %s542 = smul.addr %s541, 4
        %s543 = scalar_lea.vmem %s6, %s542
      $region52: #{vit_forward.1} parent=27 // pred_fallthru
        _
      // Predicated region
      $region53: #{vit_forward.1} parent=27 // pred_check
        %p544 = pneg %p236
      $region54: #{vit_forward.1} parent=27 // pred_check_branch
        %546 = sbr.rel (%p544) target = $region56
      $region55: #{vit_forward.1} parent=27 // pred_region
        %p547 = scmp.lt.s32.totalorder %s30, 1
        %s548 = scalar_select %p547, %s30, 1
        %s549 = scalar_lea.vmem %s7, %s548
      $region56: #{vit_forward.1} parent=27 // pred_fallthru
        _
      // Predicated region
      $region57: #{vit_forward.1} parent=27 // pred_check
        %p550 = pneg %p262
      $region58: #{vit_forward.1} parent=27 // pred_check_branch
        %552 = sbr.rel (%p550) target = $region60
      $region59: #{vit_forward.1} parent=27 // pred_region
        %p553 = scmp.lt.s32.totalorder %s30, 1
        %s554 = scalar_select %p553, %s30, 1
        %s555 = scalar_lea.vmem %s8, %s554
      $region60: #{vit_forward.1} parent=27 // pred_fallthru
        _
      // Predicated region
      $region61: #{vit_forward.1} parent=27 // pred_check
        %p556 = pneg %p288
      $region62: #{vit_forward.1} parent=27 // pred_check_branch
        %558 = sbr.rel (%p556) target = $region64
      $region63: #{vit_forward.1} parent=27 // pred_region
        %p559 = scmp.lt.s32.totalorder %s30, 1
        %s560 = scalar_select %p559, %s30, 1
        %s561 = scalar_lea.vmem %s9, %s560
      $region64: #{vit_forward.1} parent=27 // pred_fallthru
        _
      // Predicated region
      $region65: #{vit_forward.1} parent=27 // pred_check
        %p562 = pneg %p314
      $region66: #{vit_forward.1} parent=27 // pred_check_branch
        %564 = sbr.rel (%p562) target = $region68
      $region67: #{vit_forward.1} parent=27 // pred_region
        %p565 = scmp.lt.s32.totalorder %s30, 1
        %s566 = scalar_select %p565, %s30, 1
        %s567 = smul.addr %s566, 4
        %s568 = smul.addr %s567, 4
        %s569 = scalar_lea.vmem %s10, %s568
      $region68: #{vit_forward.1} parent=27 // pred_fallthru
        _
      // Predicated region
      $region69: #{vit_forward.1} parent=27 // pred_check
        %p570 = pneg %p340
      $region70: #{vit_forward.1} parent=27 // pred_check_branch
        %572 = sbr.rel (%p570) target = $region72
      $region71: #{vit_forward.1} parent=27 // pred_region
        %p573 = scmp.lt.s32.totalorder %s30, 1
        %s574 = scalar_select %p573, %s30, 1
        %s575 = scalar_lea.vmem %s11, %s574
      $region72: #{vit_forward.1} parent=27 // pred_fallthru
        _
      // Predicated region
      $region73: #{vit_forward.1} parent=27 // pred_check
        %p576 = pneg %p366
      $region74: #{vit_forward.1} parent=27 // pred_check_branch
        %578 = sbr.rel (%p576) target = $region76
      $region75: #{vit_forward.1} parent=27 // pred_region
        %p579 = scmp.lt.s32.totalorder %s30, 1
        %s580 = scalar_select %p579, %s30, 1
        %s581 = smul.addr %s580, 16
        %s582 = smul.addr %s581, 4
        %s583 = scalar_lea.vmem %s12, %s582
      $region76: #{vit_forward.1} parent=27 // pred_fallthru
        _
      // Predicated region
      $region77: #{vit_forward.1} parent=27 // pred_check
        %p584 = pneg %p392
      $region78: #{vit_forward.1} parent=27 // pred_check_branch
        %586 = sbr.rel (%p584) target = $region80
      $region79: #{vit_forward.1} parent=27 // pred_region
        %p587 = scmp.lt.s32.totalorder %s30, 1
        %s588 = scalar_select %p587, %s30, 1
        %s589 = scalar_lea.vmem %s13, %s588
      $region80: #{vit_forward.1} parent=27 // pred_fallthru
        _
    $region28: #{vit_forward.1} parent=5 // pred_fallthru
      _
    %p590 = scmp.le.s32.totalorder 1, %s22
    %p591 = scmp.lt.s32.totalorder %s22, 3
    %p592 = pnand %p590, %p591
    %p593 = pneg %p592
    // Predicated region
    $region81: #{vit_forward.1} parent=5 // pred_check
      _
    $region82: #{vit_forward.1} parent=5 // pred_check_branch
      %595 = sbr.rel (%p592) target = $region84
    $region83: #{vit_forward.1} parent=5 // pred_region
      %s596 = ssub.s32 %s22, 1
      %s597 = smul.u32 2, %s31
      %p598 = scmp.lt.s32.totalorder %s597, 1
      %s599 = scalar_select %p598, %s597, 1
      %s600 = smul.addr %s599, 8
      %s601 = scalar_lea.vmem %s0, %s600
      %p602 = pneg %p60
      %p603 = pneg %p57
      %p604 = scmp.lt.s32.totalorder %s32, 1
      %s605 = scalar_select %p604, %s32, 1
      %s606 = scalar_lea.vmem %s1, %s605
      %p607 = pneg %p86
      %p608 = pneg %p83
      %p609 = scmp.lt.s32.totalorder %s32, 1
      %s610 = scalar_select %p609, %s32, 1
      %s611 = scalar_lea.vmem %s2, %s610
      %p612 = pneg %p112
      %p613 = pneg %p109
      %p614 = scmp.lt.s32.totalorder %s32, 1
      %s615 = scalar_select %p614, %s32, 1
      %s616 = smul.addr %s615, 4
      %s617 = smul.addr %s616, 4
      %s618 = scalar_lea.vmem %s3, %s617
      %p619 = pneg %p138
      %p620 = pneg %p135
      %p621 = scmp.lt.s32.totalorder %s32, 1
      %s622 = scalar_select %p621, %s32, 1
      %s623 = smul.addr %s622, 4
      %s624 = smul.addr %s623, 4
      %s625 = scalar_lea.vmem %s4, %s624
      %p626 = pneg %p164
      %p627 = pneg %p161
      %p628 = scmp.lt.s32.totalorder %s32, 1
      %s629 = scalar_select %p628, %s32, 1
      %s630 = smul.addr %s629, 4
      %s631 = smul.addr %s630, 4
      %s632 = scalar_lea.vmem %s5, %s631
      %p633 = pneg %p190
      %p634 = pneg %p187
      %p635 = scmp.lt.s32.totalorder %s32, 1
      %s636 = scalar_select %p635, %s32, 1
      %s637 = smul.addr %s636, 4
      %s638 = smul.addr %s637, 4
      %s639 = scalar_lea.vmem %s6, %s638
      %p640 = pneg %p216
      %p641 = pneg %p213
      %p642 = scmp.lt.s32.totalorder %s32, 1
      %s643 = scalar_select %p642, %s32, 1
      %s644 = scalar_lea.vmem %s7, %s643
      %p645 = pneg %p242
      %p646 = pneg %p239
      %p647 = scmp.lt.s32.totalorder %s32, 1
      %s648 = scalar_select %p647, %s32, 1
      %s649 = scalar_lea.vmem %s8, %s648
      %p650 = pneg %p268
      %p651 = pneg %p265
      %p652 = scmp.lt.s32.totalorder %s32, 1
      %s653 = scalar_select %p652, %s32, 1
      %s654 = scalar_lea.vmem %s9, %s653
      %p655 = pneg %p294
      %p656 = pneg %p291
      %p657 = scmp.lt.s32.totalorder %s32, 1
      %s658 = scalar_select %p657, %s32, 1
      %s659 = smul.addr %s658, 4
      %s660 = smul.addr %s659, 4
      %s661 = scalar_lea.vmem %s10, %s660
      %p662 = pneg %p320
      %p663 = pneg %p317
      %p664 = scmp.lt.s32.totalorder %s32, 1
      %s665 = scalar_select %p664, %s32, 1
      %s666 = scalar_lea.vmem %s11, %s665
      %p667 = pneg %p346
      %p668 = pneg %p343
      %p669 = scmp.lt.s32.totalorder %s32, 1
      %s670 = scalar_select %p669, %s32, 1
      %s671 = smul.addr %s670, 16
      %s672 = smul.addr %s671, 4
      %s673 = scalar_lea.vmem %s12, %s672
      %p674 = pneg %p372
      %p675 = pneg %p369
      %p676 = scmp.lt.s32.totalorder %s32, 1
      %s677 = scalar_select %p676, %s32, 1
      %s678 = scalar_lea.vmem %s13, %s677
      %p679 = pneg %p398
      %p680 = pneg %p395
      %p681 = pneg %p419
      %p682 = pneg %p416
      %p683 = pneg %p440
      %p684 = pneg %p437
      %p685 = pneg %p466
      %p686 = pneg %p463
      %p687 = scmp.lt.s32.totalorder %s31, 0
      %s688 = scalar_select %p687, %s31, 0
      %s689 = smul.addr %s688, 2
      %s690 = scalar_lea.vmem %s16, %s689
      %s691 = smul.u32 2, %s31
      %p692 = scmp.lt.s32.totalorder %s691, 1
      %s693 = scalar_select %p692, %s691, 1
      %s694 = smul.addr %s693, 8
      %s695 = scalar_lea.vmem %s0, %s694
      %s696 = smul.u32 2, %s31
      %p697 = scmp.lt.s32.totalorder %s32, 1
      %s698 = scalar_select %p697, %s32, 1
      %s699 = scalar_lea.vmem %s1, %s698
      %p700 = scmp.lt.s32.totalorder %s32, 1
      %s701 = scalar_select %p700, %s32, 1
      %s702 = scalar_lea.vmem %s2, %s701
      %p703 = scmp.lt.s32.totalorder %s32, 1
      %s704 = scalar_select %p703, %s32, 1
      %s705 = smul.addr %s704, 4
      %s706 = smul.addr %s705, 4
      %s707 = scalar_lea.vmem %s3, %s706
      %p708 = scmp.lt.s32.totalorder %s32, 1
      %s709 = scalar_select %p708, %s32, 1
      %s710 = smul.addr %s709, 4
      %s711 = smul.addr %s710, 4
      %s712 = scalar_lea.vmem %s4, %s711
      %p713 = scmp.lt.s32.totalorder %s32, 1
      %s714 = scalar_select %p713, %s32, 1
      %s715 = smul.addr %s714, 4
      %s716 = smul.addr %s715, 4
      %s717 = scalar_lea.vmem %s5, %s716
      %p718 = scmp.lt.s32.totalorder %s32, 1
      %s719 = scalar_select %p718, %s32, 1
      %s720 = smul.addr %s719, 4
      %s721 = smul.addr %s720, 4
      %s722 = scalar_lea.vmem %s6, %s721
      %p723 = scmp.lt.s32.totalorder %s32, 1
      %s724 = scalar_select %p723, %s32, 1
      %s725 = scalar_lea.vmem %s7, %s724
      %p726 = scmp.lt.s32.totalorder %s32, 1
      %s727 = scalar_select %p726, %s32, 1
      %s728 = scalar_lea.vmem %s8, %s727
      %p729 = scmp.lt.s32.totalorder %s32, 1
      %s730 = scalar_select %p729, %s32, 1
      %s731 = scalar_lea.vmem %s9, %s730
      %p732 = scmp.lt.s32.totalorder %s32, 1
      %s733 = scalar_select %p732, %s32, 1
      %s734 = smul.addr %s733, 4
      %s735 = smul.addr %s734, 4
      %s736 = scalar_lea.vmem %s10, %s735
      %p737 = scmp.lt.s32.totalorder %s32, 1
      %s738 = scalar_select %p737, %s32, 1
      %s739 = scalar_lea.vmem %s11, %s738
      %p740 = scmp.lt.s32.totalorder %s32, 1
      %s741 = scalar_select %p740, %s32, 1
      %s742 = smul.addr %s741, 16
      %s743 = smul.addr %s742, 4
      %s744 = scalar_lea.vmem %s12, %s743
      %p745 = scmp.lt.s32.totalorder %s32, 1
      %s746 = scalar_select %p745, %s32, 1
      %s747 = scalar_lea.vmem %s13, %s746
      %p748 = scmp.lt.s32.totalorder %s31, 0
      %s749 = scalar_select %p748, %s31, 0
      %s750 = smul.addr %s749, 2
      %s751 = scalar_lea.vmem %s16, %s750
      %p753 = scmp.eq.s32.totalorder %s32, 0
      // Predicated region
      $region85: #{vit_forward.1} parent=83 // pred_check
        %p754 = pneg %p753
      $region86: #{vit_forward.1} parent=83 // pred_check_branch
        %756 = sbr.rel (%p754) target = $region88
      $region87: #{vit_forward.1} parent=83 // pred_region
        %v757 = vld [vmem:[%s695] sm:$0x1f]
        %vm758 = vcmask 258048
        %759 = vst.msk [vmem:[#allocation2] sm:$0x1f] %vm758, %v757
        %s760 = scalar_lea.vmem %s695, 8
        %v761 = vld [vmem:[%s760] sm:$0x1f]
        %762 = vst.msk [vmem:[#allocation2 + $0x5] sm:$0x1f] %vm758, %v761
      $region88: #{vit_forward.1} parent=83 // pred_fallthru
        _
      %v763 = vld [vmem:[#allocation2] sm:$0xff]
      %v764 = vld [vmem:[#allocation2 + $0x8] sm:$0x3]
      %v765 = vld [vmem:[%s699] sm:$0x1]
      %v766 = vld [vmem:[%s702] sm:$0x1]
      %vm767 = vcmask 261120
      %v768 = vsel %vm767, %v763, 0.0
      %769 = vadd.xlane.f32.xlu0 %v768
      %v770 = vpop.xlane.xlu0 %769
      %vm771 = vcmask 254976
      %v772 = vsel %vm771, %v764, 0.0
      %773 = vadd.xlane.f32.xlu0 %v772
      %v774 = vpop.xlane.xlu0 %773
      %v775 = vrcp.pop 32.0
      %v776 = vmul.f32 %v770, %v775
      %v777 = vmul.f32 %v774, %v775
      %v778 = vmul.f32 %v763, %v763
      %v779 = vmul.f32 %v764, %v764
      %v780 = vsel %vm767, %v778, 0.0
      %781 = vadd.xlane.f32.xlu0 %v780
      %v782 = vpop.xlane.xlu0 %781
      %v783 = vsel %vm771, %v779, 0.0
      %784 = vadd.xlane.f32.xlu0 %v783
      %v785 = vpop.xlane.xlu0 %784
      %v786 = vmul.f32 %v782, %v775
      %v787 = vmul.f32 %v785, %v775
      %v788 = vmul.f32 %v776, %v776
      %v789 = vmul.f32 %v777, %v777
      %v790 = vsub.f32 %v786, %v788
      %v791 = vsub.f32 %v787, %v789
      %v792 = vsub.f32 %v763, %v776
      %v793 = vsub.f32 %v764, %v777
      %v794 = vadd.f32 %v790, 1e-05
      %v795 = vadd.f32 %v791, 1e-05
      %v796 = vrsqrt.pop %v794
      %v797 = vrsqrt.pop %v795
      %v798 = vmul.f32 %v792, %v796
      %v799 = vmul.f32 %v793, %v797
      %v801 = vlaneseq
      %v802 = vshrl.u32 %v801, 7
      %v803 = vsub.s32 0, %v802
      %v804 = vrot.slane %v765, %v803
      %v806 = vmul.f32 %v798, %v804
      %v807 = vmul.f32 %v799, %v804
      %v809 = vlaneseq
      %v810 = vshrl.u32 %v809, 7
      %v811 = vsub.s32 0, %v810
      %v812 = vrot.slane %v766, %v811
      %v814 = vadd.f32 %v806, %v812
      %v815 = vadd.f32 %v807, %v812
      %v816 = vpack.c.bf16 %v815, %v814
      %v817 = vld [vmem:[%s707] sm:$0xf]
      %v818 = vld [vmem:[%s707 + $0x4] sm:$0xf]
      %v819 = vld [vmem:[%s707 + $0x8] sm:$0xf]
      %v820 = vld [vmem:[%s707 + $0xc] sm:$0xf]
      %v825 = vunpack.c.l.b16 %v817
      %v826 = vunpack.c.l.b16 %v818
      %v827 = vunpack.c.l.b16 %v819
      %v828 = vunpack.c.l.b16 %v820
      %v829 = vpack.c.b16 %v826, %v825
      %v830 = vpack.c.b16 %v828, %v827
      %v834 = vsel %vm767, %v816, 0
      %836 = vmatprep.subr.bf16.mxu0 0
      %837 = vmatpush1.bf16.msra.mxu0 0
      %838 = vmatprep.subr.bf16.mxu0 0
      %839 = vmatpush1.bf16.msra.mxu0 0
      %840 = vmatprep.subr.bf16.mxu0 0
      %841 = vmatpush1.bf16.msra.mxu0 0
      %842 = vmatprep.subr.bf16.mxu0 0
      %843 = vmatpush1.bf16.msra.mxu0 0
      %844 = vmatprep.subr.bf16.mxu0 0
      %845 = vmatpush1.bf16.msra.mxu0 0
      %846 = vmatprep.subr.bf16.mxu0 0
      %847 = vmatpush1.bf16.msra.mxu0 0
      %848 = vmatprep.subr.bf16.mxu0 0
      %849 = vmatpush1.bf16.msra.mxu0 %v830
      %850 = vmatprep.subr.bf16.mxu0 0
      %851 = vmatpush1.bf16.msra.mxu0 %v829
      %852 = vmatprep.subr.bf16.mxu0 0
      %853 = vmatpush2.bf16.msra.mxu0 0
      %854 = vmatprep.subr.bf16.mxu0 0
      %855 = vmatpush2.bf16.msra.mxu0 0
      %856 = vmatprep.subr.bf16.mxu0 0
      %857 = vmatpush2.bf16.msra.mxu0 0
      %858 = vmatprep.subr.bf16.mxu0 0
      %859 = vmatpush2.bf16.msra.mxu0 0
      %860 = vmatprep.subr.bf16.mxu0 0
      %861 = vmatpush2.bf16.msra.mxu0 0
      %862 = vmatprep.subr.bf16.mxu0 0
      %863 = vmatpush2.bf16.msra.mxu0 0
      %864 = vmatprep.subr.bf16.mxu0 0
      %865 = vmatpush2.bf16.msra.mxu0 0
      %866 = vmatprep.subr.bf16.mxu0 0
      %867 = vmatpush2.bf16.msra.mxu0 0
      %868 = vmatprep.mubr.bf16.mxu0 0
      %869 = vmatmul.mubr.bf16.gmra.mxu0 %v834
      %v870 = vpop.f32.mrf.mxu0
      %v871 = vadd.f32 0.0, %v870
      %v872 = vpop.f32.mrf.mxu0
      %v873 = vpop.f32.mrf.mxu0
      %v874 = vadd.f32 0.0, %v873
      %v875 = vpop.f32.mrf.mxu0
      %876 = vdwg.mxu0
      %877 = vst.msk [vmem:[#allocation3] sm:$0xff] %vm767, %v871
      %878 = vst.msk [vmem:[#allocation3 + $0x8] sm:$0x3] %vm771, %v874
      %v879 = vld [vmem:[%s712] sm:$0xf]
      %v880 = vld [vmem:[%s712 + $0x4] sm:$0xf]
      %v881 = vld [vmem:[%s712 + $0x8] sm:$0xf]
      %v882 = vld [vmem:[%s712 + $0xc] sm:$0xf]
      %v887 = vunpack.c.l.b16 %v879
      %v888 = vunpack.c.l.b16 %v880
      %v889 = vunpack.c.l.b16 %v881
      %v890 = vunpack.c.l.b16 %v882
      %v891 = vpack.c.b16 %v888, %v887
      %v892 = vpack.c.b16 %v890, %v889
      %895 = vmatprep.subr.bf16.mxu0 0
      %896 = vmatpush1.bf16.msra.mxu0 0
      %897 = vmatprep.subr.bf16.mxu0 0
      %898 = vmatpush1.bf16.msra.mxu0 0
      %899 = vmatprep.subr.bf16.mxu0 0
      %900 = vmatpush1.bf16.msra.mxu0 0
      %901 = vmatprep.subr.bf16.mxu0 0
      %902 = vmatpush1.bf16.msra.mxu0 0
      %903 = vmatprep.subr.bf16.mxu0 0
      %904 = vmatpush1.bf16.msra.mxu0 0
      %905 = vmatprep.subr.bf16.mxu0 0
      %906 = vmatpush1.bf16.msra.mxu0 0
      %907 = vmatprep.subr.bf16.mxu0 0
      %908 = vmatpush1.bf16.msra.mxu0 %v892
      %909 = vmatprep.subr.bf16.mxu0 0
      %910 = vmatpush1.bf16.msra.mxu0 %v891
      %911 = vmatprep.subr.bf16.mxu0 0
      %912 = vmatpush2.bf16.msra.mxu0 0
      %913 = vmatprep.subr.bf16.mxu0 0
      %914 = vmatpush2.bf16.msra.mxu0 0
      %915 = vmatprep.subr.bf16.mxu0 0
      %916 = vmatpush2.bf16.msra.mxu0 0
      %917 = vmatprep.subr.bf16.mxu0 0
      %918 = vmatpush2.bf16.msra.mxu0 0
      %919 = vmatprep.subr.bf16.mxu0 0
      %920 = vmatpush2.bf16.msra.mxu0 0
      %921 = vmatprep.subr.bf16.mxu0 0
      %922 = vmatpush2.bf16.msra.mxu0 0
      %923 = vmatprep.subr.bf16.mxu0 0
      %924 = vmatpush2.bf16.msra.mxu0 0
      %925 = vmatprep.subr.bf16.mxu0 0
      %926 = vmatpush2.bf16.msra.mxu0 0
      %927 = vmatprep.mubr.bf16.mxu0 0
      %928 = vmatmul.mubr.bf16.gmra.mxu0 %v834
      %v929 = vpop.f32.mrf.mxu0
      %v930 = vadd.f32 0.0, %v929
      %v931 = vpop.f32.mrf.mxu0
      %v932 = vpop.f32.mrf.mxu0
      %v933 = vadd.f32 0.0, %v932
      %v934 = vpop.f32.mrf.mxu0
      %935 = vdwg.mxu0
      %936 = vst.msk [vmem:[#allocation4] sm:$0xff] %vm767, %v930
      %937 = vst.msk [vmem:[#allocation4 + $0x8] sm:$0x3] %vm771, %v933
      %v938 = vld [vmem:[%s717] sm:$0xf]
      %v939 = vld [vmem:[%s717 + $0x4] sm:$0xf]
      %v940 = vld [vmem:[%s717 + $0x8] sm:$0xf]
      %v941 = vld [vmem:[%s717 + $0xc] sm:$0xf]
      %v946 = vunpack.c.l.b16 %v938
      %v947 = vunpack.c.l.b16 %v939
      %v948 = vunpack.c.l.b16 %v940
      %v949 = vunpack.c.l.b16 %v941
      %v950 = vpack.c.b16 %v947, %v946
      %v951 = vpack.c.b16 %v949, %v948
      %954 = vmatprep.subr.bf16.mxu0 0
      %955 = vmatpush1.bf16.msra.mxu0 0
      %956 = vmatprep.subr.bf16.mxu0 0
      %957 = vmatpush1.bf16.msra.mxu0 0
      %958 = vmatprep.subr.bf16.mxu0 0
      %959 = vmatpush1.bf16.msra.mxu0 0
      %960 = vmatprep.subr.bf16.mxu0 0
      %961 = vmatpush1.bf16.msra.mxu0 0
      %962 = vmatprep.subr.bf16.mxu0 0
      %963 = vmatpush1.bf16.msra.mxu0 0
      %964 = vmatprep.subr.bf16.mxu0 0
      %965 = vmatpush1.bf16.msra.mxu0 0
      %966 = vmatprep.subr.bf16.mxu0 0
      %967 = vmatpush1.bf16.msra.mxu0 %v951
      %968 = vmatprep.subr.bf16.mxu0 0
      %969 = vmatpush1.bf16.msra.mxu0 %v950
      %970 = vmatprep.subr.bf16.mxu0 0
      %971 = vmatpush2.bf16.msra.mxu0 0
      %972 = vmatprep.subr.bf16.mxu0 0
      %973 = vmatpush2.bf16.msra.mxu0 0
      %974 = vmatprep.subr.bf16.mxu0 0
      %975 = vmatpush2.bf16.msra.mxu0 0
      %976 = vmatprep.subr.bf16.mxu0 0
      %977 = vmatpush2.bf16.msra.mxu0 0
      %978 = vmatprep.subr.bf16.mxu0 0
      %979 = vmatpush2.bf16.msra.mxu0 0
      %980 = vmatprep.subr.bf16.mxu0 0
      %981 = vmatpush2.bf16.msra.mxu0 0
      %982 = vmatprep.subr.bf16.mxu0 0
      %983 = vmatpush2.bf16.msra.mxu0 0
      %984 = vmatprep.subr.bf16.mxu0 0
      %985 = vmatpush2.bf16.msra.mxu0 0
      %986 = vmatprep.mubr.bf16.mxu0 0
      %987 = vmatmul.mubr.bf16.gmra.mxu0 %v834
      %v988 = vpop.f32.mrf.mxu0
      %v989 = vadd.f32 0.0, %v988
      %v990 = vpop.f32.mrf.mxu0
      %v991 = vpop.f32.mrf.mxu0
      %v992 = vadd.f32 0.0, %v991
      %v993 = vpop.f32.mrf.mxu0
      %994 = vdwg.mxu0
      %995 = vst.msk [vmem:[#allocation5] sm:$0xff] %vm767, %v989
      %996 = vst.msk [vmem:[#allocation5 + $0x8] sm:$0x3] %vm771, %v992
      %v997 = vld [vmem:[#allocation3] sm:$0x1f]
      %v998 = vld [vmem:[#allocation4] sm:$0x1f]
      %v999 = vld [vmem:[#allocation5] sm:$0x1f]
      %vm1000 = vcmask 64512
      %v1002 = vsel %vm1000, %v997, 0
      %v1005 = vsel %vm1000, %v998, 0
      %1007 = vmatprep.subr.mxu0 0.0
      %1008 = vmatpush1.xpose.msra.mxu0 0.0
      %1009 = vmatprep.subr.mxu0 0.0
      %1010 = vmatpush1.xpose.msra.mxu0 0.0
      %1011 = vmatprep.subr.mxu0 0.0
      %1012 = vmatpush1.xpose.msra.mxu0 0.0
      %1013 = vmatprep.subr.mxu0 0.0
      %1014 = vmatpush1.xpose.msra.mxu0 0.0
      %1015 = vmatprep.subr.mxu0 0.0
      %1016 = vmatpush1.xpose.msra.mxu0 0.0
      %1017 = vmatprep.subr.mxu0 0.0
      %1018 = vmatpush1.xpose.msra.mxu0 0.0
      %1019 = vmatprep.subr.mxu0 0.0
      %1020 = vmatpush1.xpose.msra.mxu0 0.0
      %1021 = vmatprep.subr.mxu0 0.0
      %1022 = vmatpush1.xpose.msra.mxu0 0.0
      %1023 = vmatprep.subr.mxu0 0.0
      %1024 = vmatpush1.xpose.msra.mxu0 0.0
      %1025 = vmatprep.subr.mxu0 0.0
      %1026 = vmatpush1.xpose.msra.mxu0 0.0
      %1027 = vmatprep.subr.mxu0 0.0
      %1028 = vmatpush1.xpose.msra.mxu0 0.0
      %1029 = vmatprep.subr.mxu0 0.0
      %1030 = vmatpush1.xpose.msra.mxu0 0.0
      %1031 = vmatprep.subr.mxu0 0.0
      %1032 = vmatpush1.xpose.msra.mxu0 0.0
      %1033 = vmatprep.subr.mxu0 0.0
      %1034 = vmatpush1.xpose.msra.mxu0 0.0
      %1035 = vmatprep.subr.mxu0 0.0
      %1036 = vmatpush1.xpose.msra.mxu0 0.0
      %1037 = vmatprep.subr.mxu0 0.0
      %1038 = vmatpush1.xpose.msra.mxu0 %v1005
      %1039 = vmatprep.subr.mxu0 0.0
      %1040 = vmatpush2.xpose.msra.mxu0 0.0
      %1041 = vmatprep.subr.mxu0 0.0
      %1042 = vmatpush2.xpose.msra.mxu0 0.0
      %1043 = vmatprep.subr.mxu0 0.0
      %1044 = vmatpush2.xpose.msra.mxu0 0.0
      %1045 = vmatprep.subr.mxu0 0.0
      %1046 = vmatpush2.xpose.msra.mxu0 0.0
      %1047 = vmatprep.subr.mxu0 0.0
      %1048 = vmatpush2.xpose.msra.mxu0 0.0
      %1049 = vmatprep.subr.mxu0 0.0
      %1050 = vmatpush2.xpose.msra.mxu0 0.0
      %1051 = vmatprep.subr.mxu0 0.0
      %1052 = vmatpush2.xpose.msra.mxu0 0.0
      %1053 = vmatprep.subr.mxu0 0.0
      %1054 = vmatpush2.xpose.msra.mxu0 0.0
      %1055 = vmatprep.subr.mxu0 0.0
      %1056 = vmatpush2.xpose.msra.mxu0 0.0
      %1057 = vmatprep.subr.mxu0 0.0
      %1058 = vmatpush2.xpose.msra.mxu0 0.0
      %1059 = vmatprep.subr.mxu0 0.0
      %1060 = vmatpush2.xpose.msra.mxu0 0.0
      %1061 = vmatprep.subr.mxu0 0.0
      %1062 = vmatpush2.xpose.msra.mxu0 0.0
      %1063 = vmatprep.subr.mxu0 0.0
      %1064 = vmatpush2.xpose.msra.mxu0 0.0
      %1065 = vmatprep.subr.mxu0 0.0
      %1066 = vmatpush2.xpose.msra.mxu0 0.0
      %1067 = vmatprep.subr.mxu0 0.0
      %1068 = vmatpush2.xpose.msra.mxu0 0.0
      %1069 = vmatprep.subr.mxu0 0.0
      %1070 = vmatpush2.xpose.msra.mxu0 0.0
      %1071 = vmatprep.mubr.f32.mxu0 0.0
      %1072 = vmatmul.mubr.f32.gmra.mxu0 %v1002
      %v1073 = vpop.f32.mrf.mxu0
      %v1074 = vadd.f32 0.0, %v1073
      %v1075 = vpop.f32.mrf.mxu0
      %1076 = vdwg.mxu0
      %vm1077 = vcmask 36864
      %v1078 = vsel %vm1077, %v1074, -inf
      %1079 = vmax.xlane.f32.xlu0 %v1078
      %v1080 = vpop.xlane.xlu0 %1079
      %v1081 = vsub.f32 %v1074, %v1080
      %v1082 = vmul.f32 %v1081, 1.442695
      %v1083 = vpow.pop %v1082
      %v1084 = vsel %vm1077, %v1083, 0.0
      %1085 = vadd.xlane.f32.xlu0 %v1084
      %v1086 = vpop.xlane.xlu0 %1085
      %v1087 = vrcp.pop %v1086
      %v1088 = vmul.f32 %v1083, %v1087
      %vm1089 = vcmask 39936
      %v1091 = vsel %vm1089, %v1088, 0
      %vm1093 = vcmask 1044480
      %v1095 = vsel %vm1093, %v999, 0
      %1097 = vmatprep.subr.mxu0 0.0
      %1098 = vmatpush1.msra.mxu0 0.0
      %1099 = vmatprep.subr.mxu0 0.0
      %1100 = vmatpush1.msra.mxu0 0.0
      %1101 = vmatprep.subr.mxu0 0.0
      %1102 = vmatpush1.msra.mxu0 0.0
      %1103 = vmatprep.subr.mxu0 0.0
      %1104 = vmatpush1.msra.mxu0 0.0
      %1105 = vmatprep.subr.mxu0 0.0
      %1106 = vmatpush1.msra.mxu0 0.0
      %1107 = vmatprep.subr.mxu0 0.0
      %1108 = vmatpush1.msra.mxu0 0.0
      %1109 = vmatprep.subr.mxu0 0.0
      %1110 = vmatpush1.msra.mxu0 0.0
      %1111 = vmatprep.subr.mxu0 0.0
      %1112 = vmatpush1.msra.mxu0 0.0
      %1113 = vmatprep.subr.mxu0 0.0
      %1114 = vmatpush1.msra.mxu0 0.0
      %1115 = vmatprep.subr.mxu0 0.0
      %1116 = vmatpush1.msra.mxu0 0.0
      %1117 = vmatprep.subr.mxu0 0.0
      %1118 = vmatpush1.msra.mxu0 0.0
      %1119 = vmatprep.subr.mxu0 0.0
      %1120 = vmatpush1.msra.mxu0 0.0
      %1121 = vmatprep.subr.mxu0 0.0
      %1122 = vmatpush1.msra.mxu0 0.0
      %1123 = vmatprep.subr.mxu0 0.0
      %1124 = vmatpush1.msra.mxu0 0.0
      %1125 = vmatprep.subr.mxu0 0.0
      %1126 = vmatpush1.msra.mxu0 0.0
      %1127 = vmatprep.subr.mxu0 0.0
      %1128 = vmatpush1.msra.mxu0 %v1095
      %1129 = vmatprep.subr.mxu0 0.0
      %1130 = vmatpush2.msra.mxu0 0.0
      %1131 = vmatprep.subr.mxu0 0.0
      %1132 = vmatpush2.msra.mxu0 0.0
      %1133 = vmatprep.subr.mxu0 0.0
      %1134 = vmatpush2.msra.mxu0 0.0
      %1135 = vmatprep.subr.mxu0 0.0
      %1136 = vmatpush2.msra.mxu0 0.0
      %1137 = vmatprep.subr.mxu0 0.0
      %1138 = vmatpush2.msra.mxu0 0.0
      %1139 = vmatprep.subr.mxu0 0.0
      %1140 = vmatpush2.msra.mxu0 0.0
      %1141 = vmatprep.subr.mxu0 0.0
      %1142 = vmatpush2.msra.mxu0 0.0
      %1143 = vmatprep.subr.mxu0 0.0
      %1144 = vmatpush2.msra.mxu0 0.0
      %1145 = vmatprep.subr.mxu0 0.0
      %1146 = vmatpush2.msra.mxu0 0.0
      %1147 = vmatprep.subr.mxu0 0.0
      %1148 = vmatpush2.msra.mxu0 0.0
      %1149 = vmatprep.subr.mxu0 0.0
      %1150 = vmatpush2.msra.mxu0 0.0
      %1151 = vmatprep.subr.mxu0 0.0
      %1152 = vmatpush2.msra.mxu0 0.0
      %1153 = vmatprep.subr.mxu0 0.0
      %1154 = vmatpush2.msra.mxu0 0.0
      %1155 = vmatprep.subr.mxu0 0.0
      %1156 = vmatpush2.msra.mxu0 0.0
      %1157 = vmatprep.subr.mxu0 0.0
      %1158 = vmatpush2.msra.mxu0 0.0
      %1159 = vmatprep.subr.mxu0 0.0
      %1160 = vmatpush2.msra.mxu0 0.0
      %1161 = vmatprep.mubr.f32.mxu0 0.0
      %1162 = vmatmul.mubr.f32.gmra.mxu0 %v1091
      %v1163 = vpop.f32.mrf.mxu0
      %v1164 = vadd.f32 0.0, %v1163
      %v1165 = vpop.f32.mrf.mxu0
      %1166 = vdwg.mxu0
      %vm1167 = vcmask 61440
      %1168 = vst.msk [vmem:[#allocation6] sm:$0x1f] %vm1167, %v1164
      %v1169 = vld [vmem:[#allocation3] sm:$0x1f]
      %v1170 = vld [vmem:[#allocation4] sm:$0x1f]
      %v1171 = vld [vmem:[#allocation5] sm:$0x1f]
      %1173 = vrot.lane.b32.xlu0 %v1169, 120
      %v1174 = vpop.permute.xlu0 %1173
      %1176 = vrot.lane.b32.xlu0 %v1170, 120
      %v1177 = vpop.permute.xlu0 %1176
      %v1178 = vsel %vm1000, %v1174, 0
      %v1180 = vsel %vm1000, %v1177, 0
      %1182 = vmatprep.subr.mxu0 0.0
      %1183 = vmatpush1.xpose.msra.mxu0 0.0
      %1184 = vmatprep.subr.mxu0 0.0
      %1185 = vmatpush1.xpose.msra.mxu0 0.0
      %1186 = vmatprep.subr.mxu0 0.0
      %1187 = vmatpush1.xpose.msra.mxu0 0.0
      %1188 = vmatprep.subr.mxu0 0.0
      %1189 = vmatpush1.xpose.msra.mxu0 0.0
      %1190 = vmatprep.subr.mxu0 0.0
      %1191 = vmatpush1.xpose.msra.mxu0 0.0
      %1192 = vmatprep.subr.mxu0 0.0
      %1193 = vmatpush1.xpose.msra.mxu0 0.0
      %1194 = vmatprep.subr.mxu0 0.0
      %1195 = vmatpush1.xpose.msra.mxu0 0.0
      %1196 = vmatprep.subr.mxu0 0.0
      %1197 = vmatpush1.xpose.msra.mxu0 0.0
      %1198 = vmatprep.subr.mxu0 0.0
      %1199 = vmatpush1.xpose.msra.mxu0 0.0
      %1200 = vmatprep.subr.mxu0 0.0
      %1201 = vmatpush1.xpose.msra.mxu0 0.0
      %1202 = vmatprep.subr.mxu0 0.0
      %1203 = vmatpush1.xpose.msra.mxu0 0.0
      %1204 = vmatprep.subr.mxu0 0.0
      %1205 = vmatpush1.xpose.msra.mxu0 0.0
      %1206 = vmatprep.subr.mxu0 0.0
      %1207 = vmatpush1.xpose.msra.mxu0 0.0
      %1208 = vmatprep.subr.mxu0 0.0
      %1209 = vmatpush1.xpose.msra.mxu0 0.0
      %1210 = vmatprep.subr.mxu0 0.0
      %1211 = vmatpush1.xpose.msra.mxu0 0.0
      %1212 = vmatprep.subr.mxu0 0.0
      %1213 = vmatpush1.xpose.msra.mxu0 %v1180
      %1214 = vmatprep.subr.mxu0 0.0
      %1215 = vmatpush2.xpose.msra.mxu0 0.0
      %1216 = vmatprep.subr.mxu0 0.0
      %1217 = vmatpush2.xpose.msra.mxu0 0.0
      %1218 = vmatprep.subr.mxu0 0.0
      %1219 = vmatpush2.xpose.msra.mxu0 0.0
      %1220 = vmatprep.subr.mxu0 0.0
      %1221 = vmatpush2.xpose.msra.mxu0 0.0
      %1222 = vmatprep.subr.mxu0 0.0
      %1223 = vmatpush2.xpose.msra.mxu0 0.0
      %1224 = vmatprep.subr.mxu0 0.0
      %1225 = vmatpush2.xpose.msra.mxu0 0.0
      %1226 = vmatprep.subr.mxu0 0.0
      %1227 = vmatpush2.xpose.msra.mxu0 0.0
      %1228 = vmatprep.subr.mxu0 0.0
      %1229 = vmatpush2.xpose.msra.mxu0 0.0
      %1230 = vmatprep.subr.mxu0 0.0
      %1231 = vmatpush2.xpose.msra.mxu0 0.0
      %1232 = vmatprep.subr.mxu0 0.0
      %1233 = vmatpush2.xpose.msra.mxu0 0.0
      %1234 = vmatprep.subr.mxu0 0.0
      %1235 = vmatpush2.xpose.msra.mxu0 0.0
      %1236 = vmatprep.subr.mxu0 0.0
      %1237 = vmatpush2.xpose.msra.mxu0 0.0
      %1238 = vmatprep.subr.mxu0 0.0
      %1239 = vmatpush2.xpose.msra.mxu0 0.0
      %1240 = vmatprep.subr.mxu0 0.0
      %1241 = vmatpush2.xpose.msra.mxu0 0.0
      %1242 = vmatprep.subr.mxu0 0.0
      %1243 = vmatpush2.xpose.msra.mxu0 0.0
      %1244 = vmatprep.subr.mxu0 0.0
      %1245 = vmatpush2.xpose.msra.mxu0 0.0
      %1246 = vmatprep.mubr.f32.mxu0 0.0
      %1247 = vmatmul.mubr.f32.gmra.mxu0 %v1178
      %v1248 = vpop.f32.mrf.mxu0
      %v1249 = vadd.f32 0.0, %v1248
      %v1250 = vpop.f32.mrf.mxu0
      %1251 = vdwg.mxu0
      %v1252 = vsel %vm1077, %v1249, -inf
      %1253 = vmax.xlane.f32.xlu0 %v1252
      %v1254 = vpop.xlane.xlu0 %1253
      %v1255 = vsub.f32 %v1249, %v1254
      %v1256 = vmul.f32 %v1255, 1.442695
      %v1257 = vpow.pop %v1256
      %v1258 = vsel %vm1077, %v1257, 0.0
      %1259 = vadd.xlane.f32.xlu0 %v1258
      %v1260 = vpop.xlane.xlu0 %1259
      %v1261 = vrcp.pop %v1260
      %v1262 = vmul.f32 %v1257, %v1261
      %1264 = vrot.lane.b32.xlu0 %v1171, 120
      %v1265 = vpop.permute.xlu0 %1264
      %v1267 = vsel %vm1089, %v1262, 0
      %v1269 = vsel %vm1093, %v1265, 0
      %1271 = vmatprep.subr.mxu0 0.0
      %1272 = vmatpush1.msra.mxu0 0.0
      %1273 = vmatprep.subr.mxu0 0.0
      %1274 = vmatpush1.msra.mxu0 0.0
      %1275 = vmatprep.subr.mxu0 0.0
      %1276 = vmatpush1.msra.mxu0 0.0
      %1277 = vmatprep.subr.mxu0 0.0
      %1278 = vmatpush1.msra.mxu0 0.0
      %1279 = vmatprep.subr.mxu0 0.0
      %1280 = vmatpush1.msra.mxu0 0.0
      %1281 = vmatprep.subr.mxu0 0.0
      %1282 = vmatpush1.msra.mxu0 0.0
      %1283 = vmatprep.subr.mxu0 0.0
      %1284 = vmatpush1.msra.mxu0 0.0
      %1285 = vmatprep.subr.mxu0 0.0
      %1286 = vmatpush1.msra.mxu0 0.0
      %1287 = vmatprep.subr.mxu0 0.0
      %1288 = vmatpush1.msra.mxu0 0.0
      %1289 = vmatprep.subr.mxu0 0.0
      %1290 = vmatpush1.msra.mxu0 0.0
      %1291 = vmatprep.subr.mxu0 0.0
      %1292 = vmatpush1.msra.mxu0 0.0
      %1293 = vmatprep.subr.mxu0 0.0
      %1294 = vmatpush1.msra.mxu0 0.0
      %1295 = vmatprep.subr.mxu0 0.0
      %1296 = vmatpush1.msra.mxu0 0.0
      %1297 = vmatprep.subr.mxu0 0.0
      %1298 = vmatpush1.msra.mxu0 0.0
      %1299 = vmatprep.subr.mxu0 0.0
      %1300 = vmatpush1.msra.mxu0 0.0
      %1301 = vmatprep.subr.mxu0 0.0
      %1302 = vmatpush1.msra.mxu0 %v1269
      %1303 = vmatprep.subr.mxu0 0.0
      %1304 = vmatpush2.msra.mxu0 0.0
      %1305 = vmatprep.subr.mxu0 0.0
      %1306 = vmatpush2.msra.mxu0 0.0
      %1307 = vmatprep.subr.mxu0 0.0
      %1308 = vmatpush2.msra.mxu0 0.0
      %1309 = vmatprep.subr.mxu0 0.0
      %1310 = vmatpush2.msra.mxu0 0.0
      %1311 = vmatprep.subr.mxu0 0.0
      %1312 = vmatpush2.msra.mxu0 0.0
      %1313 = vmatprep.subr.mxu0 0.0
      %1314 = vmatpush2.msra.mxu0 0.0
      %1315 = vmatprep.subr.mxu0 0.0
      %1316 = vmatpush2.msra.mxu0 0.0
      %1317 = vmatprep.subr.mxu0 0.0
      %1318 = vmatpush2.msra.mxu0 0.0
      %1319 = vmatprep.subr.mxu0 0.0
      %1320 = vmatpush2.msra.mxu0 0.0
      %1321 = vmatprep.subr.mxu0 0.0
      %1322 = vmatpush2.msra.mxu0 0.0
      %1323 = vmatprep.subr.mxu0 0.0
      %1324 = vmatpush2.msra.mxu0 0.0
      %1325 = vmatprep.subr.mxu0 0.0
      %1326 = vmatpush2.msra.mxu0 0.0
      %1327 = vmatprep.subr.mxu0 0.0
      %1328 = vmatpush2.msra.mxu0 0.0
      %1329 = vmatprep.subr.mxu0 0.0
      %1330 = vmatpush2.msra.mxu0 0.0
      %1331 = vmatprep.subr.mxu0 0.0
      %1332 = vmatpush2.msra.mxu0 0.0
      %1333 = vmatprep.subr.mxu0 0.0
      %1334 = vmatpush2.msra.mxu0 0.0
      %1335 = vmatprep.mubr.f32.mxu0 0.0
      %1336 = vmatmul.mubr.f32.gmra.mxu0 %v1267
      %v1337 = vpop.f32.mrf.mxu0
      %v1338 = vadd.f32 0.0, %v1337
      %v1339 = vpop.f32.mrf.mxu0
      %1340 = vdwg.mxu0
      %1342 = vrot.lane.b32.xlu0 %v1338, 8
      %v1343 = vpop.permute.xlu0 %1342
      %vm1345 = vcmask 127040
      %1346 = vst.msk [vmem:[#allocation6] sm:$0x1f] %vm1345, %v1343
      %v1347 = vld [vmem:[#allocation3] sm:$0x1f]
      %v1348 = vld [vmem:[#allocation4] sm:$0x1f]
      %v1349 = vld [vmem:[#allocation5] sm:$0x1f]
      %1351 = vrot.lane.b32.xlu0 %v1347, 112
      %v1352 = vpop.permute.xlu0 %1351
      %1354 = vrot.lane.b32.xlu0 %v1348, 112
      %v1355 = vpop.permute.xlu0 %1354
      %v1356 = vsel %vm1000, %v1352, 0
      %v1358 = vsel %vm1000, %v1355, 0
      %1360 = vmatprep.subr.mxu0 0.0
      %1361 = vmatpush1.xpose.msra.mxu0 0.0
      %1362 = vmatprep.subr.mxu0 0.0
      %1363 = vmatpush1.xpose.msra.mxu0 0.0
      %1364 = vmatprep.subr.mxu0 0.0
      %1365 = vmatpush1.xpose.msra.mxu0 0.0
      %1366 = vmatprep.subr.mxu0 0.0
      %1367 = vmatpush1.xpose.msra.mxu0 0.0
      %1368 = vmatprep.subr.mxu0 0.0
      %1369 = vmatpush1.xpose.msra.mxu0 0.0
      %1370 = vmatprep.subr.mxu0 0.0
      %1371 = vmatpush1.xpose.msra.mxu0 0.0
      %1372 = vmatprep.subr.mxu0 0.0
      %1373 = vmatpush1.xpose.msra.mxu0 0.0
      %1374 = vmatprep.subr.mxu0 0.0
      %1375 = vmatpush1.xpose.msra.mxu0 0.0
      %1376 = vmatprep.subr.mxu0 0.0
      %1377 = vmatpush1.xpose.msra.mxu0 0.0
      %1378 = vmatprep.subr.mxu0 0.0
      %1379 = vmatpush1.xpose.msra.mxu0 0.0
      %1380 = vmatprep.subr.mxu0 0.0
      %1381 = vmatpush1.xpose.msra.mxu0 0.0
      %1382 = vmatprep.subr.mxu0 0.0
      %1383 = vmatpush1.xpose.msra.mxu0 0.0
      %1384 = vmatprep.subr.mxu0 0.0
      %1385 = vmatpush1.xpose.msra.mxu0 0.0
      %1386 = vmatprep.subr.mxu0 0.0
      %1387 = vmatpush1.xpose.msra.mxu0 0.0
      %1388 = vmatprep.subr.mxu0 0.0
      %1389 = vmatpush1.xpose.msra.mxu0 0.0
      %1390 = vmatprep.subr.mxu0 0.0
      %1391 = vmatpush1.xpose.msra.mxu0 %v1358
      %1392 = vmatprep.subr.mxu0 0.0
      %1393 = vmatpush2.xpose.msra.mxu0 0.0
      %1394 = vmatprep.subr.mxu0 0.0
      %1395 = vmatpush2.xpose.msra.mxu0 0.0
      %1396 = vmatprep.subr.mxu0 0.0
      %1397 = vmatpush2.xpose.msra.mxu0 0.0
      %1398 = vmatprep.subr.mxu0 0.0
      %1399 = vmatpush2.xpose.msra.mxu0 0.0
      %1400 = vmatprep.subr.mxu0 0.0
      %1401 = vmatpush2.xpose.msra.mxu0 0.0
      %1402 = vmatprep.subr.mxu0 0.0
      %1403 = vmatpush2.xpose.msra.mxu0 0.0
      %1404 = vmatprep.subr.mxu0 0.0
      %1405 = vmatpush2.xpose.msra.mxu0 0.0
      %1406 = vmatprep.subr.mxu0 0.0
      %1407 = vmatpush2.xpose.msra.mxu0 0.0
      %1408 = vmatprep.subr.mxu0 0.0
      %1409 = vmatpush2.xpose.msra.mxu0 0.0
      %1410 = vmatprep.subr.mxu0 0.0
      %1411 = vmatpush2.xpose.msra.mxu0 0.0
      %1412 = vmatprep.subr.mxu0 0.0
      %1413 = vmatpush2.xpose.msra.mxu0 0.0
      %1414 = vmatprep.subr.mxu0 0.0
      %1415 = vmatpush2.xpose.msra.mxu0 0.0
      %1416 = vmatprep.subr.mxu0 0.0
      %1417 = vmatpush2.xpose.msra.mxu0 0.0
      %1418 = vmatprep.subr.mxu0 0.0
      %1419 = vmatpush2.xpose.msra.mxu0 0.0
      %1420 = vmatprep.subr.mxu0 0.0
      %1421 = vmatpush2.xpose.msra.mxu0 0.0
      %1422 = vmatprep.subr.mxu0 0.0
      %1423 = vmatpush2.xpose.msra.mxu0 0.0
      %1424 = vmatprep.mubr.f32.mxu0 0.0
      %1425 = vmatmul.mubr.f32.gmra.mxu0 %v1356
      %v1426 = vpop.f32.mrf.mxu0
      %v1427 = vadd.f32 0.0, %v1426
      %v1428 = vpop.f32.mrf.mxu0
      %1429 = vdwg.mxu0
      %v1430 = vsel %vm1077, %v1427, -inf
      %1431 = vmax.xlane.f32.xlu0 %v1430
      %v1432 = vpop.xlane.xlu0 %1431
      %v1433 = vsub.f32 %v1427, %v1432
      %v1434 = vmul.f32 %v1433, 1.442695
      %v1435 = vpow.pop %v1434
      %v1436 = vsel %vm1077, %v1435, 0.0
      %1437 = vadd.xlane.f32.xlu0 %v1436
      %v1438 = vpop.xlane.xlu0 %1437
      %v1439 = vrcp.pop %v1438
      %v1440 = vmul.f32 %v1435, %v1439
      %1442 = vrot.lane.b32.xlu0 %v1349, 112
      %v1443 = vpop.permute.xlu0 %1442
      %v1445 = vsel %vm1089, %v1440, 0
      %v1447 = vsel %vm1093, %v1443, 0
      %1449 = vmatprep.subr.mxu0 0.0
      %1450 = vmatpush1.msra.mxu0 0.0
      %1451 = vmatprep.subr.mxu0 0.0
      %1452 = vmatpush1.msra.mxu0 0.0
      %1453 = vmatprep.subr.mxu0 0.0
      %1454 = vmatpush1.msra.mxu0 0.0
      %1455 = vmatprep.subr.mxu0 0.0
      %1456 = vmatpush1.msra.mxu0 0.0
      %1457 = vmatprep.subr.mxu0 0.0
      %1458 = vmatpush1.msra.mxu0 0.0
      %1459 = vmatprep.subr.mxu0 0.0
      %1460 = vmatpush1.msra.mxu0 0.0
      %1461 = vmatprep.subr.mxu0 0.0
      %1462 = vmatpush1.msra.mxu0 0.0
      %1463 = vmatprep.subr.mxu0 0.0
      %1464 = vmatpush1.msra.mxu0 0.0
      %1465 = vmatprep.subr.mxu0 0.0
      %1466 = vmatpush1.msra.mxu0 0.0
      %1467 = vmatprep.subr.mxu0 0.0
      %1468 = vmatpush1.msra.mxu0 0.0
      %1469 = vmatprep.subr.mxu0 0.0
      %1470 = vmatpush1.msra.mxu0 0.0
      %1471 = vmatprep.subr.mxu0 0.0
      %1472 = vmatpush1.msra.mxu0 0.0
      %1473 = vmatprep.subr.mxu0 0.0
      %1474 = vmatpush1.msra.mxu0 0.0
      %1475 = vmatprep.subr.mxu0 0.0
      %1476 = vmatpush1.msra.mxu0 0.0
      %1477 = vmatprep.subr.mxu0 0.0
      %1478 = vmatpush1.msra.mxu0 0.0
      %1479 = vmatprep.subr.mxu0 0.0
      %1480 = vmatpush1.msra.mxu0 %v1447
      %1481 = vmatprep.subr.mxu0 0.0
      %1482 = vmatpush2.msra.mxu0 0.0
      %1483 = vmatprep.subr.mxu0 0.0
      %1484 = vmatpush2.msra.mxu0 0.0
      %1485 = vmatprep.subr.mxu0 0.0
      %1486 = vmatpush2.msra.mxu0 0.0
      %1487 = vmatprep.subr.mxu0 0.0
      %1488 = vmatpush2.msra.mxu0 0.0
      %1489 = vmatprep.subr.mxu0 0.0
      %1490 = vmatpush2.msra.mxu0 0.0
      %1491 = vmatprep.subr.mxu0 0.0
      %1492 = vmatpush2.msra.mxu0 0.0
      %1493 = vmatprep.subr.mxu0 0.0
      %1494 = vmatpush2.msra.mxu0 0.0
      %1495 = vmatprep.subr.mxu0 0.0
      %1496 = vmatpush2.msra.mxu0 0.0
      %1497 = vmatprep.subr.mxu0 0.0
      %1498 = vmatpush2.msra.mxu0 0.0
      %1499 = vmatprep.subr.mxu0 0.0
      %1500 = vmatpush2.msra.mxu0 0.0
      %1501 = vmatprep.subr.mxu0 0.0
      %1502 = vmatpush2.msra.mxu0 0.0
      %1503 = vmatprep.subr.mxu0 0.0
      %1504 = vmatpush2.msra.mxu0 0.0
      %1505 = vmatprep.subr.mxu0 0.0
      %1506 = vmatpush2.msra.mxu0 0.0
      %1507 = vmatprep.subr.mxu0 0.0
      %1508 = vmatpush2.msra.mxu0 0.0
      %1509 = vmatprep.subr.mxu0 0.0
      %1510 = vmatpush2.msra.mxu0 0.0
      %1511 = vmatprep.subr.mxu0 0.0
      %1512 = vmatpush2.msra.mxu0 0.0
      %1513 = vmatprep.mubr.f32.mxu0 0.0
      %1514 = vmatmul.mubr.f32.gmra.mxu0 %v1445
      %v1515 = vpop.f32.mrf.mxu0
      %v1516 = vadd.f32 0.0, %v1515
      %v1517 = vpop.f32.mrf.mxu0
      %1518 = vdwg.mxu0
      %1520 = vrot.lane.b32.xlu0 %v1516, 16
      %v1521 = vpop.permute.xlu0 %1520
      %vm1523 = vcmask 192640
      %1524 = vst.msk [vmem:[#allocation6] sm:$0x1f] %vm1523, %v1521
      %v1525 = vld [vmem:[#allocation3] sm:$0x1f]
      %v1526 = vld [vmem:[#allocation4] sm:$0x1f]
      %v1527 = vld [vmem:[#allocation5] sm:$0x1f]
      %1529 = vrot.lane.b32.xlu0 %v1525, 104
      %v1530 = vpop.permute.xlu0 %1529
      %1532 = vrot.lane.b32.xlu0 %v1526, 104
      %v1533 = vpop.permute.xlu0 %1532
      %v1534 = vsel %vm1000, %v1530, 0
      %v1536 = vsel %vm1000, %v1533, 0
      %1538 = vmatprep.subr.mxu0 0.0
      %1539 = vmatpush1.xpose.msra.mxu0 0.0
      %1540 = vmatprep.subr.mxu0 0.0
      %1541 = vmatpush1.xpose.msra.mxu0 0.0
      %1542 = vmatprep.subr.mxu0 0.0
      %1543 = vmatpush1.xpose.msra.mxu0 0.0
      %1544 = vmatprep.subr.mxu0 0.0
      %1545 = vmatpush1.xpose.msra.mxu0 0.0
      %1546 = vmatprep.subr.mxu0 0.0
      %1547 = vmatpush1.xpose.msra.mxu0 0.0
      %1548 = vmatprep.subr.mxu0 0.0
      %1549 = vmatpush1.xpose.msra.mxu0 0.0
      %1550 = vmatprep.subr.mxu0 0.0
      %1551 = vmatpush1.xpose.msra.mxu0 0.0
      %1552 = vmatprep.subr.mxu0 0.0
      %1553 = vmatpush1.xpose.msra.mxu0 0.0
      %1554 = vmatprep.subr.mxu0 0.0
      %1555 = vmatpush1.xpose.msra.mxu0 0.0
      %1556 = vmatprep.subr.mxu0 0.0
      %1557 = vmatpush1.xpose.msra.mxu0 0.0
      %1558 = vmatprep.subr.mxu0 0.0
      %1559 = vmatpush1.xpose.msra.mxu0 0.0
      %1560 = vmatprep.subr.mxu0 0.0
      %1561 = vmatpush1.xpose.msra.mxu0 0.0
      %1562 = vmatprep.subr.mxu0 0.0
      %1563 = vmatpush1.xpose.msra.mxu0 0.0
      %1564 = vmatprep.subr.mxu0 0.0
      %1565 = vmatpush1.xpose.msra.mxu0 0.0
      %1566 = vmatprep.subr.mxu0 0.0
      %1567 = vmatpush1.xpose.msra.mxu0 0.0
      %1568 = vmatprep.subr.mxu0 0.0
      %1569 = vmatpush1.xpose.msra.mxu0 %v1536
      %1570 = vmatprep.subr.mxu0 0.0
      %1571 = vmatpush2.xpose.msra.mxu0 0.0
      %1572 = vmatprep.subr.mxu0 0.0
      %1573 = vmatpush2.xpose.msra.mxu0 0.0
      %1574 = vmatprep.subr.mxu0 0.0
      %1575 = vmatpush2.xpose.msra.mxu0 0.0
      %1576 = vmatprep.subr.mxu0 0.0
      %1577 = vmatpush2.xpose.msra.mxu0 0.0
      %1578 = vmatprep.subr.mxu0 0.0
      %1579 = vmatpush2.xpose.msra.mxu0 0.0
      %1580 = vmatprep.subr.mxu0 0.0
      %1581 = vmatpush2.xpose.msra.mxu0 0.0
      %1582 = vmatprep.subr.mxu0 0.0
      %1583 = vmatpush2.xpose.msra.mxu0 0.0
      %1584 = vmatprep.subr.mxu0 0.0
      %1585 = vmatpush2.xpose.msra.mxu0 0.0
      %1586 = vmatprep.subr.mxu0 0.0
      %1587 = vmatpush2.xpose.msra.mxu0 0.0
      %1588 = vmatprep.subr.mxu0 0.0
      %1589 = vmatpush2.xpose.msra.mxu0 0.0
      %1590 = vmatprep.subr.mxu0 0.0
      %1591 = vmatpush2.xpose.msra.mxu0 0.0
      %1592 = vmatprep.subr.mxu0 0.0
      %1593 = vmatpush2.xpose.msra.mxu0 0.0
      %1594 = vmatprep.subr.mxu0 0.0
      %1595 = vmatpush2.xpose.msra.mxu0 0.0
      %1596 = vmatprep.subr.mxu0 0.0
      %1597 = vmatpush2.xpose.msra.mxu0 0.0
      %1598 = vmatprep.subr.mxu0 0.0
      %1599 = vmatpush2.xpose.msra.mxu0 0.0
      %1600 = vmatprep.subr.mxu0 0.0
      %1601 = vmatpush2.xpose.msra.mxu0 0.0
      %1602 = vmatprep.mubr.f32.mxu0 0.0
      %1603 = vmatmul.mubr.f32.gmra.mxu0 %v1534
      %v1604 = vpop.f32.mrf.mxu0
      %v1605 = vadd.f32 0.0, %v1604
      %v1606 = vpop.f32.mrf.mxu0
      %1607 = vdwg.mxu0
      %v1608 = vsel %vm1077, %v1605, -inf
      %1609 = vmax.xlane.f32.xlu0 %v1608
      %v1610 = vpop.xlane.xlu0 %1609
      %v1611 = vsub.f32 %v1605, %v1610
      %v1612 = vmul.f32 %v1611, 1.442695
      %v1613 = vpow.pop %v1612
      %v1614 = vsel %vm1077, %v1613, 0.0
      %1615 = vadd.xlane.f32.xlu0 %v1614
      %v1616 = vpop.xlane.xlu0 %1615
      %v1617 = vrcp.pop %v1616
      %v1618 = vmul.f32 %v1613, %v1617
      %1620 = vrot.lane.b32.xlu0 %v1527, 104
      %v1621 = vpop.permute.xlu0 %1620
      %v1623 = vsel %vm1089, %v1618, 0
      %v1625 = vsel %vm1093, %v1621, 0
      %1627 = vmatprep.subr.mxu0 0.0
      %1628 = vmatpush1.msra.mxu0 0.0
      %1629 = vmatprep.subr.mxu0 0.0
      %1630 = vmatpush1.msra.mxu0 0.0
      %1631 = vmatprep.subr.mxu0 0.0
      %1632 = vmatpush1.msra.mxu0 0.0
      %1633 = vmatprep.subr.mxu0 0.0
      %1634 = vmatpush1.msra.mxu0 0.0
      %1635 = vmatprep.subr.mxu0 0.0
      %1636 = vmatpush1.msra.mxu0 0.0
      %1637 = vmatprep.subr.mxu0 0.0
      %1638 = vmatpush1.msra.mxu0 0.0
      %1639 = vmatprep.subr.mxu0 0.0
      %1640 = vmatpush1.msra.mxu0 0.0
      %1641 = vmatprep.subr.mxu0 0.0
      %1642 = vmatpush1.msra.mxu0 0.0
      %1643 = vmatprep.subr.mxu0 0.0
      %1644 = vmatpush1.msra.mxu0 0.0
      %1645 = vmatprep.subr.mxu0 0.0
      %1646 = vmatpush1.msra.mxu0 0.0
      %1647 = vmatprep.subr.mxu0 0.0
      %1648 = vmatpush1.msra.mxu0 0.0
      %1649 = vmatprep.subr.mxu0 0.0
      %1650 = vmatpush1.msra.mxu0 0.0
      %1651 = vmatprep.subr.mxu0 0.0
      %1652 = vmatpush1.msra.mxu0 0.0
      %1653 = vmatprep.subr.mxu0 0.0
      %1654 = vmatpush1.msra.mxu0 0.0
      %1655 = vmatprep.subr.mxu0 0.0
      %1656 = vmatpush1.msra.mxu0 0.0
      %1657 = vmatprep.subr.mxu0 0.0
      %1658 = vmatpush1.msra.mxu0 %v1625
      %1659 = vmatprep.subr.mxu0 0.0
      %1660 = vmatpush2.msra.mxu0 0.0
      %1661 = vmatprep.subr.mxu0 0.0
      %1662 = vmatpush2.msra.mxu0 0.0
      %1663 = vmatprep.subr.mxu0 0.0
      %1664 = vmatpush2.msra.mxu0 0.0
      %1665 = vmatprep.subr.mxu0 0.0
      %1666 = vmatpush2.msra.mxu0 0.0
      %1667 = vmatprep.subr.mxu0 0.0
      %1668 = vmatpush2.msra.mxu0 0.0
      %1669 = vmatprep.subr.mxu0 0.0
      %1670 = vmatpush2.msra.mxu0 0.0
      %1671 = vmatprep.subr.mxu0 0.0
      %1672 = vmatpush2.msra.mxu0 0.0
      %1673 = vmatprep.subr.mxu0 0.0
      %1674 = vmatpush2.msra.mxu0 0.0
      %1675 = vmatprep.subr.mxu0 0.0
      %1676 = vmatpush2.msra.mxu0 0.0
      %1677 = vmatprep.subr.mxu0 0.0
      %1678 = vmatpush2.msra.mxu0 0.0
      %1679 = vmatprep.subr.mxu0 0.0
      %1680 = vmatpush2.msra.mxu0 0.0
      %1681 = vmatprep.subr.mxu0 0.0
      %1682 = vmatpush2.msra.mxu0 0.0
      %1683 = vmatprep.subr.mxu0 0.0
      %1684 = vmatpush2.msra.mxu0 0.0
      %1685 = vmatprep.subr.mxu0 0.0
      %1686 = vmatpush2.msra.mxu0 0.0
      %1687 = vmatprep.subr.mxu0 0.0
      %1688 = vmatpush2.msra.mxu0 0.0
      %1689 = vmatprep.subr.mxu0 0.0
      %1690 = vmatpush2.msra.mxu0 0.0
      %1691 = vmatprep.mubr.f32.mxu0 0.0
      %1692 = vmatmul.mubr.f32.gmra.mxu0 %v1623
      %v1693 = vpop.f32.mrf.mxu0
      %v1694 = vadd.f32 0.0, %v1693
      %v1695 = vpop.f32.mrf.mxu0
      %1696 = vdwg.mxu0
      %1698 = vrot.lane.b32.xlu0 %v1694, 24
      %v1699 = vpop.permute.xlu0 %1698
      %vm1701 = vcmask 258240
      %1702 = vst.msk [vmem:[#allocation6] sm:$0x1f] %vm1701, %v1699
      %v1703 = vld [vmem:[#allocation3 + $0x5] sm:$0x1f]
      %v1704 = vld [vmem:[#allocation4 + $0x5] sm:$0x1f]
      %v1705 = vld [vmem:[#allocation5 + $0x5] sm:$0x1f]
      %v1707 = vsel %vm1000, %v1703, 0
      %v1710 = vsel %vm1000, %v1704, 0
      %1712 = vmatprep.subr.mxu0 0.0
      %1713 = vmatpush1.xpose.msra.mxu0 0.0
      %1714 = vmatprep.subr.mxu0 0.0
      %1715 = vmatpush1.xpose.msra.mxu0 0.0
      %1716 = vmatprep.subr.mxu0 0.0
      %1717 = vmatpush1.xpose.msra.mxu0 0.0
      %1718 = vmatprep.subr.mxu0 0.0
      %1719 = vmatpush1.xpose.msra.mxu0 0.0
      %1720 = vmatprep.subr.mxu0 0.0
      %1721 = vmatpush1.xpose.msra.mxu0 0.0
      %1722 = vmatprep.subr.mxu0 0.0
      %1723 = vmatpush1.xpose.msra.mxu0 0.0
      %1724 = vmatprep.subr.mxu0 0.0
      %1725 = vmatpush1.xpose.msra.mxu0 0.0
      %1726 = vmatprep.subr.mxu0 0.0
      %1727 = vmatpush1.xpose.msra.mxu0 0.0
      %1728 = vmatprep.subr.mxu0 0.0
      %1729 = vmatpush1.xpose.msra.mxu0 0.0
      %1730 = vmatprep.subr.mxu0 0.0
      %1731 = vmatpush1.xpose.msra.mxu0 0.0
      %1732 = vmatprep.subr.mxu0 0.0
      %1733 = vmatpush1.xpose.msra.mxu0 0.0
      %1734 = vmatprep.subr.mxu0 0.0
      %1735 = vmatpush1.xpose.msra.mxu0 0.0
      %1736 = vmatprep.subr.mxu0 0.0
      %1737 = vmatpush1.xpose.msra.mxu0 0.0
      %1738 = vmatprep.subr.mxu0 0.0
      %1739 = vmatpush1.xpose.msra.mxu0 0.0
      %1740 = vmatprep.subr.mxu0 0.0
      %1741 = vmatpush1.xpose.msra.mxu0 0.0
      %1742 = vmatprep.subr.mxu0 0.0
      %1743 = vmatpush1.xpose.msra.mxu0 %v1710
      %1744 = vmatprep.subr.mxu0 0.0
      %1745 = vmatpush2.xpose.msra.mxu0 0.0
      %1746 = vmatprep.subr.mxu0 0.0
      %1747 = vmatpush2.xpose.msra.mxu0 0.0
      %1748 = vmatprep.subr.mxu0 0.0
      %1749 = vmatpush2.xpose.msra.mxu0 0.0
      %1750 = vmatprep.subr.mxu0 0.0
      %1751 = vmatpush2.xpose.msra.mxu0 0.0
      %1752 = vmatprep.subr.mxu0 0.0
      %1753 = vmatpush2.xpose.msra.mxu0 0.0
      %1754 = vmatprep.subr.mxu0 0.0
      %1755 = vmatpush2.xpose.msra.mxu0 0.0
      %1756 = vmatprep.subr.mxu0 0.0
      %1757 = vmatpush2.xpose.msra.mxu0 0.0
      %1758 = vmatprep.subr.mxu0 0.0
      %1759 = vmatpush2.xpose.msra.mxu0 0.0
      %1760 = vmatprep.subr.mxu0 0.0
      %1761 = vmatpush2.xpose.msra.mxu0 0.0
      %1762 = vmatprep.subr.mxu0 0.0
      %1763 = vmatpush2.xpose.msra.mxu0 0.0
      %1764 = vmatprep.subr.mxu0 0.0
      %1765 = vmatpush2.xpose.msra.mxu0 0.0
      %1766 = vmatprep.subr.mxu0 0.0
      %1767 = vmatpush2.xpose.msra.mxu0 0.0
      %1768 = vmatprep.subr.mxu0 0.0
      %1769 = vmatpush2.xpose.msra.mxu0 0.0
      %1770 = vmatprep.subr.mxu0 0.0
      %1771 = vmatpush2.xpose.msra.mxu0 0.0
      %1772 = vmatprep.subr.mxu0 0.0
      %1773 = vmatpush2.xpose.msra.mxu0 0.0
      %1774 = vmatprep.subr.mxu0 0.0
      %1775 = vmatpush2.xpose.msra.mxu0 0.0
      %1776 = vmatprep.mubr.f32.mxu0 0.0
      %1777 = vmatmul.mubr.f32.gmra.mxu0 %v1707
      %v1778 = vpop.f32.mrf.mxu0
      %v1779 = vadd.f32 0.0, %v1778
      %v1780 = vpop.f32.mrf.mxu0
      %1781 = vdwg.mxu0
      %v1782 = vsel %vm1077, %v1779, -inf
      %1783 = vmax.xlane.f32.xlu0 %v1782
      %v1784 = vpop.xlane.xlu0 %1783
      %v1785 = vsub.f32 %v1779, %v1784
      %v1786 = vmul.f32 %v1785, 1.442695
      %v1787 = vpow.pop %v1786
      %v1788 = vsel %vm1077, %v1787, 0.0
      %1789 = vadd.xlane.f32.xlu0 %v1788
      %v1790 = vpop.xlane.xlu0 %1789
      %v1791 = vrcp.pop %v1790
      %v1792 = vmul.f32 %v1787, %v1791
      %v1794 = vsel %vm1089, %v1792, 0
      %v1797 = vsel %vm1093, %v1705, 0
      %1799 = vmatprep.subr.mxu0 0.0
      %1800 = vmatpush1.msra.mxu0 0.0
      %1801 = vmatprep.subr.mxu0 0.0
      %1802 = vmatpush1.msra.mxu0 0.0
      %1803 = vmatprep.subr.mxu0 0.0
      %1804 = vmatpush1.msra.mxu0 0.0
      %1805 = vmatprep.subr.mxu0 0.0
      %1806 = vmatpush1.msra.mxu0 0.0
      %1807 = vmatprep.subr.mxu0 0.0
      %1808 = vmatpush1.msra.mxu0 0.0
      %1809 = vmatprep.subr.mxu0 0.0
      %1810 = vmatpush1.msra.mxu0 0.0
      %1811 = vmatprep.subr.mxu0 0.0
      %1812 = vmatpush1.msra.mxu0 0.0
      %1813 = vmatprep.subr.mxu0 0.0
      %1814 = vmatpush1.msra.mxu0 0.0
      %1815 = vmatprep.subr.mxu0 0.0
      %1816 = vmatpush1.msra.mxu0 0.0
      %1817 = vmatprep.subr.mxu0 0.0
      %1818 = vmatpush1.msra.mxu0 0.0
      %1819 = vmatprep.subr.mxu0 0.0
      %1820 = vmatpush1.msra.mxu0 0.0
      %1821 = vmatprep.subr.mxu0 0.0
      %1822 = vmatpush1.msra.mxu0 0.0
      %1823 = vmatprep.subr.mxu0 0.0
      %1824 = vmatpush1.msra.mxu0 0.0
      %1825 = vmatprep.subr.mxu0 0.0
      %1826 = vmatpush1.msra.mxu0 0.0
      %1827 = vmatprep.subr.mxu0 0.0
      %1828 = vmatpush1.msra.mxu0 0.0
      %1829 = vmatprep.subr.mxu0 0.0
      %1830 = vmatpush1.msra.mxu0 %v1797
      %1831 = vmatprep.subr.mxu0 0.0
      %1832 = vmatpush2.msra.mxu0 0.0
      %1833 = vmatprep.subr.mxu0 0.0
      %1834 = vmatpush2.msra.mxu0 0.0
      %1835 = vmatprep.subr.mxu0 0.0
      %1836 = vmatpush2.msra.mxu0 0.0
      %1837 = vmatprep.subr.mxu0 0.0
      %1838 = vmatpush2.msra.mxu0 0.0
      %1839 = vmatprep.subr.mxu0 0.0
      %1840 = vmatpush2.msra.mxu0 0.0
      %1841 = vmatprep.subr.mxu0 0.0
      %1842 = vmatpush2.msra.mxu0 0.0
      %1843 = vmatprep.subr.mxu0 0.0
      %1844 = vmatpush2.msra.mxu0 0.0
      %1845 = vmatprep.subr.mxu0 0.0
      %1846 = vmatpush2.msra.mxu0 0.0
      %1847 = vmatprep.subr.mxu0 0.0
      %1848 = vmatpush2.msra.mxu0 0.0
      %1849 = vmatprep.subr.mxu0 0.0
      %1850 = vmatpush2.msra.mxu0 0.0
      %1851 = vmatprep.subr.mxu0 0.0
      %1852 = vmatpush2.msra.mxu0 0.0
      %1853 = vmatprep.subr.mxu0 0.0
      %1854 = vmatpush2.msra.mxu0 0.0
      %1855 = vmatprep.subr.mxu0 0.0
      %1856 = vmatpush2.msra.mxu0 0.0
      %1857 = vmatprep.subr.mxu0 0.0
      %1858 = vmatpush2.msra.mxu0 0.0
      %1859 = vmatprep.subr.mxu0 0.0
      %1860 = vmatpush2.msra.mxu0 0.0
      %1861 = vmatprep.subr.mxu0 0.0
      %1862 = vmatpush2.msra.mxu0 0.0
      %1863 = vmatprep.mubr.f32.mxu0 0.0
      %1864 = vmatmul.mubr.f32.gmra.mxu0 %v1794
      %v1865 = vpop.f32.mrf.mxu0
      %v1866 = vadd.f32 0.0, %v1865
      %v1867 = vpop.f32.mrf.mxu0
      %1868 = vdwg.mxu0
      %1869 = vst.msk [vmem:[#allocation6 + $0x5] sm:$0x1f] %vm1167, %v1866
      %v1870 = vld [vmem:[#allocation3 + $0x5] sm:$0x1f]
      %v1871 = vld [vmem:[#allocation4 + $0x5] sm:$0x1f]
      %v1872 = vld [vmem:[#allocation5 + $0x5] sm:$0x1f]
      %1874 = vrot.lane.b32.xlu0 %v1870, 120
      %v1875 = vpop.permute.xlu0 %1874
      %1877 = vrot.lane.b32.xlu0 %v1871, 120
      %v1878 = vpop.permute.xlu0 %1877
      %v1879 = vsel %vm1000, %v1875, 0
      %v1881 = vsel %vm1000, %v1878, 0
      %1883 = vmatprep.subr.mxu0 0.0
      %1884 = vmatpush1.xpose.msra.mxu0 0.0
      %1885 = vmatprep.subr.mxu0 0.0
      %1886 = vmatpush1.xpose.msra.mxu0 0.0
      %1887 = vmatprep.subr.mxu0 0.0
      %1888 = vmatpush1.xpose.msra.mxu0 0.0
      %1889 = vmatprep.subr.mxu0 0.0
      %1890 = vmatpush1.xpose.msra.mxu0 0.0
      %1891 = vmatprep.subr.mxu0 0.0
      %1892 = vmatpush1.xpose.msra.mxu0 0.0
      %1893 = vmatprep.subr.mxu0 0.0
      %1894 = vmatpush1.xpose.msra.mxu0 0.0
      %1895 = vmatprep.subr.mxu0 0.0
      %1896 = vmatpush1.xpose.msra.mxu0 0.0
      %1897 = vmatprep.subr.mxu0 0.0
      %1898 = vmatpush1.xpose.msra.mxu0 0.0
      %1899 = vmatprep.subr.mxu0 0.0
      %1900 = vmatpush1.xpose.msra.mxu0 0.0
      %1901 = vmatprep.subr.mxu0 0.0
      %1902 = vmatpush1.xpose.msra.mxu0 0.0
      %1903 = vmatprep.subr.mxu0 0.0
      %1904 = vmatpush1.xpose.msra.mxu0 0.0
      %1905 = vmatprep.subr.mxu0 0.0
      %1906 = vmatpush1.xpose.msra.mxu0 0.0
      %1907 = vmatprep.subr.mxu0 0.0
      %1908 = vmatpush1.xpose.msra.mxu0 0.0
      %1909 = vmatprep.subr.mxu0 0.0
      %1910 = vmatpush1.xpose.msra.mxu0 0.0
      %1911 = vmatprep.subr.mxu0 0.0
      %1912 = vmatpush1.xpose.msra.mxu0 0.0
      %1913 = vmatprep.subr.mxu0 0.0
      %1914 = vmatpush1.xpose.msra.mxu0 %v1881
      %1915 = vmatprep.subr.mxu0 0.0
      %1916 = vmatpush2.xpose.msra.mxu0 0.0
      %1917 = vmatprep.subr.mxu0 0.0
      %1918 = vmatpush2.xpose.msra.mxu0 0.0
      %1919 = vmatprep.subr.mxu0 0.0
      %1920 = vmatpush2.xpose.msra.mxu0 0.0
      %1921 = vmatprep.subr.mxu0 0.0
      %1922 = vmatpush2.xpose.msra.mxu0 0.0
      %1923 = vmatprep.subr.mxu0 0.0
      %1924 = vmatpush2.xpose.msra.mxu0 0.0
      %1925 = vmatprep.subr.mxu0 0.0
      %1926 = vmatpush2.xpose.msra.mxu0 0.0
      %1927 = vmatprep.subr.mxu0 0.0
      %1928 = vmatpush2.xpose.msra.mxu0 0.0
      %1929 = vmatprep.subr.mxu0 0.0
      %1930 = vmatpush2.xpose.msra.mxu0 0.0
      %1931 = vmatprep.subr.mxu0 0.0
      %1932 = vmatpush2.xpose.msra.mxu0 0.0
      %1933 = vmatprep.subr.mxu0 0.0
      %1934 = vmatpush2.xpose.msra.mxu0 0.0
      %1935 = vmatprep.subr.mxu0 0.0
      %1936 = vmatpush2.xpose.msra.mxu0 0.0
      %1937 = vmatprep.subr.mxu0 0.0
      %1938 = vmatpush2.xpose.msra.mxu0 0.0
      %1939 = vmatprep.subr.mxu0 0.0
      %1940 = vmatpush2.xpose.msra.mxu0 0.0
      %1941 = vmatprep.subr.mxu0 0.0
      %1942 = vmatpush2.xpose.msra.mxu0 0.0
      %1943 = vmatprep.subr.mxu0 0.0
      %1944 = vmatpush2.xpose.msra.mxu0 0.0
      %1945 = vmatprep.subr.mxu0 0.0
      %1946 = vmatpush2.xpose.msra.mxu0 0.0
      %1947 = vmatprep.mubr.f32.mxu0 0.0
      %1948 = vmatmul.mubr.f32.gmra.mxu0 %v1879
      %v1949 = vpop.f32.mrf.mxu0
      %v1950 = vadd.f32 0.0, %v1949
      %v1951 = vpop.f32.mrf.mxu0
      %1952 = vdwg.mxu0
      %v1953 = vsel %vm1077, %v1950, -inf
      %1954 = vmax.xlane.f32.xlu0 %v1953
      %v1955 = vpop.xlane.xlu0 %1954
      %v1956 = vsub.f32 %v1950, %v1955
      %v1957 = vmul.f32 %v1956, 1.442695
      %v1958 = vpow.pop %v1957
      %v1959 = vsel %vm1077, %v1958, 0.0
      %1960 = vadd.xlane.f32.xlu0 %v1959
      %v1961 = vpop.xlane.xlu0 %1960
      %v1962 = vrcp.pop %v1961
      %v1963 = vmul.f32 %v1958, %v1962
      %1965 = vrot.lane.b32.xlu0 %v1872, 120
      %v1966 = vpop.permute.xlu0 %1965
      %v1968 = vsel %vm1089, %v1963, 0
      %v1970 = vsel %vm1093, %v1966, 0
      %1972 = vmatprep.subr.mxu0 0.0
      %1973 = vmatpush1.msra.mxu0 0.0
      %1974 = vmatprep.subr.mxu0 0.0
      %1975 = vmatpush1.msra.mxu0 0.0
      %1976 = vmatprep.subr.mxu0 0.0
      %1977 = vmatpush1.msra.mxu0 0.0
      %1978 = vmatprep.subr.mxu0 0.0
      %1979 = vmatpush1.msra.mxu0 0.0
      %1980 = vmatprep.subr.mxu0 0.0
      %1981 = vmatpush1.msra.mxu0 0.0
      %1982 = vmatprep.subr.mxu0 0.0
      %1983 = vmatpush1.msra.mxu0 0.0
      %1984 = vmatprep.subr.mxu0 0.0
      %1985 = vmatpush1.msra.mxu0 0.0
      %1986 = vmatprep.subr.mxu0 0.0
      %1987 = vmatpush1.msra.mxu0 0.0
      %1988 = vmatprep.subr.mxu0 0.0
      %1989 = vmatpush1.msra.mxu0 0.0
      %1990 = vmatprep.subr.mxu0 0.0
      %1991 = vmatpush1.msra.mxu0 0.0
      %1992 = vmatprep.subr.mxu0 0.0
      %1993 = vmatpush1.msra.mxu0 0.0
      %1994 = vmatprep.subr.mxu0 0.0
      %1995 = vmatpush1.msra.mxu0 0.0
      %1996 = vmatprep.subr.mxu0 0.0
      %1997 = vmatpush1.msra.mxu0 0.0
      %1998 = vmatprep.subr.mxu0 0.0
      %1999 = vmatpush1.msra.mxu0 0.0
      %2000 = vmatprep.subr.mxu0 0.0
      %2001 = vmatpush1.msra.mxu0 0.0
      %2002 = vmatprep.subr.mxu0 0.0
      %2003 = vmatpush1.msra.mxu0 %v1970
      %2004 = vmatprep.subr.mxu0 0.0
      %2005 = vmatpush2.msra.mxu0 0.0
      %2006 = vmatprep.subr.mxu0 0.0
      %2007 = vmatpush2.msra.mxu0 0.0
      %2008 = vmatprep.subr.mxu0 0.0
      %2009 = vmatpush2.msra.mxu0 0.0
      %2010 = vmatprep.subr.mxu0 0.0
      %2011 = vmatpush2.msra.mxu0 0.0
      %2012 = vmatprep.subr.mxu0 0.0
      %2013 = vmatpush2.msra.mxu0 0.0
      %2014 = vmatprep.subr.mxu0 0.0
      %2015 = vmatpush2.msra.mxu0 0.0
      %2016 = vmatprep.subr.mxu0 0.0
      %2017 = vmatpush2.msra.mxu0 0.0
      %2018 = vmatprep.subr.mxu0 0.0
      %2019 = vmatpush2.msra.mxu0 0.0
      %2020 = vmatprep.subr.mxu0 0.0
      %2021 = vmatpush2.msra.mxu0 0.0
      %2022 = vmatprep.subr.mxu0 0.0
      %2023 = vmatpush2.msra.mxu0 0.0
      %2024 = vmatprep.subr.mxu0 0.0
      %2025 = vmatpush2.msra.mxu0 0.0
      %2026 = vmatprep.subr.mxu0 0.0
      %2027 = vmatpush2.msra.mxu0 0.0
      %2028 = vmatprep.subr.mxu0 0.0
      %2029 = vmatpush2.msra.mxu0 0.0
      %2030 = vmatprep.subr.mxu0 0.0
      %2031 = vmatpush2.msra.mxu0 0.0
      %2032 = vmatprep.subr.mxu0 0.0
      %2033 = vmatpush2.msra.mxu0 0.0
      %2034 = vmatprep.subr.mxu0 0.0
      %2035 = vmatpush2.msra.mxu0 0.0
      %2036 = vmatprep.mubr.f32.mxu0 0.0
      %2037 = vmatmul.mubr.f32.gmra.mxu0 %v1968
      %v2038 = vpop.f32.mrf.mxu0
      %v2039 = vadd.f32 0.0, %v2038
      %v2040 = vpop.f32.mrf.mxu0
      %2041 = vdwg.mxu0
      %2043 = vrot.lane.b32.xlu0 %v2039, 8
      %v2044 = vpop.permute.xlu0 %2043
      %2046 = vst.msk [vmem:[#allocation6 + $0x5] sm:$0x1f] %vm1345, %v2044
      %v2047 = vld [vmem:[#allocation3 + $0x5] sm:$0x1f]
      %v2048 = vld [vmem:[#allocation4 + $0x5] sm:$0x1f]
      %v2049 = vld [vmem:[#allocation5 + $0x5] sm:$0x1f]
      %2051 = vrot.lane.b32.xlu0 %v2047, 112
      %v2052 = vpop.permute.xlu0 %2051
      %2054 = vrot.lane.b32.xlu0 %v2048, 112
      %v2055 = vpop.permute.xlu0 %2054
      %v2056 = vsel %vm1000, %v2052, 0
      %v2058 = vsel %vm1000, %v2055, 0
      %2060 = vmatprep.subr.mxu0 0.0
      %2061 = vmatpush1.xpose.msra.mxu0 0.0
      %2062 = vmatprep.subr.mxu0 0.0
      %2063 = vmatpush1.xpose.msra.mxu0 0.0
      %2064 = vmatprep.subr.mxu0 0.0
      %2065 = vmatpush1.xpose.msra.mxu0 0.0
      %2066 = vmatprep.subr.mxu0 0.0
      %2067 = vmatpush1.xpose.msra.mxu0 0.0
      %2068 = vmatprep.subr.mxu0 0.0
      %2069 = vmatpush1.xpose.msra.mxu0 0.0
      %2070 = vmatprep.subr.mxu0 0.0
      %2071 = vmatpush1.xpose.msra.mxu0 0.0
      %2072 = vmatprep.subr.mxu0 0.0
      %2073 = vmatpush1.xpose.msra.mxu0 0.0
      %2074 = vmatprep.subr.mxu0 0.0
      %2075 = vmatpush1.xpose.msra.mxu0 0.0
      %2076 = vmatprep.subr.mxu0 0.0
      %2077 = vmatpush1.xpose.msra.mxu0 0.0
      %2078 = vmatprep.subr.mxu0 0.0
      %2079 = vmatpush1.xpose.msra.mxu0 0.0
      %2080 = vmatprep.subr.mxu0 0.0
      %2081 = vmatpush1.xpose.msra.mxu0 0.0
      %2082 = vmatprep.subr.mxu0 0.0
      %2083 = vmatpush1.xpose.msra.mxu0 0.0
      %2084 = vmatprep.subr.mxu0 0.0
      %2085 = vmatpush1.xpose.msra.mxu0 0.0
      %2086 = vmatprep.subr.mxu0 0.0
      %2087 = vmatpush1.xpose.msra.mxu0 0.0
      %2088 = vmatprep.subr.mxu0 0.0
      %2089 = vmatpush1.xpose.msra.mxu0 0.0
      %2090 = vmatprep.subr.mxu0 0.0
      %2091 = vmatpush1.xpose.msra.mxu0 %v2058
      %2092 = vmatprep.subr.mxu0 0.0
      %2093 = vmatpush2.xpose.msra.mxu0 0.0
      %2094 = vmatprep.subr.mxu0 0.0
      %2095 = vmatpush2.xpose.msra.mxu0 0.0
      %2096 = vmatprep.subr.mxu0 0.0
      %2097 = vmatpush2.xpose.msra.mxu0 0.0
      %2098 = vmatprep.subr.mxu0 0.0
      %2099 = vmatpush2.xpose.msra.mxu0 0.0
      %2100 = vmatprep.subr.mxu0 0.0
      %2101 = vmatpush2.xpose.msra.mxu0 0.0
      %2102 = vmatprep.subr.mxu0 0.0
      %2103 = vmatpush2.xpose.msra.mxu0 0.0
      %2104 = vmatprep.subr.mxu0 0.0
      %2105 = vmatpush2.xpose.msra.mxu0 0.0
      %2106 = vmatprep.subr.mxu0 0.0
      %2107 = vmatpush2.xpose.msra.mxu0 0.0
      %2108 = vmatprep.subr.mxu0 0.0
      %2109 = vmatpush2.xpose.msra.mxu0 0.0
      %2110 = vmatprep.subr.mxu0 0.0
      %2111 = vmatpush2.xpose.msra.mxu0 0.0
      %2112 = vmatprep.subr.mxu0 0.0
      %2113 = vmatpush2.xpose.msra.mxu0 0.0
      %2114 = vmatprep.subr.mxu0 0.0
      %2115 = vmatpush2.xpose.msra.mxu0 0.0
      %2116 = vmatprep.subr.mxu0 0.0
      %2117 = vmatpush2.xpose.msra.mxu0 0.0
      %2118 = vmatprep.subr.mxu0 0.0
      %2119 = vmatpush2.xpose.msra.mxu0 0.0
      %2120 = vmatprep.subr.mxu0 0.0
      %2121 = vmatpush2.xpose.msra.mxu0 0.0
      %2122 = vmatprep.subr.mxu0 0.0
      %2123 = vmatpush2.xpose.msra.mxu0 0.0
      %2124 = vmatprep.mubr.f32.mxu0 0.0
      %2125 = vmatmul.mubr.f32.gmra.mxu0 %v2056
      %v2126 = vpop.f32.mrf.mxu0
      %v2127 = vadd.f32 0.0, %v2126
      %v2128 = vpop.f32.mrf.mxu0
      %2129 = vdwg.mxu0
      %v2130 = vsel %vm1077, %v2127, -inf
      %2131 = vmax.xlane.f32.xlu0 %v2130
      %v2132 = vpop.xlane.xlu0 %2131
      %v2133 = vsub.f32 %v2127, %v2132
      %v2134 = vmul.f32 %v2133, 1.442695
      %v2135 = vpow.pop %v2134
      %v2136 = vsel %vm1077, %v2135, 0.0
      %2137 = vadd.xlane.f32.xlu0 %v2136
      %v2138 = vpop.xlane.xlu0 %2137
      %v2139 = vrcp.pop %v2138
      %v2140 = vmul.f32 %v2135, %v2139
      %2142 = vrot.lane.b32.xlu0 %v2049, 112
      %v2143 = vpop.permute.xlu0 %2142
      %v2145 = vsel %vm1089, %v2140, 0
      %v2147 = vsel %vm1093, %v2143, 0
      %2149 = vmatprep.subr.mxu0 0.0
      %2150 = vmatpush1.msra.mxu0 0.0
      %2151 = vmatprep.subr.mxu0 0.0
      %2152 = vmatpush1.msra.mxu0 0.0
      %2153 = vmatprep.subr.mxu0 0.0
      %2154 = vmatpush1.msra.mxu0 0.0
      %2155 = vmatprep.subr.mxu0 0.0
      %2156 = vmatpush1.msra.mxu0 0.0
      %2157 = vmatprep.subr.mxu0 0.0
      %2158 = vmatpush1.msra.mxu0 0.0
      %2159 = vmatprep.subr.mxu0 0.0
      %2160 = vmatpush1.msra.mxu0 0.0
      %2161 = vmatprep.subr.mxu0 0.0
      %2162 = vmatpush1.msra.mxu0 0.0
      %2163 = vmatprep.subr.mxu0 0.0
      %2164 = vmatpush1.msra.mxu0 0.0
      %2165 = vmatprep.subr.mxu0 0.0
      %2166 = vmatpush1.msra.mxu0 0.0
      %2167 = vmatprep.subr.mxu0 0.0
      %2168 = vmatpush1.msra.mxu0 0.0
      %2169 = vmatprep.subr.mxu0 0.0
      %2170 = vmatpush1.msra.mxu0 0.0
      %2171 = vmatprep.subr.mxu0 0.0
      %2172 = vmatpush1.msra.mxu0 0.0
      %2173 = vmatprep.subr.mxu0 0.0
      %2174 = vmatpush1.msra.mxu0 0.0
      %2175 = vmatprep.subr.mxu0 0.0
      %2176 = vmatpush1.msra.mxu0 0.0
      %2177 = vmatprep.subr.mxu0 0.0
      %2178 = vmatpush1.msra.mxu0 0.0
      %2179 = vmatprep.subr.mxu0 0.0
      %2180 = vmatpush1.msra.mxu0 %v2147
      %2181 = vmatprep.subr.mxu0 0.0
      %2182 = vmatpush2.msra.mxu0 0.0
      %2183 = vmatprep.subr.mxu0 0.0
      %2184 = vmatpush2.msra.mxu0 0.0
      %2185 = vmatprep.subr.mxu0 0.0
      %2186 = vmatpush2.msra.mxu0 0.0
      %2187 = vmatprep.subr.mxu0 0.0
      %2188 = vmatpush2.msra.mxu0 0.0
      %2189 = vmatprep.subr.mxu0 0.0
      %2190 = vmatpush2.msra.mxu0 0.0
      %2191 = vmatprep.subr.mxu0 0.0
      %2192 = vmatpush2.msra.mxu0 0.0
      %2193 = vmatprep.subr.mxu0 0.0
      %2194 = vmatpush2.msra.mxu0 0.0
      %2195 = vmatprep.subr.mxu0 0.0
      %2196 = vmatpush2.msra.mxu0 0.0
      %2197 = vmatprep.subr.mxu0 0.0
      %2198 = vmatpush2.msra.mxu0 0.0
      %2199 = vmatprep.subr.mxu0 0.0
      %2200 = vmatpush2.msra.mxu0 0.0
      %2201 = vmatprep.subr.mxu0 0.0
      %2202 = vmatpush2.msra.mxu0 0.0
      %2203 = vmatprep.subr.mxu0 0.0
      %2204 = vmatpush2.msra.mxu0 0.0
      %2205 = vmatprep.subr.mxu0 0.0
      %2206 = vmatpush2.msra.mxu0 0.0
      %2207 = vmatprep.subr.mxu0 0.0
      %2208 = vmatpush2.msra.mxu0 0.0
      %2209 = vmatprep.subr.mxu0 0.0
      %2210 = vmatpush2.msra.mxu0 0.0
      %2211 = vmatprep.subr.mxu0 0.0
      %2212 = vmatpush2.msra.mxu0 0.0
      %2213 = vmatprep.mubr.f32.mxu0 0.0
      %2214 = vmatmul.mubr.f32.gmra.mxu0 %v2145
      %v2215 = vpop.f32.mrf.mxu0
      %v2216 = vadd.f32 0.0, %v2215
      %v2217 = vpop.f32.mrf.mxu0
      %2218 = vdwg.mxu0
      %2220 = vrot.lane.b32.xlu0 %v2216, 16
      %v2221 = vpop.permute.xlu0 %2220
      %2223 = vst.msk [vmem:[#allocation6 + $0x5] sm:$0x1f] %vm1523, %v2221
      %v2224 = vld [vmem:[#allocation3 + $0x5] sm:$0x1f]
      %v2225 = vld [vmem:[#allocation4 + $0x5] sm:$0x1f]
      %v2226 = vld [vmem:[#allocation5 + $0x5] sm:$0x1f]
      %2228 = vrot.lane.b32.xlu0 %v2224, 104
      %v2229 = vpop.permute.xlu0 %2228
      %2231 = vrot.lane.b32.xlu0 %v2225, 104
      %v2232 = vpop.permute.xlu0 %2231
      %v2233 = vsel %vm1000, %v2229, 0
      %v2235 = vsel %vm1000, %v2232, 0
      %2237 = vmatprep.subr.mxu0 0.0
      %2238 = vmatpush1.xpose.msra.mxu0 0.0
      %2239 = vmatprep.subr.mxu0 0.0
      %2240 = vmatpush1.xpose.msra.mxu0 0.0
      %2241 = vmatprep.subr.mxu0 0.0
      %2242 = vmatpush1.xpose.msra.mxu0 0.0
      %2243 = vmatprep.subr.mxu0 0.0
      %2244 = vmatpush1.xpose.msra.mxu0 0.0
      %2245 = vmatprep.subr.mxu0 0.0
      %2246 = vmatpush1.xpose.msra.mxu0 0.0
      %2247 = vmatprep.subr.mxu0 0.0
      %2248 = vmatpush1.xpose.msra.mxu0 0.0
      %2249 = vmatprep.subr.mxu0 0.0
      %2250 = vmatpush1.xpose.msra.mxu0 0.0
      %2251 = vmatprep.subr.mxu0 0.0
      %2252 = vmatpush1.xpose.msra.mxu0 0.0
      %2253 = vmatprep.subr.mxu0 0.0
      %2254 = vmatpush1.xpose.msra.mxu0 0.0
      %2255 = vmatprep.subr.mxu0 0.0
      %2256 = vmatpush1.xpose.msra.mxu0 0.0
      %2257 = vmatprep.subr.mxu0 0.0
      %2258 = vmatpush1.xpose.msra.mxu0 0.0
      %2259 = vmatprep.subr.mxu0 0.0
      %2260 = vmatpush1.xpose.msra.mxu0 0.0
      %2261 = vmatprep.subr.mxu0 0.0
      %2262 = vmatpush1.xpose.msra.mxu0 0.0
      %2263 = vmatprep.subr.mxu0 0.0
      %2264 = vmatpush1.xpose.msra.mxu0 0.0
      %2265 = vmatprep.subr.mxu0 0.0
      %2266 = vmatpush1.xpose.msra.mxu0 0.0
      %2267 = vmatprep.subr.mxu0 0.0
      %2268 = vmatpush1.xpose.msra.mxu0 %v2235
      %2269 = vmatprep.subr.mxu0 0.0
      %2270 = vmatpush2.xpose.msra.mxu0 0.0
      %2271 = vmatprep.subr.mxu0 0.0
      %2272 = vmatpush2.xpose.msra.mxu0 0.0
      %2273 = vmatprep.subr.mxu0 0.0
      %2274 = vmatpush2.xpose.msra.mxu0 0.0
      %2275 = vmatprep.subr.mxu0 0.0
      %2276 = vmatpush2.xpose.msra.mxu0 0.0
      %2277 = vmatprep.subr.mxu0 0.0
      %2278 = vmatpush2.xpose.msra.mxu0 0.0
      %2279 = vmatprep.subr.mxu0 0.0
      %2280 = vmatpush2.xpose.msra.mxu0 0.0
      %2281 = vmatprep.subr.mxu0 0.0
      %2282 = vmatpush2.xpose.msra.mxu0 0.0
      %2283 = vmatprep.subr.mxu0 0.0
      %2284 = vmatpush2.xpose.msra.mxu0 0.0
      %2285 = vmatprep.subr.mxu0 0.0
      %2286 = vmatpush2.xpose.msra.mxu0 0.0
      %2287 = vmatprep.subr.mxu0 0.0
      %2288 = vmatpush2.xpose.msra.mxu0 0.0
      %2289 = vmatprep.subr.mxu0 0.0
      %2290 = vmatpush2.xpose.msra.mxu0 0.0
      %2291 = vmatprep.subr.mxu0 0.0
      %2292 = vmatpush2.xpose.msra.mxu0 0.0
      %2293 = vmatprep.subr.mxu0 0.0
      %2294 = vmatpush2.xpose.msra.mxu0 0.0
      %2295 = vmatprep.subr.mxu0 0.0
      %2296 = vmatpush2.xpose.msra.mxu0 0.0
      %2297 = vmatprep.subr.mxu0 0.0
      %2298 = vmatpush2.xpose.msra.mxu0 0.0
      %2299 = vmatprep.subr.mxu0 0.0
      %2300 = vmatpush2.xpose.msra.mxu0 0.0
      %2301 = vmatprep.mubr.f32.mxu0 0.0
      %2302 = vmatmul.mubr.f32.gmra.mxu0 %v2233
      %v2303 = vpop.f32.mrf.mxu0
      %v2304 = vadd.f32 0.0, %v2303
      %v2305 = vpop.f32.mrf.mxu0
      %2306 = vdwg.mxu0
      %v2307 = vsel %vm1077, %v2304, -inf
      %2308 = vmax.xlane.f32.xlu0 %v2307
      %v2309 = vpop.xlane.xlu0 %2308
      %v2310 = vsub.f32 %v2304, %v2309
      %v2311 = vmul.f32 %v2310, 1.442695
      %v2312 = vpow.pop %v2311
      %v2313 = vsel %vm1077, %v2312, 0.0
      %2314 = vadd.xlane.f32.xlu0 %v2313
      %v2315 = vpop.xlane.xlu0 %2314
      %v2316 = vrcp.pop %v2315
      %v2317 = vmul.f32 %v2312, %v2316
      %2319 = vrot.lane.b32.xlu0 %v2226, 104
      %v2320 = vpop.permute.xlu0 %2319
      %v2322 = vsel %vm1089, %v2317, 0
      %v2324 = vsel %vm1093, %v2320, 0
      %2326 = vmatprep.subr.mxu0 0.0
      %2327 = vmatpush1.msra.mxu0 0.0
      %2328 = vmatprep.subr.mxu0 0.0
      %2329 = vmatpush1.msra.mxu0 0.0
      %2330 = vmatprep.subr.mxu0 0.0
      %2331 = vmatpush1.msra.mxu0 0.0
      %2332 = vmatprep.subr.mxu0 0.0
      %2333 = vmatpush1.msra.mxu0 0.0
      %2334 = vmatprep.subr.mxu0 0.0
      %2335 = vmatpush1.msra.mxu0 0.0
      %2336 = vmatprep.subr.mxu0 0.0
      %2337 = vmatpush1.msra.mxu0 0.0
      %2338 = vmatprep.subr.mxu0 0.0
      %2339 = vmatpush1.msra.mxu0 0.0
      %2340 = vmatprep.subr.mxu0 0.0
      %2341 = vmatpush1.msra.mxu0 0.0
      %2342 = vmatprep.subr.mxu0 0.0
      %2343 = vmatpush1.msra.mxu0 0.0
      %2344 = vmatprep.subr.mxu0 0.0
      %2345 = vmatpush1.msra.mxu0 0.0
      %2346 = vmatprep.subr.mxu0 0.0
      %2347 = vmatpush1.msra.mxu0 0.0
      %2348 = vmatprep.subr.mxu0 0.0
      %2349 = vmatpush1.msra.mxu0 0.0
      %2350 = vmatprep.subr.mxu0 0.0
      %2351 = vmatpush1.msra.mxu0 0.0
      %2352 = vmatprep.subr.mxu0 0.0
      %2353 = vmatpush1.msra.mxu0 0.0
      %2354 = vmatprep.subr.mxu0 0.0
      %2355 = vmatpush1.msra.mxu0 0.0
      %2356 = vmatprep.subr.mxu0 0.0
      %2357 = vmatpush1.msra.mxu0 %v2324
      %2358 = vmatprep.subr.mxu0 0.0
      %2359 = vmatpush2.msra.mxu0 0.0
      %2360 = vmatprep.subr.mxu0 0.0
      %2361 = vmatpush2.msra.mxu0 0.0
      %2362 = vmatprep.subr.mxu0 0.0
      %2363 = vmatpush2.msra.mxu0 0.0
      %2364 = vmatprep.subr.mxu0 0.0
      %2365 = vmatpush2.msra.mxu0 0.0
      %2366 = vmatprep.subr.mxu0 0.0
      %2367 = vmatpush2.msra.mxu0 0.0
      %2368 = vmatprep.subr.mxu0 0.0
      %2369 = vmatpush2.msra.mxu0 0.0
      %2370 = vmatprep.subr.mxu0 0.0
      %2371 = vmatpush2.msra.mxu0 0.0
      %2372 = vmatprep.subr.mxu0 0.0
      %2373 = vmatpush2.msra.mxu0 0.0
      %2374 = vmatprep.subr.mxu0 0.0
      %2375 = vmatpush2.msra.mxu0 0.0
      %2376 = vmatprep.subr.mxu0 0.0
      %2377 = vmatpush2.msra.mxu0 0.0
      %2378 = vmatprep.subr.mxu0 0.0
      %2379 = vmatpush2.msra.mxu0 0.0
      %2380 = vmatprep.subr.mxu0 0.0
      %2381 = vmatpush2.msra.mxu0 0.0
      %2382 = vmatprep.subr.mxu0 0.0
      %2383 = vmatpush2.msra.mxu0 0.0
      %2384 = vmatprep.subr.mxu0 0.0
      %2385 = vmatpush2.msra.mxu0 0.0
      %2386 = vmatprep.subr.mxu0 0.0
      %2387 = vmatpush2.msra.mxu0 0.0
      %2388 = vmatprep.subr.mxu0 0.0
      %2389 = vmatpush2.msra.mxu0 0.0
      %2390 = vmatprep.mubr.f32.mxu0 0.0
      %2391 = vmatmul.mubr.f32.gmra.mxu0 %v2322
      %v2392 = vpop.f32.mrf.mxu0
      %v2393 = vadd.f32 0.0, %v2392
      %v2394 = vpop.f32.mrf.mxu0
      %2395 = vdwg.mxu0
      %2397 = vrot.lane.b32.xlu0 %v2393, 24
      %v2398 = vpop.permute.xlu0 %2397
      %2400 = vst.msk [vmem:[#allocation6 + $0x5] sm:$0x1f] %vm1701, %v2398
      %v2401 = vld [vmem:[#allocation6] sm:$0xff]
      %v2402 = vld [vmem:[#allocation6 + $0x8] sm:$0x3]
      %v2403 = vpack.c.bf16 %v2402, %v2401
      %v2404 = vld [vmem:[%s722] sm:$0xf]
      %v2405 = vld [vmem:[%s722 + $0x4] sm:$0xf]
      %v2406 = vld [vmem:[%s722 + $0x8] sm:$0xf]
      %v2407 = vld [vmem:[%s722 + $0xc] sm:$0xf]
      %v2412 = vunpack.c.l.b16 %v2404
      %v2413 = vunpack.c.l.b16 %v2405
      %v2414 = vunpack.c.l.b16 %v2406
      %v2415 = vunpack.c.l.b16 %v2407
      %v2416 = vpack.c.b16 %v2413, %v2412
      %v2417 = vpack.c.b16 %v2415, %v2414
      %v2421 = vsel %vm767, %v2403, 0
      %2423 = vmatprep.subr.bf16.mxu0 0
      %2424 = vmatpush1.bf16.msra.mxu0 0
      %2425 = vmatprep.subr.bf16.mxu0 0
      %2426 = vmatpush1.bf16.msra.mxu0 0
      %2427 = vmatprep.subr.bf16.mxu0 0
      %2428 = vmatpush1.bf16.msra.mxu0 0
      %2429 = vmatprep.subr.bf16.mxu0 0
      %2430 = vmatpush1.bf16.msra.mxu0 0
      %2431 = vmatprep.subr.bf16.mxu0 0
      %2432 = vmatpush1.bf16.msra.mxu0 0
      %2433 = vmatprep.subr.bf16.mxu0 0
      %2434 = vmatpush1.bf16.msra.mxu0 0
      %2435 = vmatprep.subr.bf16.mxu0 0
      %2436 = vmatpush1.bf16.msra.mxu0 %v2417
      %2437 = vmatprep.subr.bf16.mxu0 0
      %2438 = vmatpush1.bf16.msra.mxu0 %v2416
      %2439 = vmatprep.subr.bf16.mxu0 0
      %2440 = vmatpush2.bf16.msra.mxu0 0
      %2441 = vmatprep.subr.bf16.mxu0 0
      %2442 = vmatpush2.bf16.msra.mxu0 0
      %2443 = vmatprep.subr.bf16.mxu0 0
      %2444 = vmatpush2.bf16.msra.mxu0 0
      %2445 = vmatprep.subr.bf16.mxu0 0
      %2446 = vmatpush2.bf16.msra.mxu0 0
      %2447 = vmatprep.subr.bf16.mxu0 0
      %2448 = vmatpush2.bf16.msra.mxu0 0
      %2449 = vmatprep.subr.bf16.mxu0 0
      %2450 = vmatpush2.bf16.msra.mxu0 0
      %2451 = vmatprep.subr.bf16.mxu0 0
      %2452 = vmatpush2.bf16.msra.mxu0 0
      %2453 = vmatprep.subr.bf16.mxu0 0
      %2454 = vmatpush2.bf16.msra.mxu0 0
      %2455 = vmatprep.mubr.bf16.mxu0 0
      %2456 = vmatmul.mubr.bf16.gmra.mxu0 %v2421
      %v2457 = vpop.f32.mrf.mxu0
      %v2458 = vadd.f32 0.0, %v2457
      %v2459 = vpop.f32.mrf.mxu0
      %v2460 = vpop.f32.mrf.mxu0
      %v2461 = vadd.f32 0.0, %v2460
      %v2462 = vpop.f32.mrf.mxu0
      %2463 = vdwg.mxu0
      %v2464 = vadd.f32 %v763, %v2458
      %v2465 = vadd.f32 %v764, %v2461
      %v2466 = vld [vmem:[%s725] sm:$0x1]
      %v2468 = vlaneseq
      %v2469 = vshrl.u32 %v2468, 7
      %v2470 = vsub.s32 0, %v2469
      %v2471 = vrot.slane %v2466, %v2470
      %v2473 = vadd.f32 %v2464, %v2471
      %v2474 = vadd.f32 %v2465, %v2471
      %v2475 = vld [vmem:[%s728] sm:$0x1]
      %v2476 = vld [vmem:[%s731] sm:$0x1]
      %v2477 = vsel %vm767, %v2473, 0.0
      %2478 = vadd.xlane.f32.xlu0 %v2477
      %v2479 = vpop.xlane.xlu0 %2478
      %v2480 = vsel %vm771, %v2474, 0.0
      %2481 = vadd.xlane.f32.xlu0 %v2480
      %v2482 = vpop.xlane.xlu0 %2481
      %v2483 = vmul.f32 %v2479, %v775
      %v2484 = vmul.f32 %v2482, %v775
      %v2485 = vmul.f32 %v2473, %v2473
      %v2486 = vmul.f32 %v2474, %v2474
      %v2487 = vsel %vm767, %v2485, 0.0
      %2488 = vadd.xlane.f32.xlu0 %v2487
      %v2489 = vpop.xlane.xlu0 %2488
      %v2490 = vsel %vm771, %v2486, 0.0
      %2491 = vadd.xlane.f32.xlu0 %v2490
      %v2492 = vpop.xlane.xlu0 %2491
      %v2493 = vmul.f32 %v2489, %v775
      %v2494 = vmul.f32 %v2492, %v775
      %v2495 = vmul.f32 %v2483, %v2483
      %v2496 = vmul.f32 %v2484, %v2484
      %v2497 = vsub.f32 %v2493, %v2495
      %v2498 = vsub.f32 %v2494, %v2496
      %v2499 = vsub.f32 %v2473, %v2483
      %v2500 = vsub.f32 %v2474, %v2484
      %v2501 = vadd.f32 %v2497, 1e-05
      %v2502 = vadd.f32 %v2498, 1e-05
      %v2503 = vrsqrt.pop %v2501
      %v2504 = vrsqrt.pop %v2502
      %v2505 = vmul.f32 %v2499, %v2503
      %v2506 = vmul.f32 %v2500, %v2504
      %v2508 = vlaneseq
      %v2509 = vshrl.u32 %v2508, 7
      %v2510 = vsub.s32 0, %v2509
      %v2511 = vrot.slane %v2475, %v2510
      %v2513 = vmul.f32 %v2505, %v2511
      %v2514 = vmul.f32 %v2506, %v2511
      %v2516 = vlaneseq
      %v2517 = vshrl.u32 %v2516, 7
      %v2518 = vsub.s32 0, %v2517
      %v2519 = vrot.slane %v2476, %v2518
      %v2521 = vadd.f32 %v2513, %v2519
      %v2522 = vadd.f32 %v2514, %v2519
      %v2523 = vpack.c.bf16 %v2522, %v2521
      %v2524 = vld [vmem:[%s736] sm:$0xf]
      %v2525 = vld [vmem:[%s736 + $0x4] sm:$0xf]
      %v2526 = vld [vmem:[%s736 + $0x8] sm:$0xf]
      %v2527 = vld [vmem:[%s736 + $0xc] sm:$0xf]
      %v2528 = vld [vmem:[%s739] sm:$0x1]
      %v2530 = vlaneseq
      %v2531 = vshrl.u32 %v2530, 7
      %v2532 = vsub.s32 0, %v2531
      %v2533 = vrot.slane %v2528, %v2532
      %v2539 = vunpack.c.l.b16 %v2524
      %v2540 = vunpack.c.l.b16 %v2525
      %v2541 = vunpack.c.l.b16 %v2526
      %v2542 = vunpack.c.l.b16 %v2527
      %v2543 = vpack.c.b16 %v2540, %v2539
      %v2544 = vpack.c.b16 %v2542, %v2541
      %v2548 = vsel %vm767, %v2523, 0
      %2550 = vmatprep.subr.bf16.mxu0 0
      %2551 = vmatpush1.bf16.msra.mxu0 0
      %2552 = vmatprep.subr.bf16.mxu0 0
      %2553 = vmatpush1.bf16.msra.mxu0 0
      %2554 = vmatprep.subr.bf16.mxu0 0
      %2555 = vmatpush1.bf16.msra.mxu0 0
      %2556 = vmatprep.subr.bf16.mxu0 0
      %2557 = vmatpush1.bf16.msra.mxu0 0
      %2558 = vmatprep.subr.bf16.mxu0 0
      %2559 = vmatpush1.bf16.msra.mxu0 0
      %2560 = vmatprep.subr.bf16.mxu0 0
      %2561 = vmatpush1.bf16.msra.mxu0 0
      %2562 = vmatprep.subr.bf16.mxu0 0
      %2563 = vmatpush1.bf16.msra.mxu0 %v2544
      %2564 = vmatprep.subr.bf16.mxu0 0
      %2565 = vmatpush1.bf16.msra.mxu0 %v2543
      %2566 = vmatprep.subr.bf16.mxu0 0
      %2567 = vmatpush2.bf16.msra.mxu0 0
      %2568 = vmatprep.subr.bf16.mxu0 0
      %2569 = vmatpush2.bf16.msra.mxu0 0
      %2570 = vmatprep.subr.bf16.mxu0 0
      %2571 = vmatpush2.bf16.msra.mxu0 0
      %2572 = vmatprep.subr.bf16.mxu0 0
      %2573 = vmatpush2.bf16.msra.mxu0 0
      %2574 = vmatprep.subr.bf16.mxu0 0
      %2575 = vmatpush2.bf16.msra.mxu0 0
      %2576 = vmatprep.subr.bf16.mxu0 0
      %2577 = vmatpush2.bf16.msra.mxu0 0
      %2578 = vmatprep.subr.bf16.mxu0 0
      %2579 = vmatpush2.bf16.msra.mxu0 0
      %2580 = vmatprep.subr.bf16.mxu0 0
      %2581 = vmatpush2.bf16.msra.mxu0 0
      %2582 = vmatprep.mubr.bf16.mxu0 0
      %2583 = vmatmul.mubr.bf16.gmra.mxu0 %v2548
      %v2584 = vpop.f32.mrf.mxu0
      %v2585 = vadd.f32 %v2533, %v2584
      %v2586 = vpop.f32.mrf.mxu0
      %v2587 = vpop.f32.mrf.mxu0
      %v2588 = vadd.f32 %v2533, %v2587
      %v2589 = vpop.f32.mrf.mxu0
      %2590 = vdwg.mxu0
      %v2591 = vmul.f32 %v2585, 0.5
      %v2592 = vmul.f32 %v2588, 0.5
      %v2593 = vmul.f32 %v2585, 0.70710677
      %v2594 = vmul.f32 %v2588, 0.70710677
      %v2595 = verf.f32.pop %v2593
      %v2596 = verf.f32.pop %v2594
      %v2597 = vadd.f32 %v2595, 1.0
      %v2598 = vadd.f32 %v2596, 1.0
      %v2599 = vmul.f32 %v2591, %v2597
      %v2600 = vmul.f32 %v2592, %v2598
      %v2601 = vpack.c.bf16 %v2600, %v2599
      %v2602 = vld [vmem:[%s744] sm:$0xf]
      %v2603 = vld [vmem:[%s744 + $0x4] sm:$0xf]
      %v2604 = vld [vmem:[%s744 + $0x8] sm:$0xf]
      %v2605 = vld [vmem:[%s744 + $0xc] sm:$0xf]
      %v2606 = vld [vmem:[%s744 + $0x10] sm:$0xf]
      %v2607 = vld [vmem:[%s744 + $0x14] sm:$0xf]
      %v2608 = vld [vmem:[%s744 + $0x18] sm:$0xf]
      %v2609 = vld [vmem:[%s744 + $0x1c] sm:$0xf]
      %v2610 = vld [vmem:[%s744 + $0x20] sm:$0xf]
      %v2611 = vld [vmem:[%s744 + $0x24] sm:$0xf]
      %v2612 = vld [vmem:[%s744 + $0x28] sm:$0xf]
      %v2613 = vld [vmem:[%s744 + $0x2c] sm:$0xf]
      %v2614 = vld [vmem:[%s744 + $0x30] sm:$0xf]
      %v2615 = vld [vmem:[%s744 + $0x34] sm:$0xf]
      %v2616 = vld [vmem:[%s744 + $0x38] sm:$0xf]
      %v2617 = vld [vmem:[%s744 + $0x3c] sm:$0xf]
      %v2618 = vld [vmem:[%s747] sm:$0x1]
      %v2620 = vlaneseq
      %v2621 = vshrl.u32 %v2620, 7
      %v2622 = vsub.s32 0, %v2621
      %v2623 = vrot.slane %v2618, %v2622
      %v2641 = vunpack.c.l.b16 %v2602
      %v2642 = vunpack.c.l.b16 %v2603
      %v2643 = vunpack.c.l.b16 %v2604
      %v2644 = vunpack.c.l.b16 %v2605
      %v2645 = vunpack.c.l.b16 %v2606
      %v2646 = vunpack.c.l.b16 %v2607
      %v2647 = vunpack.c.l.b16 %v2608
      %v2648 = vunpack.c.l.b16 %v2609
      %v2649 = vunpack.c.l.b16 %v2610
      %v2650 = vunpack.c.l.b16 %v2611
      %v2651 = vunpack.c.l.b16 %v2612
      %v2652 = vunpack.c.l.b16 %v2613
      %v2653 = vunpack.c.l.b16 %v2614
      %v2654 = vunpack.c.l.b16 %v2615
      %v2655 = vunpack.c.l.b16 %v2616
      %v2656 = vunpack.c.l.b16 %v2617
      %v2657 = vpack.c.b16 %v2642, %v2641
      %v2658 = vpack.c.b16 %v2644, %v2643
      %v2659 = vpack.c.b16 %v2646, %v2645
      %v2660 = vpack.c.b16 %v2648, %v2647
      %v2661 = vpack.c.b16 %v2650, %v2649
      %v2662 = vpack.c.b16 %v2652, %v2651
      %v2663 = vpack.c.b16 %v2654, %v2653
      %v2664 = vpack.c.b16 %v2656, %v2655
      %2673 = vmatprep.subr.bf16.mxu0 0
      %2674 = vmatpush1.bf16.msra.mxu0 %v2664
      %2675 = vmatprep.subr.bf16.mxu0 0
      %2676 = vmatpush1.bf16.msra.mxu0 %v2663
      %2677 = vmatprep.subr.bf16.mxu0 0
      %2678 = vmatpush1.bf16.msra.mxu0 %v2662
      %2679 = vmatprep.subr.bf16.mxu0 0
      %2680 = vmatpush1.bf16.msra.mxu0 %v2661
      %2681 = vmatprep.subr.bf16.mxu0 0
      %2682 = vmatpush1.bf16.msra.mxu0 %v2660
      %2683 = vmatprep.subr.bf16.mxu0 0
      %2684 = vmatpush1.bf16.msra.mxu0 %v2659
      %2685 = vmatprep.subr.bf16.mxu0 0
      %2686 = vmatpush1.bf16.msra.mxu0 %v2658
      %2687 = vmatprep.subr.bf16.mxu0 0
      %2688 = vmatpush1.bf16.msra.mxu0 %v2657
      %2689 = vmatprep.subr.bf16.mxu0 0
      %2690 = vmatpush2.bf16.msra.mxu0 0
      %2691 = vmatprep.subr.bf16.mxu0 0
      %2692 = vmatpush2.bf16.msra.mxu0 0
      %2693 = vmatprep.subr.bf16.mxu0 0
      %2694 = vmatpush2.bf16.msra.mxu0 0
      %2695 = vmatprep.subr.bf16.mxu0 0
      %2696 = vmatpush2.bf16.msra.mxu0 0
      %2697 = vmatprep.subr.bf16.mxu0 0
      %2698 = vmatpush2.bf16.msra.mxu0 0
      %2699 = vmatprep.subr.bf16.mxu0 0
      %2700 = vmatpush2.bf16.msra.mxu0 0
      %2701 = vmatprep.subr.bf16.mxu0 0
      %2702 = vmatpush2.bf16.msra.mxu0 0
      %2703 = vmatprep.subr.bf16.mxu0 0
      %2704 = vmatpush2.bf16.msra.mxu0 0
      %2705 = vmatprep.mubr.bf16.mxu0 0
      %2706 = vmatmul.mubr.bf16.gmra.mxu0 %v2601
      %v2707 = vpop.f32.mrf.mxu0
      %v2708 = vadd.f32 %v2623, %v2707
      %v2709 = vpop.f32.mrf.mxu0
      %v2710 = vpop.f32.mrf.mxu0
      %v2711 = vadd.f32 %v2623, %v2710
      %v2712 = vpop.f32.mrf.mxu0
      %2713 = vdwg.mxu0
      %v2714 = vadd.f32 %v2473, %v2708
      %v2715 = vadd.f32 %v2474, %v2711
      %2716 = vst.msk [vmem:[#allocation2] sm:$0xff] %vm767, %v2714
      %2717 = vst.msk [vmem:[#allocation2 + $0x8] sm:$0x3] %vm771, %v2715
      %p2718 = scmp.eq.s32.totalorder %s32, 1
      // Predicated region
      $region89: #{vit_forward.1} parent=83 // pred_check
        %p2719 = pneg %p2718
      $region90: #{vit_forward.1} parent=83 // pred_check_branch
        %2721 = sbr.rel (%p2719) target = $region92
      $region91: #{vit_forward.1} parent=83 // pred_region
        %v2722 = vld [vmem:[%s14] sm:$0x1]
        %v2723 = vld [vmem:[%s15] sm:$0x1]
        %vm2724 = vcmask 253952
        %v2725 = vsel %vm2724, %v2714, 0.0
        %2726 = vadd.xlane.f32.xlu0 %v2725
        %v2727 = vpop.xlane.xlu0 %2726
        %v2728 = vmul.f32 %v2727, %v775
        %v2729 = vmul.f32 %v2714, %v2714
        %v2730 = vsel %vm2724, %v2729, 0.0
        %2731 = vadd.xlane.f32.xlu0 %v2730
        %v2732 = vpop.xlane.xlu0 %2731
        %v2733 = vmul.f32 %v2732, %v775
        %v2734 = vmul.f32 %v2728, %v2728
        %v2735 = vsub.f32 %v2733, %v2734
        %v2736 = vsub.f32 %v2714, %v2728
        %v2737 = vadd.f32 %v2735, 1e-05
        %v2738 = vrsqrt.pop %v2737
        %v2739 = vmul.f32 %v2736, %v2738
        %v2740 = vmul.f32 %v2739, %v2722
        %v2741 = vadd.f32 %v2740, %v2723
        %2742 = vst.msk [vmem:[%s751] sm:$0x1] %vm2724, %v2741
        %v2743 = vld [vmem:[%s14] sm:$0x1]
        %v2744 = vld [vmem:[%s15] sm:$0x1]
        %vm2745 = vcmask 259077
        %v2746 = vsel %vm2745, %v2714, 0.0
        %2747 = vadd.xlane.f32.xlu0 %v2746
        %v2748 = vpop.xlane.xlu0 %2747
        %v2749 = vmul.f32 %v2748, %v775
        %v2750 = vsel %vm2745, %v2729, 0.0
        %2751 = vadd.xlane.f32.xlu0 %v2750
        %v2752 = vpop.xlane.xlu0 %2751
        %v2753 = vmul.f32 %v2752, %v775
        %v2754 = vmul.f32 %v2749, %v2749
        %v2755 = vsub.f32 %v2753, %v2754
        %v2756 = vsub.f32 %v2714, %v2749
        %v2757 = vadd.f32 %v2755, 1e-05
        %v2758 = vrsqrt.pop %v2757
        %v2759 = vmul.f32 %v2756, %v2758
        %v2761 = vlaneseq
        %v2762 = vshrl.u32 %v2761, 7
        %v2763 = vsub.s32 0, %v2762
        %v2764 = vrot.slane %v2743, %v2763
        %v2766 = vmul.f32 %v2759, %v2764
        %v2768 = vlaneseq
        %v2769 = vshrl.u32 %v2768, 7
        %v2770 = vsub.s32 0, %v2769
        %v2771 = vrot.slane %v2744, %v2770
        %v2773 = vadd.f32 %v2766, %v2771
        %2774 = vst.msk [vmem:[%s751 - $0x4] sm:$0x20] %vm2745, %v2773
      $region92: #{vit_forward.1} parent=83 // pred_fallthru
        _
      %p2775 = scmp.lt.s32.totalorder %s31, 0
      %s2776 = scalar_select %p2775, %s31, 0
      %s2777 = smul.addr %s2776, 2
      %s2778 = scalar_lea.vmem %s16, %s2777
      // Predicated region
      $region93: #{vit_forward.1} parent=83 // pred_check
        %p2779 = pneg %p463
      $region94: #{vit_forward.1} parent=83 // pred_check_branch
        %2781 = sbr.rel (%p2779) target = $region96
      $region95: #{vit_forward.1} parent=83 // pred_region
        _
      $region96: #{vit_forward.1} parent=83 // pred_fallthru
        _
      // Predicated region
      $region97: #{vit_forward.1} parent=83 // pred_check
        %p2782 = pneg %p463
      $region98: #{vit_forward.1} parent=83 // pred_check_branch
        %2784 = sbr.rel (%p2782) target = $region100
      $region99: #{vit_forward.1} parent=83 // pred_region
        %p2785 = scmp.lt.s32.totalorder %s31, 0
        %s2786 = scalar_select %p2785, %s31, 0
        %s2787 = smul.addr %s2786, 2
        %s2788 = scalar_lea.vmem %s16, %s2787
      $region100: #{vit_forward.1} parent=83 // pred_fallthru
        _
    $region84: #{vit_forward.1} parent=5 // pred_fallthru
      _
    %p2789 = scmp.le.s32.totalorder 2, %s22
    // Predicated region
    $region101: #{vit_forward.1} parent=5 // pred_check
      %p2790 = pneg %p2789
    $region102: #{vit_forward.1} parent=5 // pred_check_branch
      %2792 = sbr.rel (%p2790) target = $region104
    $region103: #{vit_forward.1} parent=5 // pred_region
      %s2793 = ssub.s32 %s22, 2
    $region104: #{vit_forward.1} parent=5 // pred_fallthru
      _
  $region6: #{vit_forward.1} parent=0 // loop_footer
    %s26 = sadd.s32 1, %s22
  $region7: #{vit_forward.1} parent=0 // loop_footer_branch
    %21 = sbr.rel target = $region3
  $region8: #{vit_forward.1} parent=0 // loop_exit
    _

</llo_original>
